<compile_context>
chip_gen: v7x
topology: tpu7x:2x2x1
jax: 0.10.0
libtpu: 0.0.40
codegen_flags: <defaults>
</compile_context>

<pallas_src>
import jax
import jax.numpy as jnp
import numpy as np
from jax.experimental import pallas as pl
from jax.experimental.pallas import tpu as pltpu

D = 8
W = 256
INPUT_CH = 3
OUTPUT_CH = 4

# Candidate batch tiles, largest first. Multiples of 256 feed the 256x256 MXU
# (v6e/v7x) and 128x128 MXU (v5e) with no ragged passes.
_TILE_CANDIDATES = (2048, 1024, 512, 256)


def _choose_tile(n):
    # Prefer the biggest tile for overhead amortization, but keep >= 2 grid
    # steps so both v7x TensorCores get work on the "parallel" batch axis.
    # On v5e/v6e (1 TC) this just reduces padding waste for small batches.
    for tb in _TILE_CANDIDATES:
        if n >= 2 * tb:
            return tb
    return _TILE_CANDIDATES[-1]


def _relu(x):
    return jnp.maximum(x, 0.0)


def nerf_kernel(pts_ref, w3_ref, wmat_ref, bias_ref, wo_ref, bo_ref, out_ref):
    """One batch tile of the full NeRF MLP (use_viewdirs=False branch).

    pts_ref : (TB, 3)         f32   input-points tile
    w3_ref  : (2, 3, W)       bf16  [0] = layer-0 weight, [1] = skip x-part of W5
    wmat_ref: (7, W, W)       bf16  W1..W4, W5[h-part], W6, W7
    bias_ref: (8, W)          f32   b0..b7
    wo_ref  : (W, OUTPUT_CH)  bf16  output_linear weight
    bo_ref  : (1, OUTPUT_CH)  f32   output_linear bias
    """
    x_bf = pts_ref[...].astype(jnp.bfloat16)        # (TB, 3) — tiny, kept live

    def lin(h_f32, w_bf, b_row):
        return jnp.dot(h_f32.astype(jnp.bfloat16), w_bf,
                       preferred_element_type=jnp.float32) + b_row

    # Layer 0.
    h = _relu(jnp.dot(x_bf, w3_ref[0], preferred_element_type=jnp.float32)
              + bias_ref[0:1, :])
    # Layers 1..4.
    for i in range(1, 5):
        h = _relu(lin(h, wmat_ref[i - 1], bias_ref[i:i + 1, :]))
    # Skip connection at i==4:  relu(cat([x, h]) @ W5 + b5)
    #   == relu(x @ W5[:3] + h @ W5[3:] + b5)
    # Computed just-in-time from x_bf so the (TB, W) f32 skip term is live
    # only across layer 5, not across layers 1..4.
    skip = jnp.dot(x_bf, w3_ref[1], preferred_element_type=jnp.float32)
    h = _relu(skip + lin(h, wmat_ref[4], bias_ref[5:6, :]))
    # Layers 6, 7.
    h = _relu(lin(h, wmat_ref[5], bias_ref[6:7, :]))
    h = _relu(lin(h, wmat_ref[6], bias_ref[7:8, :]))
    # output_linear. Narrow (4-lane) store is hidden under MXU work.
    out_ref[...] = lin(h, wo_ref[...], bo_ref[...])


def init_params(key):
    """Deterministic init mimicking torch.nn.Linear default (U(-k, k), k=1/sqrt(fan_in)).

    Weights stored transposed relative to torch: (in_features, out_features).
    Biases stored as (1, out_features). Stored in f32; weights are cast to
    bf16 once when packed for the kernel.
    """
    layer_dims = ([(INPUT_CH, W)] +
                  [(W, W)] * 4 +
                  [(W + INPUT_CH, W)] +      # skip layer (i==4 in skips)
                  [(W, W)] * 2 +
                  [(W, OUTPUT_CH)])          # output_linear
    params = []
    for (fan_in, fan_out) in layer_dims:
        key, kw, kb = jax.random.split(key, 3)
        bound = 1.0 / np.sqrt(fan_in)
        w = jax.random.uniform(kw, (fan_in, fan_out), jnp.float32, -bound, bound)
        b = jax.random.uniform(kb, (1, fan_out), jnp.float32, -bound, bound)
        params.append((w, b))
    return params


def _pack_params(params):
    """Stack params into the kernel's 6-operand layout (weights -> bf16)."""
    w0, b0 = params[0]
    w5, b5 = params[5]
    w3 = jnp.stack([w0, w5[:INPUT_CH, :]], axis=0).astype(jnp.bfloat16)   # (2,3,W)
    mats = ([params[i][0] for i in (1, 2, 3, 4)]
            + [w5[INPUT_CH:, :]]
            + [params[i][0] for i in (6, 7)])
    wmat = jnp.stack(mats, axis=0).astype(jnp.bfloat16)                   # (7,W,W)
    biases = ([b0]
              + [params[i][1] for i in (1, 2, 3, 4)]
              + [b5]
              + [params[i][1] for i in (6, 7)])
    bias = jnp.concatenate(biases, axis=0)                                # (8,W)
    wo, bo = params[8]
    return w3, wmat, bias, wo.astype(jnp.bfloat16), bo


def nerf_forward(params, input_pts, input_views):
    """input_views accepted for signature parity; unused when use_viewdirs=False."""
    del input_views
    N = input_pts.shape[0]
    if N == 0:
        out = jnp.zeros((0, OUTPUT_CH), jnp.float32)
        return out[..., :1], out[..., 1:]

    tb = _choose_tile(N)
    n_tiles = pl.cdiv(N, tb)
    n_pad = n_tiles * tb
    pts = input_pts
    if n_pad != N:
        pts = jnp.pad(input_pts, ((0, n_pad - N), (0, 0)))

    w3, wmat, bias, wo, bo = _pack_params(params)

    def resident(arr):
        # Constant index_map => operand stays resident in VMEM across the grid
        # (revisited blocks are not re-DMA'd each step).
        nd = arr.ndim
        return pl.BlockSpec(arr.shape, lambda i, _nd=nd: (0,) * _nd)

    out = pl.pallas_call(
        nerf_kernel,
        out_shape=jax.ShapeDtypeStruct((n_pad, OUTPUT_CH), jnp.float32),
        grid_spec=pltpu.PrefetchScalarGridSpec(
            num_scalar_prefetch=0,
            grid=(n_tiles,),
            in_specs=[pl.BlockSpec((tb, INPUT_CH), lambda i: (i, 0)),
                      resident(w3), resident(wmat), resident(bias),
                      resident(wo), resident(bo)],
            out_specs=pl.BlockSpec((tb, OUTPUT_CH), lambda i: (i, 0)),
        ),
        compiler_params=pltpu.CompilerParams(
            dimension_semantics=("parallel",),
            # ~48 MiB: room for TB=2048 activations + resident weights while
            # staying inside v7x's 64 MiB physical VMEM per TensorCore
            # (v5e/v6e have 128 MiB, so this is conservative there).
            vmem_limit_bytes=48 * 1024 * 1024,
        ),
    )(pts, w3, wmat, bias, wo, bo)

    out = out[:N]
    return out[..., :1], out[..., 1:]


def nerf_reference(params, input_pts):
    """Pure-JAX reference mirroring the kernel's bf16-input / f32-accumulate matmuls."""
    def mm(a, w):
        return jnp.dot(a.astype(jnp.bfloat16), w.astype(jnp.bfloat16),
                       preferred_element_type=jnp.float32)

    x = input_pts
    h = x
    for i in range(D):
        w, b = params[i]
        h = _relu(mm(h, w) + b)
        if i == 4:
            h = jnp.concatenate([x, h], axis=-1)
    wo, bo = params[-1]
    out = mm(h, wo) + bo
    return out[..., :1], out[..., 1:]


if __name__ == "__main__":
    key = jax.random.PRNGKey(0)
    kp, kpts, kviews = jax.random.split(key, 3)

    params = init_params(kp)
    N = 1000  # deliberately not a multiple of the tile to exercise padding
    input_pts = jax.random.normal(kpts, (N, INPUT_CH), jnp.float32)
    input_views = jax.random.normal(kviews, (N, INPUT_CH), jnp.float32)

    alpha, rest = nerf_forward(params, input_pts, input_views)
    alpha = jax.block_until_ready(alpha)
    rest = jax.block_until_ready(rest)

    ref_alpha, ref_rest = nerf_reference(params, input_pts)
    np.testing.assert_allclose(np.asarray(alpha), np.asarray(ref_alpha),
                               rtol=2e-3, atol=2e-3)
    np.testing.assert_allclose(np.asarray(rest), np.asarray(ref_rest),
                               rtol=2e-3, atol=2e-3)

    assert alpha.shape == (N, 1) and rest.shape == (N, OUTPUT_CH - 1)
    print("KERNEL_OK")
</pallas_src>

<mosaic_0001>
module attributes {stable_mosaic.version = 11 : i64} {
  func.func @nerf_kernel(%arg0: i32, %arg1: memref<256x3xf32, #tpu.memory_space<vmem>>, %arg2: memref<2x3x256xbf16, #tpu.memory_space<vmem>>, %arg3: memref<7x256x256xbf16, #tpu.memory_space<vmem>>, %arg4: memref<8x256xf32, #tpu.memory_space<vmem>>, %arg5: memref<256x4xbf16, #tpu.memory_space<vmem>>, %arg6: memref<1x4xf32, #tpu.memory_space<vmem>>, %arg7: memref<256x4xf32, #tpu.memory_space<vmem>>) attributes {dimension_semantics = [#tpu.dimension_semantics<parallel>], iteration_bounds = array<i64: 4>, scalar_prefetch = 0 : i64, scratch_operands = 0 : i64, tpu.core_type = #tpu.core_type<tc>, window_params = [{transform_indices = @transform_0, window_bounds = array<i64: 256, 3>}, {pipeline_mode = #tpu.pipeline_mode<synchronous>, transform_indices = @transform_1, window_bounds = array<i64: 2, 3, 256>}, {pipeline_mode = #tpu.pipeline_mode<synchronous>, transform_indices = @transform_2, window_bounds = array<i64: 7, 256, 256>}, {pipeline_mode = #tpu.pipeline_mode<synchronous>, transform_indices = @transform_3, window_bounds = array<i64: 8, 256>}, {pipeline_mode = #tpu.pipeline_mode<synchronous>, transform_indices = @transform_4, window_bounds = array<i64: 256, 4>}, {pipeline_mode = #tpu.pipeline_mode<synchronous>, transform_indices = @transform_5, window_bounds = array<i64: 1, 4>}, {transform_indices = @transform_6, window_bounds = array<i64: 256, 4>}]} {
    %c0 = arith.constant 0 : index
    %c0_0 = arith.constant 0 : index
    %0 = vector.load %arg1[%c0, %c0_0] : memref<256x3xf32, #tpu.memory_space<vmem>>, vector<256x3xf32>
    %1 = arith.truncf %0 : vector<256x3xf32> to vector<256x3xbf16>
    %c0_1 = arith.constant 0 : index
    %c0_2 = arith.constant 0 : index
    %c0_3 = arith.constant 0 : index
    %2 = vector.load %arg2[%c0_1, %c0_2, %c0_3] : memref<2x3x256xbf16, #tpu.memory_space<vmem>>, vector<1x3x256xbf16>
    %3 = vector.shape_cast %2 : vector<1x3x256xbf16> to vector<3x256xbf16>
    %cst = arith.constant dense<0.000000e+00> : vector<256x256xf32>
    %4 = tpu.matmul %1, %3, %cst {dimension_numbers = #tpu.dot_dimension_numbers<[1], [0], [0], [1], [0, 0, 1, 1], [], []>} : vector<256x3xbf16>, vector<3x256xbf16>, vector<256x256xf32> -> vector<256x256xf32>
    %c0_4 = arith.constant 0 : index
    %c0_5 = arith.constant 0 : index
    %5 = vector.load %arg4[%c0_4, %c0_5] : memref<8x256xf32, #tpu.memory_space<vmem>>, vector<1x256xf32>
    %6 = vector.broadcast %5 : vector<1x256xf32> to vector<256x256xf32>
    %7 = arith.addf %4, %6 : vector<256x256xf32>
    %cst_6 = arith.constant 0.000000e+00 : f32
    %8 = vector.broadcast %cst_6 : f32 to vector<256x256xf32>
    %9 = arith.maximumf %7, %8 : vector<256x256xf32>
    %c0_7 = arith.constant 0 : index
    %c0_8 = arith.constant 0 : index
    %c0_9 = arith.constant 0 : index
    %10 = vector.load %arg3[%c0_7, %c0_8, %c0_9] : memref<7x256x256xbf16, #tpu.memory_space<vmem>>, vector<1x256x256xbf16>
    %11 = vector.shape_cast %10 : vector<1x256x256xbf16> to vector<256x256xbf16>
    %c1 = arith.constant 1 : index
    %c0_10 = arith.constant 0 : index
    %12 = vector.load %arg4[%c1, %c0_10] : memref<8x256xf32, #tpu.memory_space<vmem>>, vector<1x256xf32>
    %13 = arith.truncf %9 : vector<256x256xf32> to vector<256x256xbf16>
    %cst_11 = arith.constant dense<0.000000e+00> : vector<256x256xf32>
    %14 = tpu.matmul %13, %11, %cst_11 {dimension_numbers = #tpu.dot_dimension_numbers<[1], [0], [0], [1], [0, 0, 1, 1], [], []>} : vector<256x256xbf16>, vector<256x256xbf16>, vector<256x256xf32> -> vector<256x256xf32>
    %15 = vector.broadcast %12 : vector<1x256xf32> to vector<256x256xf32>
    %16 = arith.addf %14, %15 : vector<256x256xf32>
    %cst_12 = arith.constant 0.000000e+00 : f32
    %17 = vector.broadcast %cst_12 : f32 to vector<256x256xf32>
    %18 = arith.maximumf %16, %17 : vector<256x256xf32>
    %c1_13 = arith.constant 1 : index
    %c0_14 = arith.constant 0 : index
    %c0_15 = arith.constant 0 : index
    %19 = vector.load %arg3[%c1_13, %c0_14, %c0_15] : memref<7x256x256xbf16, #tpu.memory_space<vmem>>, vector<1x256x256xbf16>
    %20 = vector.shape_cast %19 : vector<1x256x256xbf16> to vector<256x256xbf16>
    %c2 = arith.constant 2 : index
    %c0_16 = arith.constant 0 : index
    %21 = vector.load %arg4[%c2, %c0_16] : memref<8x256xf32, #tpu.memory_space<vmem>>, vector<1x256xf32>
    %22 = arith.truncf %18 : vector<256x256xf32> to vector<256x256xbf16>
    %cst_17 = arith.constant dense<0.000000e+00> : vector<256x256xf32>
    %23 = tpu.matmul %22, %20, %cst_17 {dimension_numbers = #tpu.dot_dimension_numbers<[1], [0], [0], [1], [0, 0, 1, 1], [], []>} : vector<256x256xbf16>, vector<256x256xbf16>, vector<256x256xf32> -> vector<256x256xf32>
    %24 = vector.broadcast %21 : vector<1x256xf32> to vector<256x256xf32>
    %25 = arith.addf %23, %24 : vector<256x256xf32>
    %cst_18 = arith.constant 0.000000e+00 : f32
    %26 = vector.broadcast %cst_18 : f32 to vector<256x256xf32>
    %27 = arith.maximumf %25, %26 : vector<256x256xf32>
    %c2_19 = arith.constant 2 : index
    %c0_20 = arith.constant 0 : index
    %c0_21 = arith.constant 0 : index
    %28 = vector.load %arg3[%c2_19, %c0_20, %c0_21] : memref<7x256x256xbf16, #tpu.memory_space<vmem>>, vector<1x256x256xbf16>
    %29 = vector.shape_cast %28 : vector<1x256x256xbf16> to vector<256x256xbf16>
    %c3 = arith.constant 3 : index
    %c0_22 = arith.constant 0 : index
    %30 = vector.load %arg4[%c3, %c0_22] : memref<8x256xf32, #tpu.memory_space<vmem>>, vector<1x256xf32>
    %31 = arith.truncf %27 : vector<256x256xf32> to vector<256x256xbf16>
    %cst_23 = arith.constant dense<0.000000e+00> : vector<256x256xf32>
    %32 = tpu.matmul %31, %29, %cst_23 {dimension_numbers = #tpu.dot_dimension_numbers<[1], [0], [0], [1], [0, 0, 1, 1], [], []>} : vector<256x256xbf16>, vector<256x256xbf16>, vector<256x256xf32> -> vector<256x256xf32>
    %33 = vector.broadcast %30 : vector<1x256xf32> to vector<256x256xf32>
    %34 = arith.addf %32, %33 : vector<256x256xf32>
    %cst_24 = arith.constant 0.000000e+00 : f32
    %35 = vector.broadcast %cst_24 : f32 to vector<256x256xf32>
    %36 = arith.maximumf %34, %35 : vector<256x256xf32>
    %c3_25 = arith.constant 3 : index
    %c0_26 = arith.constant 0 : index
    %c0_27 = arith.constant 0 : index
    %37 = vector.load %arg3[%c3_25, %c0_26, %c0_27] : memref<7x256x256xbf16, #tpu.memory_space<vmem>>, vector<1x256x256xbf16>
    %38 = vector.shape_cast %37 : vector<1x256x256xbf16> to vector<256x256xbf16>
    %c4 = arith.constant 4 : index
    %c0_28 = arith.constant 0 : index
    %39 = vector.load %arg4[%c4, %c0_28] : memref<8x256xf32, #tpu.memory_space<vmem>>, vector<1x256xf32>
    %40 = arith.truncf %36 : vector<256x256xf32> to vector<256x256xbf16>
    %cst_29 = arith.constant dense<0.000000e+00> : vector<256x256xf32>
    %41 = tpu.matmul %40, %38, %cst_29 {dimension_numbers = #tpu.dot_dimension_numbers<[1], [0], [0], [1], [0, 0, 1, 1], [], []>} : vector<256x256xbf16>, vector<256x256xbf16>, vector<256x256xf32> -> vector<256x256xf32>
    %42 = vector.broadcast %39 : vector<1x256xf32> to vector<256x256xf32>
    %43 = arith.addf %41, %42 : vector<256x256xf32>
    %cst_30 = arith.constant 0.000000e+00 : f32
    %44 = vector.broadcast %cst_30 : f32 to vector<256x256xf32>
    %45 = arith.maximumf %43, %44 : vector<256x256xf32>
    %c1_31 = arith.constant 1 : index
    %c0_32 = arith.constant 0 : index
    %c0_33 = arith.constant 0 : index
    %46 = vector.load %arg2[%c1_31, %c0_32, %c0_33] : memref<2x3x256xbf16, #tpu.memory_space<vmem>>, vector<1x3x256xbf16>
    %47 = vector.shape_cast %46 : vector<1x3x256xbf16> to vector<3x256xbf16>
    %cst_34 = arith.constant dense<0.000000e+00> : vector<256x256xf32>
    %48 = tpu.matmul %1, %47, %cst_34 {dimension_numbers = #tpu.dot_dimension_numbers<[1], [0], [0], [1], [0, 0, 1, 1], [], []>} : vector<256x3xbf16>, vector<3x256xbf16>, vector<256x256xf32> -> vector<256x256xf32>
    %c4_35 = arith.constant 4 : index
    %c0_36 = arith.constant 0 : index
    %c0_37 = arith.constant 0 : index
    %49 = vector.load %arg3[%c4_35, %c0_36, %c0_37] : memref<7x256x256xbf16, #tpu.memory_space<vmem>>, vector<1x256x256xbf16>
    %50 = vector.shape_cast %49 : vector<1x256x256xbf16> to vector<256x256xbf16>
    %c5 = arith.constant 5 : index
    %c0_38 = arith.constant 0 : index
    %51 = vector.load %arg4[%c5, %c0_38] : memref<8x256xf32, #tpu.memory_space<vmem>>, vector<1x256xf32>
    %52 = arith.truncf %45 : vector<256x256xf32> to vector<256x256xbf16>
    %cst_39 = arith.constant dense<0.000000e+00> : vector<256x256xf32>
    %53 = tpu.matmul %52, %50, %cst_39 {dimension_numbers = #tpu.dot_dimension_numbers<[1], [0], [0], [1], [0, 0, 1, 1], [], []>} : vector<256x256xbf16>, vector<256x256xbf16>, vector<256x256xf32> -> vector<256x256xf32>
    %54 = vector.broadcast %51 : vector<1x256xf32> to vector<256x256xf32>
    %55 = arith.addf %53, %54 : vector<256x256xf32>
    %56 = arith.addf %48, %55 : vector<256x256xf32>
    %cst_40 = arith.constant 0.000000e+00 : f32
    %57 = vector.broadcast %cst_40 : f32 to vector<256x256xf32>
    %58 = arith.maximumf %56, %57 : vector<256x256xf32>
    %c5_41 = arith.constant 5 : index
    %c0_42 = arith.constant 0 : index
    %c0_43 = arith.constant 0 : index
    %59 = vector.load %arg3[%c5_41, %c0_42, %c0_43] : memref<7x256x256xbf16, #tpu.memory_space<vmem>>, vector<1x256x256xbf16>
    %60 = vector.shape_cast %59 : vector<1x256x256xbf16> to vector<256x256xbf16>
    %c6 = arith.constant 6 : index
    %c0_44 = arith.constant 0 : index
    %61 = vector.load %arg4[%c6, %c0_44] : memref<8x256xf32, #tpu.memory_space<vmem>>, vector<1x256xf32>
    %62 = arith.truncf %58 : vector<256x256xf32> to vector<256x256xbf16>
    %cst_45 = arith.constant dense<0.000000e+00> : vector<256x256xf32>
    %63 = tpu.matmul %62, %60, %cst_45 {dimension_numbers = #tpu.dot_dimension_numbers<[1], [0], [0], [1], [0, 0, 1, 1], [], []>} : vector<256x256xbf16>, vector<256x256xbf16>, vector<256x256xf32> -> vector<256x256xf32>
    %64 = vector.broadcast %61 : vector<1x256xf32> to vector<256x256xf32>
    %65 = arith.addf %63, %64 : vector<256x256xf32>
    %cst_46 = arith.constant 0.000000e+00 : f32
    %66 = vector.broadcast %cst_46 : f32 to vector<256x256xf32>
    %67 = arith.maximumf %65, %66 : vector<256x256xf32>
    %c6_47 = arith.constant 6 : index
    %c0_48 = arith.constant 0 : index
    %c0_49 = arith.constant 0 : index
    %68 = vector.load %arg3[%c6_47, %c0_48, %c0_49] : memref<7x256x256xbf16, #tpu.memory_space<vmem>>, vector<1x256x256xbf16>
    %69 = vector.shape_cast %68 : vector<1x256x256xbf16> to vector<256x256xbf16>
    %c7 = arith.constant 7 : index
    %c0_50 = arith.constant 0 : index
    %70 = vector.load %arg4[%c7, %c0_50] : memref<8x256xf32, #tpu.memory_space<vmem>>, vector<1x256xf32>
    %71 = arith.truncf %67 : vector<256x256xf32> to vector<256x256xbf16>
    %cst_51 = arith.constant dense<0.000000e+00> : vector<256x256xf32>
    %72 = tpu.matmul %71, %69, %cst_51 {dimension_numbers = #tpu.dot_dimension_numbers<[1], [0], [0], [1], [0, 0, 1, 1], [], []>} : vector<256x256xbf16>, vector<256x256xbf16>, vector<256x256xf32> -> vector<256x256xf32>
    %73 = vector.broadcast %70 : vector<1x256xf32> to vector<256x256xf32>
    %74 = arith.addf %72, %73 : vector<256x256xf32>
    %cst_52 = arith.constant 0.000000e+00 : f32
    %75 = vector.broadcast %cst_52 : f32 to vector<256x256xf32>
    %76 = arith.maximumf %74, %75 : vector<256x256xf32>
    %c0_53 = arith.constant 0 : index
    %c0_54 = arith.constant 0 : index
    %77 = vector.load %arg5[%c0_53, %c0_54] : memref<256x4xbf16, #tpu.memory_space<vmem>>, vector<256x4xbf16>
    %c0_55 = arith.constant 0 : index
    %c0_56 = arith.constant 0 : index
    %78 = vector.load %arg6[%c0_55, %c0_56] : memref<1x4xf32, #tpu.memory_space<vmem>>, vector<1x4xf32>
    %79 = arith.truncf %76 : vector<256x256xf32> to vector<256x256xbf16>
    %cst_57 = arith.constant dense<0.000000e+00> : vector<256x4xf32>
    %80 = tpu.matmul %79, %77, %cst_57 {dimension_numbers = #tpu.dot_dimension_numbers<[1], [0], [0], [1], [0, 0, 1, 1], [], []>} : vector<256x256xbf16>, vector<256x4xbf16>, vector<256x4xf32> -> vector<256x4xf32>
    %81 = vector.broadcast %78 : vector<1x4xf32> to vector<256x4xf32>
    %82 = arith.addf %80, %81 : vector<256x4xf32>
    %c0_58 = arith.constant 0 : index
    %c0_59 = arith.constant 0 : index
    %83 = vector.load %arg7[%c0_58, %c0_59] : memref<256x4xf32, #tpu.memory_space<vmem>>, vector<256x4xf32>
    tpu.vector_store %arg7[%c0_58, %c0_59], %82 {strides = array<i32>} : memref<256x4xf32, #tpu.memory_space<vmem>>, vector<256x4xf32>,
    return
  }
  func.func @transform_0(%arg0: i32) -> (i32, i32) {
    %c0_i32 = arith.constant 0 : i32
    %c0_i32_0 = arith.constant 0 : i32
    return %arg0, %c0_i32 : i32, i32
  }
  func.func @transform_1(%arg0: i32) -> (i32, i32, i32) {
    %c0_i32 = arith.constant 0 : i32
    %c0_i32_0 = arith.constant 0 : i32
    %c0_i32_1 = arith.constant 0 : i32
    %c0_i32_2 = arith.constant 0 : i32
    return %c0_i32, %c0_i32_0, %c0_i32_1 : i32, i32, i32
  }
  func.func @transform_2(%arg0: i32) -> (i32, i32, i32) {
    %c0_i32 = arith.constant 0 : i32
    %c0_i32_0 = arith.constant 0 : i32
    %c0_i32_1 = arith.constant 0 : i32
    %c0_i32_2 = arith.constant 0 : i32
    return %c0_i32, %c0_i32_0, %c0_i32_1 : i32, i32, i32
  }
  func.func @transform_3(%arg0: i32) -> (i32, i32) {
    %c0_i32 = arith.constant 0 : i32
    %c0_i32_0 = arith.constant 0 : i32
    %c0_i32_1 = arith.constant 0 : i32
    return %c0_i32, %c0_i32_0 : i32, i32
  }
  func.func @transform_4(%arg0: i32) -> (i32, i32) {
    %c0_i32 = arith.constant 0 : i32
    %c0_i32_0 = arith.constant 0 : i32
    %c0_i32_1 = arith.constant 0 : i32
    return %c0_i32, %c0_i32_0 : i32, i32
  }
  func.func @transform_5(%arg0: i32) -> (i32, i32) {
    %c0_i32 = arith.constant 0 : i32
    %c0_i32_0 = arith.constant 0 : i32
    %c0_i32_1 = arith.constant 0 : i32
    return %c0_i32, %c0_i32_0 : i32, i32
  }
  func.func @transform_6(%arg0: i32) -> (i32, i32) {
    %c0_i32 = arith.constant 0 : i32
    %c0_i32_0 = arith.constant 0 : i32
    return %arg0, %c0_i32 : i32, i32
  }
}

</mosaic_0001>

<llo_original>
// kernel: tpu_custom_call.1
$region0: #{tpu_custom_call.1}
  #allocation0 [shape = 'u32[]', space=smem, size = 0x4, offset = 0x4, fixed_abs, tag = 'smem constant byte address 0x4 - core index']
  #allocation1 [shape = 'u32[144,128]{1,0:T(1,128)}', space=vmem, size = 0x12000, scoped, tag = 'internal scratch']
  %s0 = inlined_call_operand.vmem [shape: f32[1024,3], index: 0, kind: input, shape index: {}]
  %s1 = inlined_call_operand.vmem [shape: bf16[2,3,256], index: 1, kind: input, shape index: {}]
  %s2 = inlined_call_operand.hbm [shape: bf16[7,256,256], index: 2, kind: input, shape index: {}]
  %s3 = inlined_call_operand.vmem [shape: f32[8,256], index: 3, kind: input, shape index: {}]
  %s4 = inlined_call_operand.vmem [shape: bf16[256,4], index: 4, kind: input, shape index: {}]
  %s5 = inlined_call_operand.vmem [shape: f32[1,4], index: 5, kind: input, shape index: {}]
  %s6 = inlined_call_operand.vmem [shape: f32[1024,4], index: 6, kind: output, shape index: {}]
  %s7 = sld [smem:[#allocation0]]
  $region61: #{tpu_custom_call.1} parent=0
    _
  %s9 = ssub.s32 1, %s7
  %s10 = scalar_select 0, %s9, %s7
  $region1: #{tpu_custom_call.1} parent=0
    #allocation2 [shape = 'u8[917504]{0}', space=vmem, size = 0xe0000, scoped, tag = 'input window, operand 2, single buffered']
    #allocation3 [shape = 's32[2]{0}', space=sflag, size = 0x8, scoped, tag = 'scoped memory for tpu_custom_call.1']
    %11 = vsyncpa [#allocation3], 0
    loop: start=0, step=1, limit=6
    $region2: #{tpu_custom_call.1} parent=1 // loop_pre_header
      _
    $region3: #{tpu_custom_call.1} parent=1 // loop_header
      %s13 = sphi 0, %s17
      %p14 = scmp.ge.s32.totalorder %s13, 6
      %s23 = sphi 0, %s25
      %s26 = sphi 0, %s23
      %s27 = sphi 0, %s26
      %s43 = sphi 0, %s27
      %s47 = sphi 0, %s47
      %s49 = sphi 0, %s47
      %s50 = sphi 0, %s49
      %s64 = sphi 0, %s50
      %s68 = sphi 0, %s68
      %s70 = sphi 0, %s68
      %s71 = sphi 0, %s70
      %s85 = sphi 0, %s71
      %s89 = sphi 0, %s89
      %s91 = sphi 0, %s89
      %s92 = sphi 0, %s91
      %s106 = sphi 0, %s92
      %s110 = sphi 0, %s110
      %s112 = sphi 0, %s110
      %s113 = sphi 0, %s112
      %s127 = sphi 0, %s113
      %s131 = sphi 0, %s131
      %s133 = sphi 0, %s131
      %s134 = sphi 0, %s133
      %s148 = sphi 0, %s134
      %s154 = sphi 0, %s156
      %s157 = sphi 0, %s154
      %s158 = sphi 0, %s157
      %s174 = sphi 0, %s158
    $region4: #{tpu_custom_call.1} parent=1 // loop_header_branch
      %16 = sbr.rel (%p14) target = $region8
    $region5: #{tpu_custom_call.1} parent=1 // loop_body
      %s18 = ssub.s32 %s13, 1
      %s19 = ssub.s32 %s13, 2
      %s20 = sadd.s32 %s13, 1
      %s21 = ssub.s32 %s13, %s20
      %p22 = scmp.eq.s32.totalorder %s21, 0
      %s24 = sadd.s32 %s23, 1
      %s25 = scalar_select %p22, %s23, %s24
      %p28 = pneg %p22
      %p29 = scmp.eq.s32.totalorder %s13, 3
      %p30 = por %p28, %p29
      %p31 = scmp.ne.s32.totalorder %s23, %s26
      %p32 = scmp.eq.s32.totalorder %s13, 0
      %p33 = por %p31, %p32
      %p34 = scmp.ne.s32.totalorder %s23, %s26
      %p35 = scmp.eq.s32.totalorder %s18, 3
      %p36 = por %p34, %p35
      %p37 = scmp.ne.s32.totalorder %s26, %s27
      %p38 = scmp.eq.s32.totalorder %s18, 0
      %p39 = por %p37, %p38
      %p40 = scmp.ne.s32.totalorder %s26, %s27
      %p41 = scmp.eq.s32.totalorder %s19, 3
      %p42 = por %p40, %p41
      %p44 = scmp.ne.s32.totalorder %s27, %s43
      %p45 = scmp.eq.s32.totalorder %s19, 0
      %p46 = por %p44, %p45
      %s48 = sadd.s32 %s47, 1
      %p51 = scmp.eq.s32.totalorder %s13, 3
      %p52 = scmp.ne.s32.totalorder %s47, %s49
      %p53 = scmp.eq.s32.totalorder %s13, 0
      %p54 = por %p52, %p53
      %p55 = scmp.ne.s32.totalorder %s47, %s49
      %p56 = scmp.eq.s32.totalorder %s18, 3
      %p57 = por %p55, %p56
      %p58 = scmp.ne.s32.totalorder %s49, %s50
      %p59 = scmp.eq.s32.totalorder %s18, 0
      %p60 = por %p58, %p59
      %p61 = scmp.ne.s32.totalorder %s49, %s50
      %p62 = scmp.eq.s32.totalorder %s19, 3
      %p63 = por %p61, %p62
      %p65 = scmp.ne.s32.totalorder %s50, %s64
      %p66 = scmp.eq.s32.totalorder %s19, 0
      %p67 = por %p65, %p66
      %s69 = sadd.s32 %s68, 1
      %p72 = scmp.eq.s32.totalorder %s13, 3
      %p73 = scmp.ne.s32.totalorder %s68, %s70
      %p74 = scmp.eq.s32.totalorder %s13, 0
      %p75 = por %p73, %p74
      %p76 = scmp.ne.s32.totalorder %s68, %s70
      %p77 = scmp.eq.s32.totalorder %s18, 3
      %p78 = por %p76, %p77
      %p79 = scmp.ne.s32.totalorder %s70, %s71
      %p80 = scmp.eq.s32.totalorder %s18, 0
      %p81 = por %p79, %p80
      %p82 = scmp.ne.s32.totalorder %s70, %s71
      %p83 = scmp.eq.s32.totalorder %s19, 3
      %p84 = por %p82, %p83
      %p86 = scmp.ne.s32.totalorder %s71, %s85
      %p87 = scmp.eq.s32.totalorder %s19, 0
      %p88 = por %p86, %p87
      %s90 = sadd.s32 %s89, 1
      %p93 = scmp.eq.s32.totalorder %s13, 3
      %p94 = scmp.ne.s32.totalorder %s89, %s91
      %p95 = scmp.eq.s32.totalorder %s13, 0
      %p96 = por %p94, %p95
      %p97 = scmp.ne.s32.totalorder %s89, %s91
      %p98 = scmp.eq.s32.totalorder %s18, 3
      %p99 = por %p97, %p98
      %p100 = scmp.ne.s32.totalorder %s91, %s92
      %p101 = scmp.eq.s32.totalorder %s18, 0
      %p102 = por %p100, %p101
      %p103 = scmp.ne.s32.totalorder %s91, %s92
      %p104 = scmp.eq.s32.totalorder %s19, 3
      %p105 = por %p103, %p104
      %p107 = scmp.ne.s32.totalorder %s92, %s106
      %p108 = scmp.eq.s32.totalorder %s19, 0
      %p109 = por %p107, %p108
      %s111 = sadd.s32 %s110, 1
      %p114 = scmp.eq.s32.totalorder %s13, 3
      %p115 = scmp.ne.s32.totalorder %s110, %s112
      %p116 = scmp.eq.s32.totalorder %s13, 0
      %p117 = por %p115, %p116
      %p118 = scmp.ne.s32.totalorder %s110, %s112
      %p119 = scmp.eq.s32.totalorder %s18, 3
      %p120 = por %p118, %p119
      %p121 = scmp.ne.s32.totalorder %s112, %s113
      %p122 = scmp.eq.s32.totalorder %s18, 0
      %p123 = por %p121, %p122
      %p124 = scmp.ne.s32.totalorder %s112, %s113
      %p125 = scmp.eq.s32.totalorder %s19, 3
      %p126 = por %p124, %p125
      %p128 = scmp.ne.s32.totalorder %s113, %s127
      %p129 = scmp.eq.s32.totalorder %s19, 0
      %p130 = por %p128, %p129
      %s132 = sadd.s32 %s131, 1
      %p135 = scmp.eq.s32.totalorder %s13, 3
      %p136 = scmp.ne.s32.totalorder %s131, %s133
      %p137 = scmp.eq.s32.totalorder %s13, 0
      %p138 = por %p136, %p137
      %p139 = scmp.ne.s32.totalorder %s131, %s133
      %p140 = scmp.eq.s32.totalorder %s18, 3
      %p141 = por %p139, %p140
      %p142 = scmp.ne.s32.totalorder %s133, %s134
      %p143 = scmp.eq.s32.totalorder %s18, 0
      %p144 = por %p142, %p143
      %p145 = scmp.ne.s32.totalorder %s133, %s134
      %p146 = scmp.eq.s32.totalorder %s19, 3
      %p147 = por %p145, %p146
      %p149 = scmp.ne.s32.totalorder %s134, %s148
      %p150 = scmp.eq.s32.totalorder %s19, 0
      %p151 = por %p149, %p150
      %s152 = ssub.s32 %s13, %s20
      %p153 = scmp.eq.s32.totalorder %s152, 0
      %s155 = sadd.s32 %s154, 1
      %s156 = scalar_select %p153, %s154, %s155
      %p159 = pneg %p153
      %p160 = scmp.eq.s32.totalorder %s13, 3
      %p161 = por %p159, %p160
      %p162 = scmp.ne.s32.totalorder %s154, %s157
      %p163 = scmp.eq.s32.totalorder %s13, 0
      %p164 = por %p162, %p163
      %p165 = scmp.ne.s32.totalorder %s154, %s157
      %p166 = scmp.eq.s32.totalorder %s18, 3
      %p167 = por %p165, %p166
      %p168 = scmp.ne.s32.totalorder %s157, %s158
      %p169 = scmp.eq.s32.totalorder %s18, 0
      %p170 = por %p168, %p169
      %p171 = scmp.ne.s32.totalorder %s157, %s158
      %p172 = scmp.eq.s32.totalorder %s19, 3
      %p173 = por %p171, %p172
      %p175 = scmp.ne.s32.totalorder %s158, %s174
      %p176 = scmp.eq.s32.totalorder %s19, 0
      %p177 = por %p175, %p176
      %p178 = scmp.le.s32.totalorder 1, %s13
      %p179 = scmp.lt.s32.totalorder %s13, 5
      %p180 = pnand %p178, %p179
      %p181 = pneg %p180
      // Predicated region
      $region9: #{tpu_custom_call.1} parent=5 // pred_check
        _
      $region10: #{tpu_custom_call.1} parent=5 // pred_check_branch
        %183 = sbr.rel (%p180) target = $region12
      $region11: #{tpu_custom_call.1} parent=5 // pred_region
        %s184 = ssub.s32 %s13, 1
        // Predicated region
        $region13: #{tpu_custom_call.1} parent=11 // pred_check
          %p185 = pneg %p60
        $region14: #{tpu_custom_call.1} parent=11 // pred_check_branch
          %187 = sbr.rel (%p185) target = $region16
        $region15: #{tpu_custom_call.1} parent=11 // pred_region
          _
        $region16: #{tpu_custom_call.1} parent=11 // pred_fallthru
          _
        // Predicated region
        $region17: #{tpu_custom_call.1} parent=11 // pred_check
          %p188 = pneg %p81
        $region18: #{tpu_custom_call.1} parent=11 // pred_check_branch
          %190 = sbr.rel (%p188) target = $region20
        $region19: #{tpu_custom_call.1} parent=11 // pred_region
          %s192 = ssub.s32 28672, 28672
          %193 = vsyncadd [#allocation3], %s192
          %s194 = sshll.u32 [#allocation2], 4
          %s195 = int_to_ptr.vmem [resolvable:$true] %s194
          %200 = dma.hbm_to_vmem [thread:$0]  %s2, 28672, %s195, [#allocation3], 128, 128, 8
        $region20: #{tpu_custom_call.1} parent=11 // pred_fallthru
          _
        // Predicated region
        $region21: #{tpu_custom_call.1} parent=11 // pred_check
          %p201 = pneg %p102
        $region22: #{tpu_custom_call.1} parent=11 // pred_check_branch
          %203 = sbr.rel (%p201) target = $region24
        $region23: #{tpu_custom_call.1} parent=11 // pred_region
          _
        $region24: #{tpu_custom_call.1} parent=11 // pred_fallthru
          _
        // Predicated region
        $region25: #{tpu_custom_call.1} parent=11 // pred_check
          %p204 = pneg %p123
        $region26: #{tpu_custom_call.1} parent=11 // pred_check_branch
          %206 = sbr.rel (%p204) target = $region28
        $region27: #{tpu_custom_call.1} parent=11 // pred_region
          _
        $region28: #{tpu_custom_call.1} parent=11 // pred_fallthru
          _
        // Predicated region
        $region29: #{tpu_custom_call.1} parent=11 // pred_check
          %p207 = pneg %p144
        $region30: #{tpu_custom_call.1} parent=11 // pred_check_branch
          %209 = sbr.rel (%p207) target = $region32
        $region31: #{tpu_custom_call.1} parent=11 // pred_region
          _
        $region32: #{tpu_custom_call.1} parent=11 // pred_fallthru
          _
      $region12: #{tpu_custom_call.1} parent=5 // pred_fallthru
        _
      %p210 = scmp.lt.s32.totalorder %s13, 4
      // Predicated region
      $region33: #{tpu_custom_call.1} parent=5 // pred_check
        %p211 = pneg %p210
      $region34: #{tpu_custom_call.1} parent=5 // pred_check_branch
        %213 = sbr.rel (%p211) target = $region36
      $region35: #{tpu_custom_call.1} parent=5 // pred_region
        // Predicated region
        $region37: #{tpu_custom_call.1} parent=35 // pred_check
          %p214 = pneg %p33
        $region38: #{tpu_custom_call.1} parent=35 // pred_check_branch
          %216 = sbr.rel (%p214) target = $region40
        $region39: #{tpu_custom_call.1} parent=35 // pred_region
          %s217 = smul.u32 32, %s13
          %p218 = scmp.lt.s32.totalorder %s217, 127
          %s219 = scalar_select %p218, %s217, 127
          %s220 = smul.addr %s219, 8
          %s221 = scalar_lea.vmem %s0, %s220
          %s222 = smul.u32 32, %s13
        $region40: #{tpu_custom_call.1} parent=35 // pred_fallthru
          _
      $region36: #{tpu_custom_call.1} parent=5 // pred_fallthru
        _
      %p223 = scmp.le.s32.totalorder 1, %s13
      %p224 = scmp.lt.s32.totalorder %s13, 5
      %p225 = pnand %p223, %p224
      %p226 = pneg %p225
      // Predicated region
      $region41: #{tpu_custom_call.1} parent=5 // pred_check
        _
      $region42: #{tpu_custom_call.1} parent=5 // pred_check_branch
        %228 = sbr.rel (%p225) target = $region44
      $region43: #{tpu_custom_call.1} parent=5 // pred_region
        %s229 = ssub.s32 %s13, 1
        // Predicated region
        $region45: #{tpu_custom_call.1} parent=43 // pred_check
          %p230 = pneg %p81
        $region46: #{tpu_custom_call.1} parent=43 // pred_check_branch
          %232 = sbr.rel (%p230) target = $region48
        $region47: #{tpu_custom_call.1} parent=43 // pred_region
          %233 = dma.done [#allocation3], 28672
        $region48: #{tpu_custom_call.1} parent=43 // pred_fallthru
          _
        %s234 = smul.u32 32, %s18
        %p235 = scmp.lt.s32.totalorder %s234, 127
        %s236 = scalar_select %p235, %s234, 127
        %s237 = smul.addr %s236, 8
        %s238 = scalar_lea.vmem %s0, %s237
        %p239 = pneg %p39
        %p240 = pneg %p36
        %p241 = pneg %p60
        %p242 = pneg %p57
        %p243 = pneg %p81
        %p244 = pneg %p78
        %p245 = pneg %p102
        %p246 = pneg %p99
        %p247 = pneg %p123
        %p248 = pneg %p120
        %p249 = pneg %p144
        %p250 = pneg %p141
        %p251 = pneg %p170
        %p252 = pneg %p167
        %s253 = smul.u32 32, %s18
        %p254 = scmp.lt.s32.totalorder %s253, 127
        %s255 = scalar_select %p254, %s253, 127
        %s256 = smul.addr %s255, 8
        %s257 = scalar_lea.vmem %s6, %s256
        %s258 = smul.u32 32, %s18
        %p259 = scmp.lt.s32.totalorder %s258, 127
        %s260 = scalar_select %p259, %s258, 127
        %s261 = smul.addr %s260, 8
        %s262 = scalar_lea.vmem %s0, %s261
        %s263 = smul.u32 32, %s18
        %s264 = smul.u32 32, %s18
        %p265 = scmp.lt.s32.totalorder %s264, 127
        %s266 = scalar_select %p265, %s264, 127
        %s267 = smul.addr %s266, 8
        %s268 = scalar_lea.vmem %s6, %s267
        %s269 = smul.u32 32, %s18
        %v271 = vld [vmem:[%s262] sm:$0xff]
        %v272 = vld [vmem:[%s262 + $0x8] sm:$0xff]
        %v273 = vld [vmem:[%s262 + $0x10] sm:$0xff]
        %v274 = vld [vmem:[%s262 + $0x18] sm:$0xff]
        %v275 = vld [vmem:[%s262 + $0x20] sm:$0xff]
        %v276 = vld [vmem:[%s262 + $0x28] sm:$0xff]
        %v277 = vld [vmem:[%s262 + $0x30] sm:$0xff]
        %v278 = vld [vmem:[%s262 + $0x38] sm:$0xff]
        %v279 = vld [vmem:[%s262 + $0x40] sm:$0xff]
        %v280 = vld [vmem:[%s262 + $0x48] sm:$0xff]
        %v281 = vld [vmem:[%s262 + $0x50] sm:$0xff]
        %v282 = vld [vmem:[%s262 + $0x58] sm:$0xff]
        %v283 = vld [vmem:[%s262 + $0x60] sm:$0xff]
        %v284 = vld [vmem:[%s262 + $0x68] sm:$0xff]
        %v285 = vld [vmem:[%s262 + $0x70] sm:$0xff]
        %v286 = vld [vmem:[%s262 + $0x78] sm:$0xff]
        %v287 = vld [vmem:[%s262 + $0x80] sm:$0xff]
        %v288 = vld [vmem:[%s262 + $0x88] sm:$0xff]
        %v289 = vld [vmem:[%s262 + $0x90] sm:$0xff]
        %v290 = vld [vmem:[%s262 + $0x98] sm:$0xff]
        %v291 = vld [vmem:[%s262 + $0xa0] sm:$0xff]
        %v292 = vld [vmem:[%s262 + $0xa8] sm:$0xff]
        %v293 = vld [vmem:[%s262 + $0xb0] sm:$0xff]
        %v294 = vld [vmem:[%s262 + $0xb8] sm:$0xff]
        %v295 = vld [vmem:[%s262 + $0xc0] sm:$0xff]
        %v296 = vld [vmem:[%s262 + $0xc8] sm:$0xff]
        %v297 = vld [vmem:[%s262 + $0xd0] sm:$0xff]
        %v298 = vld [vmem:[%s262 + $0xd8] sm:$0xff]
        %v299 = vld [vmem:[%s262 + $0xe0] sm:$0xff]
        %v300 = vld [vmem:[%s262 + $0xe8] sm:$0xff]
        %v301 = vld [vmem:[%s262 + $0xf0] sm:$0xff]
        %v302 = vld [vmem:[%s262 + $0xf8] sm:$0xff]
        %v303 = vpack.c.bf16 %v272, %v271
        %v304 = vpack.c.bf16 %v274, %v273
        %v305 = vpack.c.bf16 %v276, %v275
        %v306 = vpack.c.bf16 %v278, %v277
        %v307 = vpack.c.bf16 %v280, %v279
        %v308 = vpack.c.bf16 %v282, %v281
        %v309 = vpack.c.bf16 %v284, %v283
        %v310 = vpack.c.bf16 %v286, %v285
        %v311 = vpack.c.bf16 %v288, %v287
        %v312 = vpack.c.bf16 %v290, %v289
        %v313 = vpack.c.bf16 %v292, %v291
        %v314 = vpack.c.bf16 %v294, %v293
        %v315 = vpack.c.bf16 %v296, %v295
        %v316 = vpack.c.bf16 %v298, %v297
        %v317 = vpack.c.bf16 %v300, %v299
        %v318 = vpack.c.bf16 %v302, %v301
        %v319 = vld [vmem:[%s1] sm:$0xf]
        %v320 = vld [vmem:[%s3] ss:$8 sm:$0x3]
        %v322 = vlaneseq
        %v323 = vshrl.u32 %v322, 7
        %v324 = vsub.s32 0, %v323
        %v325 = vrot.slane %v320, %v324
        %v326 = vlaneseq
        %v327 = vshrl.u32 %v326, 7
        %v328 = vsub.s32 1, %v327
        %v329 = vrot.slane %v320, %v328
        %v334 = vunpack.c.l.s4 1983009808
        %v335 = vunpack.c.0.s8 %v334
        %v336 = vlaneseq
        %v337 = vshrl.u32 %v336, 7
        %v338 = vsub.s32 %v335, %v337
        %v339 = vrot.slane %v319, %v338
        %v340 = vcombine.high %v339, %v339
        %vm341 = vcmask 23552
        %v343 = vsel %vm341, %v303, 0
        %v346 = vsel %vm341, %v304, 0
        %v349 = vsel %vm341, %v305, 0
        %v352 = vsel %vm341, %v306, 0
        %v355 = vsel %vm341, %v307, 0
        %v358 = vsel %vm341, %v308, 0
        %v361 = vsel %vm341, %v309, 0
        %v364 = vsel %vm341, %v310, 0
        %v367 = vsel %vm341, %v311, 0
        %v370 = vsel %vm341, %v312, 0
        %v373 = vsel %vm341, %v313, 0
        %v376 = vsel %vm341, %v314, 0
        %v379 = vsel %vm341, %v315, 0
        %v382 = vsel %vm341, %v316, 0
        %v385 = vsel %vm341, %v317, 0
        %v388 = vsel %vm341, %v318, 0
        %vm390 = vcmask 1040384
        %vm391 = vcmask 1041408
        %v392 = vsel %vm390, 4294967295, 65535
        %v393 = vsel %vm391, %v392, 0
        %v395 = vand.u32 %v339, %v393
        %v398 = vand.u32 %v340, %v393
        %400 = vmatprep.subr.bf16.mxu0 %v398
        %401 = vmatpush1.bf16.msra.mxu0 %v395
        %402 = vmatprep.subr.bf16.mxu0 0
        %403 = vmatpush1.bf16.msra.mxu0 0
        %404 = vmatprep.subr.bf16.mxu0 0
        %405 = vmatpush1.bf16.msra.mxu0 0
        %406 = vmatprep.subr.bf16.mxu0 0
        %407 = vmatpush1.bf16.msra.mxu0 0
        %408 = vmatprep.subr.bf16.mxu0 0
        %409 = vmatpush1.bf16.msra.mxu0 0
        %410 = vmatprep.subr.bf16.mxu0 0
        %411 = vmatpush1.bf16.msra.mxu0 0
        %412 = vmatprep.subr.bf16.mxu0 0
        %413 = vmatpush1.bf16.msra.mxu0 0
        %414 = vmatprep.subr.bf16.mxu0 0
        %415 = vmatpush1.bf16.msra.mxu0 0
        %416 = vmatprep.subr.bf16.mxu0 0
        %417 = vmatpush1.bf16.msra.mxu0 0
        %418 = vmatprep.subr.bf16.mxu0 0
        %419 = vmatpush1.bf16.msra.mxu0 0
        %420 = vmatprep.subr.bf16.mxu0 0
        %421 = vmatpush1.bf16.msra.mxu0 0
        %422 = vmatprep.subr.bf16.mxu0 0
        %423 = vmatpush1.bf16.msra.mxu0 0
        %424 = vmatprep.subr.bf16.mxu0 0
        %425 = vmatpush1.bf16.msra.mxu0 0
        %426 = vmatprep.subr.bf16.mxu0 0
        %427 = vmatpush1.bf16.msra.mxu0 0
        %428 = vmatprep.subr.bf16.mxu0 0
        %429 = vmatpush1.bf16.msra.mxu0 0
        %430 = vmatprep.subr.bf16.mxu0 0
        %431 = vmatpush1.bf16.msra.mxu0 0
        %432 = vmatprep.mubr.bf16.mxu0 0
        %433 = vmatmul.mubr.bf16.gmra.mrb[0].mxu0 %v343
        %v434 = vpop.f32.mrb[0].mxu0
        %v435 = vadd.f32 %v325, %v434
        %v436 = vpop.f32.mrb[0].mxu0
        %v437 = vadd.f32 %v329, %v436
        %v438 = vpop.f32.mrb[0].mxu0
        %v439 = vadd.f32 %v325, %v438
        %v440 = vpop.f32.mrb[0].mxu0
        %v441 = vadd.f32 %v329, %v440
        %442 = vmatprep.mubr.bf16.mxu0 0
        %443 = vmatmul.mubr.bf16.gmra.mrb[0].mxu0 %v346
        %v444 = vpop.f32.mrb[0].mxu0
        %v445 = vadd.f32 %v325, %v444
        %v446 = vpop.f32.mrb[0].mxu0
        %v447 = vadd.f32 %v329, %v446
        %v448 = vpop.f32.mrb[0].mxu0
        %v449 = vadd.f32 %v325, %v448
        %v450 = vpop.f32.mrb[0].mxu0
        %v451 = vadd.f32 %v329, %v450
        %452 = vmatprep.mubr.bf16.mxu0 0
        %453 = vmatmul.mubr.bf16.gmra.mrb[0].mxu0 %v349
        %v454 = vpop.f32.mrb[0].mxu0
        %v455 = vadd.f32 %v325, %v454
        %v456 = vpop.f32.mrb[0].mxu0
        %v457 = vadd.f32 %v329, %v456
        %v458 = vpop.f32.mrb[0].mxu0
        %v459 = vadd.f32 %v325, %v458
        %v460 = vpop.f32.mrb[0].mxu0
        %v461 = vadd.f32 %v329, %v460
        %462 = vmatprep.mubr.bf16.mxu0 0
        %463 = vmatmul.mubr.bf16.gmra.mrb[0].mxu0 %v352
        %v464 = vpop.f32.mrb[0].mxu0
        %v465 = vadd.f32 %v325, %v464
        %v466 = vpop.f32.mrb[0].mxu0
        %v467 = vadd.f32 %v329, %v466
        %v468 = vpop.f32.mrb[0].mxu0
        %v469 = vadd.f32 %v325, %v468
        %v470 = vpop.f32.mrb[0].mxu0
        %v471 = vadd.f32 %v329, %v470
        %472 = vmatprep.mubr.bf16.mxu0 0
        %473 = vmatmul.mubr.bf16.gmra.mrb[0].mxu0 %v355
        %v474 = vpop.f32.mrb[0].mxu0
        %v475 = vadd.f32 %v325, %v474
        %v476 = vpop.f32.mrb[0].mxu0
        %v477 = vadd.f32 %v329, %v476
        %v478 = vpop.f32.mrb[0].mxu0
        %v479 = vadd.f32 %v325, %v478
        %v480 = vpop.f32.mrb[0].mxu0
        %v481 = vadd.f32 %v329, %v480
        %482 = vmatprep.mubr.bf16.mxu0 0
        %483 = vmatmul.mubr.bf16.gmra.mrb[0].mxu0 %v358
        %v484 = vpop.f32.mrb[0].mxu0
        %v485 = vadd.f32 %v325, %v484
        %v486 = vpop.f32.mrb[0].mxu0
        %v487 = vadd.f32 %v329, %v486
        %v488 = vpop.f32.mrb[0].mxu0
        %v489 = vadd.f32 %v325, %v488
        %v490 = vpop.f32.mrb[0].mxu0
        %v491 = vadd.f32 %v329, %v490
        %492 = vmatprep.mubr.bf16.mxu0 0
        %493 = vmatmul.mubr.bf16.gmra.mrb[0].mxu0 %v361
        %v494 = vpop.f32.mrb[0].mxu0
        %v495 = vadd.f32 %v325, %v494
        %v496 = vpop.f32.mrb[0].mxu0
        %v497 = vadd.f32 %v329, %v496
        %v498 = vpop.f32.mrb[0].mxu0
        %v499 = vadd.f32 %v325, %v498
        %v500 = vpop.f32.mrb[0].mxu0
        %v501 = vadd.f32 %v329, %v500
        %502 = vmatprep.mubr.bf16.mxu0 0
        %503 = vmatmul.mubr.bf16.gmra.mrb[0].mxu0 %v364
        %v504 = vpop.f32.mrb[0].mxu0
        %v505 = vadd.f32 %v325, %v504
        %v506 = vpop.f32.mrb[0].mxu0
        %v507 = vadd.f32 %v329, %v506
        %v508 = vpop.f32.mrb[0].mxu0
        %v509 = vadd.f32 %v325, %v508
        %v510 = vpop.f32.mrb[0].mxu0
        %v511 = vadd.f32 %v329, %v510
        %512 = vmatprep.mubr.bf16.mxu0 0
        %513 = vmatmul.mubr.bf16.gmra.mrb[0].mxu0 %v367
        %v514 = vpop.f32.mrb[0].mxu0
        %v515 = vadd.f32 %v325, %v514
        %v516 = vpop.f32.mrb[0].mxu0
        %v517 = vadd.f32 %v329, %v516
        %v518 = vpop.f32.mrb[0].mxu0
        %v519 = vadd.f32 %v325, %v518
        %v520 = vpop.f32.mrb[0].mxu0
        %v521 = vadd.f32 %v329, %v520
        %522 = vmatprep.mubr.bf16.mxu0 0
        %523 = vmatmul.mubr.bf16.gmra.mrb[0].mxu0 %v370
        %v524 = vpop.f32.mrb[0].mxu0
        %v525 = vadd.f32 %v325, %v524
        %v526 = vpop.f32.mrb[0].mxu0
        %v527 = vadd.f32 %v329, %v526
        %v528 = vpop.f32.mrb[0].mxu0
        %v529 = vadd.f32 %v325, %v528
        %v530 = vpop.f32.mrb[0].mxu0
        %v531 = vadd.f32 %v329, %v530
        %532 = vmatprep.mubr.bf16.mxu0 0
        %533 = vmatmul.mubr.bf16.gmra.mrb[0].mxu0 %v373
        %v534 = vpop.f32.mrb[0].mxu0
        %v535 = vadd.f32 %v325, %v534
        %v536 = vpop.f32.mrb[0].mxu0
        %v537 = vadd.f32 %v329, %v536
        %v538 = vpop.f32.mrb[0].mxu0
        %v539 = vadd.f32 %v325, %v538
        %v540 = vpop.f32.mrb[0].mxu0
        %v541 = vadd.f32 %v329, %v540
        %542 = vmatprep.mubr.bf16.mxu0 0
        %543 = vmatmul.mubr.bf16.gmra.mrb[0].mxu0 %v376
        %v544 = vpop.f32.mrb[0].mxu0
        %v545 = vadd.f32 %v325, %v544
        %v546 = vpop.f32.mrb[0].mxu0
        %v547 = vadd.f32 %v329, %v546
        %v548 = vpop.f32.mrb[0].mxu0
        %v549 = vadd.f32 %v325, %v548
        %v550 = vpop.f32.mrb[0].mxu0
        %v551 = vadd.f32 %v329, %v550
        %552 = vmatprep.mubr.bf16.mxu0 0
        %553 = vmatmul.mubr.bf16.gmra.mrb[0].mxu0 %v379
        %v554 = vpop.f32.mrb[0].mxu0
        %v555 = vadd.f32 %v325, %v554
        %v556 = vpop.f32.mrb[0].mxu0
        %v557 = vadd.f32 %v329, %v556
        %v558 = vpop.f32.mrb[0].mxu0
        %v559 = vadd.f32 %v325, %v558
        %v560 = vpop.f32.mrb[0].mxu0
        %v561 = vadd.f32 %v329, %v560
        %562 = vmatprep.mubr.bf16.mxu0 0
        %563 = vmatmul.mubr.bf16.gmra.mrb[0].mxu0 %v382
        %v564 = vpop.f32.mrb[0].mxu0
        %v565 = vadd.f32 %v325, %v564
        %v566 = vpop.f32.mrb[0].mxu0
        %v567 = vadd.f32 %v329, %v566
        %v568 = vpop.f32.mrb[0].mxu0
        %v569 = vadd.f32 %v325, %v568
        %v570 = vpop.f32.mrb[0].mxu0
        %v571 = vadd.f32 %v329, %v570
        %572 = vmatprep.mubr.bf16.mxu0 0
        %573 = vmatmul.mubr.bf16.gmra.mrb[0].mxu0 %v385
        %v574 = vpop.f32.mrb[0].mxu0
        %v575 = vadd.f32 %v325, %v574
        %v576 = vpop.f32.mrb[0].mxu0
        %v577 = vadd.f32 %v329, %v576
        %v578 = vpop.f32.mrb[0].mxu0
        %v579 = vadd.f32 %v325, %v578
        %v580 = vpop.f32.mrb[0].mxu0
        %v581 = vadd.f32 %v329, %v580
        %582 = vmatprep.mubr.bf16.mxu0 0
        %583 = vmatmul.mubr.bf16.gmra.mrb[0].mxu0 %v388
        %v584 = vpop.f32.mrb[0].mxu0
        %v585 = vadd.f32 %v325, %v584
        %v586 = vpop.f32.mrb[0].mxu0
        %v587 = vadd.f32 %v329, %v586
        %v588 = vpop.f32.mrb[0].mxu0
        %v589 = vadd.f32 %v325, %v588
        %v590 = vpop.f32.mrb[0].mxu0
        %v591 = vadd.f32 %v329, %v590
        %592 = vdwg.mxu0
        %v593 = vmax.f32 %v435, 0.0
        %v594 = vmax.f32 %v437, 0.0
        %v595 = vmax.f32 %v439, 0.0
        %v596 = vmax.f32 %v441, 0.0
        %v597 = vmax.f32 %v445, 0.0
        %v598 = vmax.f32 %v447, 0.0
        %v599 = vmax.f32 %v449, 0.0
        %v600 = vmax.f32 %v451, 0.0
        %v601 = vmax.f32 %v455, 0.0
        %v602 = vmax.f32 %v457, 0.0
        %v603 = vmax.f32 %v459, 0.0
        %v604 = vmax.f32 %v461, 0.0
        %v605 = vmax.f32 %v465, 0.0
        %v606 = vmax.f32 %v467, 0.0
        %v607 = vmax.f32 %v469, 0.0
        %v608 = vmax.f32 %v471, 0.0
        %v609 = vmax.f32 %v475, 0.0
        %v610 = vmax.f32 %v477, 0.0
        %v611 = vmax.f32 %v479, 0.0
        %v612 = vmax.f32 %v481, 0.0
        %v613 = vmax.f32 %v485, 0.0
        %v614 = vmax.f32 %v487, 0.0
        %v615 = vmax.f32 %v489, 0.0
        %v616 = vmax.f32 %v491, 0.0
        %v617 = vmax.f32 %v495, 0.0
        %v618 = vmax.f32 %v497, 0.0
        %v619 = vmax.f32 %v499, 0.0
        %v620 = vmax.f32 %v501, 0.0
        %v621 = vmax.f32 %v505, 0.0
        %v622 = vmax.f32 %v507, 0.0
        %v623 = vmax.f32 %v509, 0.0
        %v624 = vmax.f32 %v511, 0.0
        %v625 = vmax.f32 %v515, 0.0
        %v626 = vmax.f32 %v517, 0.0
        %v627 = vmax.f32 %v519, 0.0
        %v628 = vmax.f32 %v521, 0.0
        %v629 = vmax.f32 %v525, 0.0
        %v630 = vmax.f32 %v527, 0.0
        %v631 = vmax.f32 %v529, 0.0
        %v632 = vmax.f32 %v531, 0.0
        %v633 = vmax.f32 %v535, 0.0
        %v634 = vmax.f32 %v537, 0.0
        %v635 = vmax.f32 %v539, 0.0
        %v636 = vmax.f32 %v541, 0.0
        %v637 = vmax.f32 %v545, 0.0
        %v638 = vmax.f32 %v547, 0.0
        %v639 = vmax.f32 %v549, 0.0
        %v640 = vmax.f32 %v551, 0.0
        %v641 = vmax.f32 %v555, 0.0
        %v642 = vmax.f32 %v557, 0.0
        %v643 = vmax.f32 %v559, 0.0
        %v644 = vmax.f32 %v561, 0.0
        %v645 = vmax.f32 %v565, 0.0
        %v646 = vmax.f32 %v567, 0.0
        %v647 = vmax.f32 %v569, 0.0
        %v648 = vmax.f32 %v571, 0.0
        %v649 = vmax.f32 %v575, 0.0
        %v650 = vmax.f32 %v577, 0.0
        %v651 = vmax.f32 %v579, 0.0
        %v652 = vmax.f32 %v581, 0.0
        %v653 = vmax.f32 %v585, 0.0
        %v654 = vmax.f32 %v587, 0.0
        %v655 = vmax.f32 %v589, 0.0
        %v656 = vmax.f32 %v591, 0.0
        %v657 = vld [vmem:[#allocation2] sm:$0xff]
        %v658 = vld [vmem:[#allocation2 + $0x8] sm:$0xff]
        %v659 = vld [vmem:[#allocation2 + $0x10] sm:$0xff]
        %v660 = vld [vmem:[#allocation2 + $0x18] sm:$0xff]
        %v661 = vld [vmem:[#allocation2 + $0x20] sm:$0xff]
        %v662 = vld [vmem:[#allocation2 + $0x28] sm:$0xff]
        %v663 = vld [vmem:[#allocation2 + $0x30] sm:$0xff]
        %v664 = vld [vmem:[#allocation2 + $0x38] sm:$0xff]
        %v665 = vld [vmem:[#allocation2 + $0x40] sm:$0xff]
        %v666 = vld [vmem:[#allocation2 + $0x48] sm:$0xff]
        %v667 = vld [vmem:[#allocation2 + $0x50] sm:$0xff]
        %v668 = vld [vmem:[#allocation2 + $0x58] sm:$0xff]
        %v669 = vld [vmem:[#allocation2 + $0x60] sm:$0xff]
        %v670 = vld [vmem:[#allocation2 + $0x68] sm:$0xff]
        %v671 = vld [vmem:[#allocation2 + $0x70] sm:$0xff]
        %v672 = vld [vmem:[#allocation2 + $0x78] sm:$0xff]
        %v673 = vld [vmem:[#allocation2 + $0x80] sm:$0xff]
        %v674 = vld [vmem:[#allocation2 + $0x88] sm:$0xff]
        %v675 = vld [vmem:[#allocation2 + $0x90] sm:$0xff]
        %v676 = vld [vmem:[#allocation2 + $0x98] sm:$0xff]
        %v677 = vld [vmem:[#allocation2 + $0xa0] sm:$0xff]
        %v678 = vld [vmem:[#allocation2 + $0xa8] sm:$0xff]
        %v679 = vld [vmem:[#allocation2 + $0xb0] sm:$0xff]
        %v680 = vld [vmem:[#allocation2 + $0xb8] sm:$0xff]
        %v681 = vld [vmem:[#allocation2 + $0xc0] sm:$0xff]
        %v682 = vld [vmem:[#allocation2 + $0xc8] sm:$0xff]
        %v683 = vld [vmem:[#allocation2 + $0xd0] sm:$0xff]
        %v684 = vld [vmem:[#allocation2 + $0xd8] sm:$0xff]
        %v685 = vld [vmem:[#allocation2 + $0xe0] sm:$0xff]
        %v686 = vld [vmem:[#allocation2 + $0xe8] sm:$0xff]
        %v687 = vld [vmem:[#allocation2 + $0xf0] sm:$0xff]
        %v688 = vld [vmem:[#allocation2 + $0xf8] sm:$0xff]
        %s689 = scalar_lea.vmem %s3, 1
        %v690 = vld [vmem:[%s689] ss:$8 sm:$0x3]
        %v691 = vpack.c.bf16 %v595, %v593
        %v692 = vpack.c.bf16 %v596, %v594
        %v693 = vpack.c.bf16 %v599, %v597
        %v694 = vpack.c.bf16 %v600, %v598
        %v695 = vpack.c.bf16 %v603, %v601
        %v696 = vpack.c.bf16 %v604, %v602
        %v697 = vpack.c.bf16 %v607, %v605
        %v698 = vpack.c.bf16 %v608, %v606
        %v699 = vpack.c.bf16 %v611, %v609
        %v700 = vpack.c.bf16 %v612, %v610
        %v701 = vpack.c.bf16 %v615, %v613
        %v702 = vpack.c.bf16 %v616, %v614
        %v703 = vpack.c.bf16 %v619, %v617
        %v704 = vpack.c.bf16 %v620, %v618
        %v705 = vpack.c.bf16 %v623, %v621
        %v706 = vpack.c.bf16 %v624, %v622
        %v707 = vpack.c.bf16 %v627, %v625
        %v708 = vpack.c.bf16 %v628, %v626
        %v709 = vpack.c.bf16 %v631, %v629
        %v710 = vpack.c.bf16 %v632, %v630
        %v711 = vpack.c.bf16 %v635, %v633
        %v712 = vpack.c.bf16 %v636, %v634
        %v713 = vpack.c.bf16 %v639, %v637
        %v714 = vpack.c.bf16 %v640, %v638
        %v715 = vpack.c.bf16 %v643, %v641
        %v716 = vpack.c.bf16 %v644, %v642
        %v717 = vpack.c.bf16 %v647, %v645
        %v718 = vpack.c.bf16 %v648, %v646
        %v719 = vpack.c.bf16 %v651, %v649
        %v720 = vpack.c.bf16 %v652, %v650
        %v721 = vpack.c.bf16 %v655, %v653
        %v722 = vpack.c.bf16 %v656, %v654
        %v724 = vlaneseq
        %v725 = vshrl.u32 %v724, 7
        %v726 = vsub.s32 0, %v725
        %v727 = vrot.slane %v690, %v726
        %v728 = vlaneseq
        %v729 = vshrl.u32 %v728, 7
        %v730 = vsub.s32 1, %v729
        %v731 = vrot.slane %v690, %v730
        %v766 = vunpack.c.l.b16 %v657
        %v767 = vunpack.c.h.b16 %v657
        %v768 = vunpack.c.l.b16 %v658
        %v769 = vunpack.c.h.b16 %v658
        %v770 = vunpack.c.l.b16 %v659
        %v771 = vunpack.c.h.b16 %v659
        %v772 = vunpack.c.l.b16 %v660
        %v773 = vunpack.c.h.b16 %v660
        %v774 = vunpack.c.l.b16 %v661
        %v775 = vunpack.c.h.b16 %v661
        %v776 = vunpack.c.l.b16 %v662
        %v777 = vunpack.c.h.b16 %v662
        %v778 = vunpack.c.l.b16 %v663
        %v779 = vunpack.c.h.b16 %v663
        %v780 = vunpack.c.l.b16 %v664
        %v781 = vunpack.c.h.b16 %v664
        %v782 = vunpack.c.l.b16 %v665
        %v783 = vunpack.c.h.b16 %v665
        %v784 = vunpack.c.l.b16 %v666
        %v785 = vunpack.c.h.b16 %v666
        %v786 = vunpack.c.l.b16 %v667
        %v787 = vunpack.c.h.b16 %v667
        %v788 = vunpack.c.l.b16 %v668
        %v789 = vunpack.c.h.b16 %v668
        %v790 = vunpack.c.l.b16 %v669
        %v791 = vunpack.c.h.b16 %v669
        %v792 = vunpack.c.l.b16 %v670
        %v793 = vunpack.c.h.b16 %v670
        %v794 = vunpack.c.l.b16 %v671
        %v795 = vunpack.c.h.b16 %v671
        %v796 = vunpack.c.l.b16 %v672
        %v797 = vunpack.c.h.b16 %v672
        %v798 = vunpack.c.l.b16 %v673
        %v799 = vunpack.c.h.b16 %v673
        %v800 = vunpack.c.l.b16 %v674
        %v801 = vunpack.c.h.b16 %v674
        %v802 = vunpack.c.l.b16 %v675
        %v803 = vunpack.c.h.b16 %v675
        %v804 = vunpack.c.l.b16 %v676
        %v805 = vunpack.c.h.b16 %v676
        %v806 = vunpack.c.l.b16 %v677
        %v807 = vunpack.c.h.b16 %v677
        %v808 = vunpack.c.l.b16 %v678
        %v809 = vunpack.c.h.b16 %v678
        %v810 = vunpack.c.l.b16 %v679
        %v811 = vunpack.c.h.b16 %v679
        %v812 = vunpack.c.l.b16 %v680
        %v813 = vunpack.c.h.b16 %v680
        %v814 = vunpack.c.l.b16 %v681
        %v815 = vunpack.c.h.b16 %v681
        %v816 = vunpack.c.l.b16 %v682
        %v817 = vunpack.c.h.b16 %v682
        %v818 = vunpack.c.l.b16 %v683
        %v819 = vunpack.c.h.b16 %v683
        %v820 = vunpack.c.l.b16 %v684
        %v821 = vunpack.c.h.b16 %v684
        %v822 = vunpack.c.l.b16 %v685
        %v823 = vunpack.c.h.b16 %v685
        %v824 = vunpack.c.l.b16 %v686
        %v825 = vunpack.c.h.b16 %v686
        %v826 = vunpack.c.l.b16 %v687
        %v827 = vunpack.c.h.b16 %v687
        %v828 = vunpack.c.l.b16 %v688
        %v829 = vunpack.c.h.b16 %v688
        %v830 = vpack.c.b16 %v768, %v766
        %v831 = vpack.c.b16 %v769, %v767
        %v832 = vpack.c.b16 %v772, %v770
        %v833 = vpack.c.b16 %v773, %v771
        %v834 = vpack.c.b16 %v776, %v774
        %v835 = vpack.c.b16 %v777, %v775
        %v836 = vpack.c.b16 %v780, %v778
        %v837 = vpack.c.b16 %v781, %v779
        %v838 = vpack.c.b16 %v784, %v782
        %v839 = vpack.c.b16 %v785, %v783
        %v840 = vpack.c.b16 %v788, %v786
        %v841 = vpack.c.b16 %v789, %v787
        %v842 = vpack.c.b16 %v792, %v790
        %v843 = vpack.c.b16 %v793, %v791
        %v844 = vpack.c.b16 %v796, %v794
        %v845 = vpack.c.b16 %v797, %v795
        %v846 = vpack.c.b16 %v800, %v798
        %v847 = vpack.c.b16 %v801, %v799
        %v848 = vpack.c.b16 %v804, %v802
        %v849 = vpack.c.b16 %v805, %v803
        %v850 = vpack.c.b16 %v808, %v806
        %v851 = vpack.c.b16 %v809, %v807
        %v852 = vpack.c.b16 %v812, %v810
        %v853 = vpack.c.b16 %v813, %v811
        %v854 = vpack.c.b16 %v816, %v814
        %v855 = vpack.c.b16 %v817, %v815
        %v856 = vpack.c.b16 %v820, %v818
        %v857 = vpack.c.b16 %v821, %v819
        %v858 = vpack.c.b16 %v824, %v822
        %v859 = vpack.c.b16 %v825, %v823
        %v860 = vpack.c.b16 %v828, %v826
        %v861 = vpack.c.b16 %v829, %v827
        %894 = vmatprep.subr.bf16.mxu0 %v831
        %895 = vmatpush1.bf16.msra.mxu0 %v830
        %896 = vmatprep.subr.bf16.mxu0 %v833
        %897 = vmatpush1.bf16.msra.mxu0 %v832
        %898 = vmatprep.subr.bf16.mxu0 %v835
        %899 = vmatpush1.bf16.msra.mxu0 %v834
        %900 = vmatprep.subr.bf16.mxu0 %v837
        %901 = vmatpush1.bf16.msra.mxu0 %v836
        %902 = vmatprep.subr.bf16.mxu0 %v839
        %903 = vmatpush1.bf16.msra.mxu0 %v838
        %904 = vmatprep.subr.bf16.mxu0 %v841
        %905 = vmatpush1.bf16.msra.mxu0 %v840
        %906 = vmatprep.subr.bf16.mxu0 %v843
        %907 = vmatpush1.bf16.msra.mxu0 %v842
        %908 = vmatprep.subr.bf16.mxu0 %v845
        %909 = vmatpush1.bf16.msra.mxu0 %v844
        %910 = vmatprep.subr.bf16.mxu0 %v847
        %911 = vmatpush1.bf16.msra.mxu0 %v846
        %912 = vmatprep.subr.bf16.mxu0 %v849
        %913 = vmatpush1.bf16.msra.mxu0 %v848
        %914 = vmatprep.subr.bf16.mxu0 %v851
        %915 = vmatpush1.bf16.msra.mxu0 %v850
        %916 = vmatprep.subr.bf16.mxu0 %v853
        %917 = vmatpush1.bf16.msra.mxu0 %v852
        %918 = vmatprep.subr.bf16.mxu0 %v855
        %919 = vmatpush1.bf16.msra.mxu0 %v854
        %920 = vmatprep.subr.bf16.mxu0 %v857
        %921 = vmatpush1.bf16.msra.mxu0 %v856
        %922 = vmatprep.subr.bf16.mxu0 %v859
        %923 = vmatpush1.bf16.msra.mxu0 %v858
        %924 = vmatprep.subr.bf16.mxu0 %v861
        %925 = vmatpush1.bf16.msra.mxu0 %v860
        %926 = vmatprep.mubr.bf16.mxu0 %v692
        %927 = vmatmul.mubr.bf16.gmra.mrb[0].mxu0 %v691
        %v928 = vpop.f32.mrb[0].mxu0
        %v929 = vadd.f32 %v727, %v928
        %v930 = vpop.f32.mrb[0].mxu0
        %v931 = vadd.f32 %v731, %v930
        %v932 = vpop.f32.mrb[0].mxu0
        %v933 = vadd.f32 %v727, %v932
        %v934 = vpop.f32.mrb[0].mxu0
        %v935 = vadd.f32 %v731, %v934
        %936 = vmatprep.mubr.bf16.mxu0 %v694
        %937 = vmatmul.mubr.bf16.gmra.mrb[0].mxu0 %v693
        %v938 = vpop.f32.mrb[0].mxu0
        %v939 = vadd.f32 %v727, %v938
        %v940 = vpop.f32.mrb[0].mxu0
        %v941 = vadd.f32 %v731, %v940
        %v942 = vpop.f32.mrb[0].mxu0
        %v943 = vadd.f32 %v727, %v942
        %v944 = vpop.f32.mrb[0].mxu0
        %v945 = vadd.f32 %v731, %v944
        %946 = vmatprep.mubr.bf16.mxu0 %v696
        %947 = vmatmul.mubr.bf16.gmra.mrb[0].mxu0 %v695
        %v948 = vpop.f32.mrb[0].mxu0
        %v949 = vadd.f32 %v727, %v948
        %v950 = vpop.f32.mrb[0].mxu0
        %v951 = vadd.f32 %v731, %v950
        %v952 = vpop.f32.mrb[0].mxu0
        %v953 = vadd.f32 %v727, %v952
        %v954 = vpop.f32.mrb[0].mxu0
        %v955 = vadd.f32 %v731, %v954
        %956 = vmatprep.mubr.bf16.mxu0 %v698
        %957 = vmatmul.mubr.bf16.gmra.mrb[0].mxu0 %v697
        %v958 = vpop.f32.mrb[0].mxu0
        %v959 = vadd.f32 %v727, %v958
        %v960 = vpop.f32.mrb[0].mxu0
        %v961 = vadd.f32 %v731, %v960
        %v962 = vpop.f32.mrb[0].mxu0
        %v963 = vadd.f32 %v727, %v962
        %v964 = vpop.f32.mrb[0].mxu0
        %v965 = vadd.f32 %v731, %v964
        %966 = vmatprep.mubr.bf16.mxu0 %v700
        %967 = vmatmul.mubr.bf16.gmra.mrb[0].mxu0 %v699
        %v968 = vpop.f32.mrb[0].mxu0
        %v969 = vadd.f32 %v727, %v968
        %v970 = vpop.f32.mrb[0].mxu0
        %v971 = vadd.f32 %v731, %v970
        %v972 = vpop.f32.mrb[0].mxu0
        %v973 = vadd.f32 %v727, %v972
        %v974 = vpop.f32.mrb[0].mxu0
        %v975 = vadd.f32 %v731, %v974
        %976 = vmatprep.mubr.bf16.mxu0 %v702
        %977 = vmatmul.mubr.bf16.gmra.mrb[0].mxu0 %v701
        %v978 = vpop.f32.mrb[0].mxu0
        %v979 = vadd.f32 %v727, %v978
        %v980 = vpop.f32.mrb[0].mxu0
        %v981 = vadd.f32 %v731, %v980
        %v982 = vpop.f32.mrb[0].mxu0
        %v983 = vadd.f32 %v727, %v982
        %v984 = vpop.f32.mrb[0].mxu0
        %v985 = vadd.f32 %v731, %v984
        %986 = vmatprep.mubr.bf16.mxu0 %v704
        %987 = vmatmul.mubr.bf16.gmra.mrb[0].mxu0 %v703
        %v988 = vpop.f32.mrb[0].mxu0
        %v989 = vadd.f32 %v727, %v988
        %v990 = vpop.f32.mrb[0].mxu0
        %v991 = vadd.f32 %v731, %v990
        %v992 = vpop.f32.mrb[0].mxu0
        %v993 = vadd.f32 %v727, %v992
        %v994 = vpop.f32.mrb[0].mxu0
        %v995 = vadd.f32 %v731, %v994
        %996 = vmatprep.mubr.bf16.mxu0 %v706
        %997 = vmatmul.mubr.bf16.gmra.mrb[0].mxu0 %v705
        %v998 = vpop.f32.mrb[0].mxu0
        %v999 = vadd.f32 %v727, %v998
        %v1000 = vpop.f32.mrb[0].mxu0
        %v1001 = vadd.f32 %v731, %v1000
        %v1002 = vpop.f32.mrb[0].mxu0
        %v1003 = vadd.f32 %v727, %v1002
        %v1004 = vpop.f32.mrb[0].mxu0
        %v1005 = vadd.f32 %v731, %v1004
        %1006 = vmatprep.mubr.bf16.mxu0 %v708
        %1007 = vmatmul.mubr.bf16.gmra.mrb[0].mxu0 %v707
        %v1008 = vpop.f32.mrb[0].mxu0
        %v1009 = vadd.f32 %v727, %v1008
        %v1010 = vpop.f32.mrb[0].mxu0
        %v1011 = vadd.f32 %v731, %v1010
        %v1012 = vpop.f32.mrb[0].mxu0
        %v1013 = vadd.f32 %v727, %v1012
        %v1014 = vpop.f32.mrb[0].mxu0
        %v1015 = vadd.f32 %v731, %v1014
        %1016 = vmatprep.mubr.bf16.mxu0 %v710
        %1017 = vmatmul.mubr.bf16.gmra.mrb[0].mxu0 %v709
        %v1018 = vpop.f32.mrb[0].mxu0
        %v1019 = vadd.f32 %v727, %v1018
        %v1020 = vpop.f32.mrb[0].mxu0
        %v1021 = vadd.f32 %v731, %v1020
        %v1022 = vpop.f32.mrb[0].mxu0
        %v1023 = vadd.f32 %v727, %v1022
        %v1024 = vpop.f32.mrb[0].mxu0
        %v1025 = vadd.f32 %v731, %v1024
        %1026 = vmatprep.mubr.bf16.mxu0 %v712
        %1027 = vmatmul.mubr.bf16.gmra.mrb[0].mxu0 %v711
        %v1028 = vpop.f32.mrb[0].mxu0
        %v1029 = vadd.f32 %v727, %v1028
        %v1030 = vpop.f32.mrb[0].mxu0
        %v1031 = vadd.f32 %v731, %v1030
        %v1032 = vpop.f32.mrb[0].mxu0
        %v1033 = vadd.f32 %v727, %v1032
        %v1034 = vpop.f32.mrb[0].mxu0
        %v1035 = vadd.f32 %v731, %v1034
        %1036 = vmatprep.mubr.bf16.mxu0 %v714
        %1037 = vmatmul.mubr.bf16.gmra.mrb[0].mxu0 %v713
        %v1038 = vpop.f32.mrb[0].mxu0
        %v1039 = vadd.f32 %v727, %v1038
        %v1040 = vpop.f32.mrb[0].mxu0
        %v1041 = vadd.f32 %v731, %v1040
        %v1042 = vpop.f32.mrb[0].mxu0
        %v1043 = vadd.f32 %v727, %v1042
        %v1044 = vpop.f32.mrb[0].mxu0
        %v1045 = vadd.f32 %v731, %v1044
        %1046 = vmatprep.mubr.bf16.mxu0 %v716
        %1047 = vmatmul.mubr.bf16.gmra.mrb[0].mxu0 %v715
        %v1048 = vpop.f32.mrb[0].mxu0
        %v1049 = vadd.f32 %v727, %v1048
        %v1050 = vpop.f32.mrb[0].mxu0
        %v1051 = vadd.f32 %v731, %v1050
        %v1052 = vpop.f32.mrb[0].mxu0
        %v1053 = vadd.f32 %v727, %v1052
        %v1054 = vpop.f32.mrb[0].mxu0
        %v1055 = vadd.f32 %v731, %v1054
        %1056 = vmatprep.mubr.bf16.mxu0 %v718
        %1057 = vmatmul.mubr.bf16.gmra.mrb[0].mxu0 %v717
        %v1058 = vpop.f32.mrb[0].mxu0
        %v1059 = vadd.f32 %v727, %v1058
        %v1060 = vpop.f32.mrb[0].mxu0
        %v1061 = vadd.f32 %v731, %v1060
        %v1062 = vpop.f32.mrb[0].mxu0
        %v1063 = vadd.f32 %v727, %v1062
        %v1064 = vpop.f32.mrb[0].mxu0
        %v1065 = vadd.f32 %v731, %v1064
        %1066 = vmatprep.mubr.bf16.mxu0 %v720
        %1067 = vmatmul.mubr.bf16.gmra.mrb[0].mxu0 %v719
        %v1068 = vpop.f32.mrb[0].mxu0
        %v1069 = vadd.f32 %v727, %v1068
        %v1070 = vpop.f32.mrb[0].mxu0
        %v1071 = vadd.f32 %v731, %v1070
        %v1072 = vpop.f32.mrb[0].mxu0
        %v1073 = vadd.f32 %v727, %v1072
        %v1074 = vpop.f32.mrb[0].mxu0
        %v1075 = vadd.f32 %v731, %v1074
        %1076 = vmatprep.mubr.bf16.mxu0 %v722
        %1077 = vmatmul.mubr.bf16.gmra.mrb[0].mxu0 %v721
        %v1078 = vpop.f32.mrb[0].mxu0
        %v1079 = vadd.f32 %v727, %v1078
        %v1080 = vpop.f32.mrb[0].mxu0
        %v1081 = vadd.f32 %v731, %v1080
        %v1082 = vpop.f32.mrb[0].mxu0
        %v1083 = vadd.f32 %v727, %v1082
        %v1084 = vpop.f32.mrb[0].mxu0
        %v1085 = vadd.f32 %v731, %v1084
        %1086 = vdwg.mxu0
        %v1087 = vmax.f32 %v929, 0.0
        %v1088 = vmax.f32 %v931, 0.0
        %v1089 = vmax.f32 %v933, 0.0
        %v1090 = vmax.f32 %v935, 0.0
        %v1091 = vmax.f32 %v939, 0.0
        %v1092 = vmax.f32 %v941, 0.0
        %v1093 = vmax.f32 %v943, 0.0
        %v1094 = vmax.f32 %v945, 0.0
        %v1095 = vmax.f32 %v949, 0.0
        %v1096 = vmax.f32 %v951, 0.0
        %v1097 = vmax.f32 %v953, 0.0
        %v1098 = vmax.f32 %v955, 0.0
        %v1099 = vmax.f32 %v959, 0.0
        %v1100 = vmax.f32 %v961, 0.0
        %v1101 = vmax.f32 %v963, 0.0
        %v1102 = vmax.f32 %v965, 0.0
        %v1103 = vmax.f32 %v969, 0.0
        %v1104 = vmax.f32 %v971, 0.0
        %v1105 = vmax.f32 %v973, 0.0
        %v1106 = vmax.f32 %v975, 0.0
        %v1107 = vmax.f32 %v979, 0.0
        %v1108 = vmax.f32 %v981, 0.0
        %v1109 = vmax.f32 %v983, 0.0
        %v1110 = vmax.f32 %v985, 0.0
        %v1111 = vmax.f32 %v989, 0.0
        %v1112 = vmax.f32 %v991, 0.0
        %v1113 = vmax.f32 %v993, 0.0
        %v1114 = vmax.f32 %v995, 0.0
        %v1115 = vmax.f32 %v999, 0.0
        %v1116 = vmax.f32 %v1001, 0.0
        %v1117 = vmax.f32 %v1003, 0.0
        %v1118 = vmax.f32 %v1005, 0.0
        %v1119 = vmax.f32 %v1009, 0.0
        %v1120 = vmax.f32 %v1011, 0.0
        %v1121 = vmax.f32 %v1013, 0.0
        %v1122 = vmax.f32 %v1015, 0.0
        %v1123 = vmax.f32 %v1019, 0.0
        %v1124 = vmax.f32 %v1021, 0.0
        %v1125 = vmax.f32 %v1023, 0.0
        %v1126 = vmax.f32 %v1025, 0.0
        %v1127 = vmax.f32 %v1029, 0.0
        %v1128 = vmax.f32 %v1031, 0.0
        %v1129 = vmax.f32 %v1033, 0.0
        %v1130 = vmax.f32 %v1035, 0.0
        %v1131 = vmax.f32 %v1039, 0.0
        %v1132 = vmax.f32 %v1041, 0.0
        %v1133 = vmax.f32 %v1043, 0.0
        %v1134 = vmax.f32 %v1045, 0.0
        %v1135 = vmax.f32 %v1049, 0.0
        %v1136 = vmax.f32 %v1051, 0.0
        %v1137 = vmax.f32 %v1053, 0.0
        %v1138 = vmax.f32 %v1055, 0.0
        %v1139 = vmax.f32 %v1059, 0.0
        %v1140 = vmax.f32 %v1061, 0.0
        %v1141 = vmax.f32 %v1063, 0.0
        %v1142 = vmax.f32 %v1065, 0.0
        %v1143 = vmax.f32 %v1069, 0.0
        %v1144 = vmax.f32 %v1071, 0.0
        %v1145 = vmax.f32 %v1073, 0.0
        %v1146 = vmax.f32 %v1075, 0.0
        %v1147 = vmax.f32 %v1079, 0.0
        %v1148 = vmax.f32 %v1081, 0.0
        %v1149 = vmax.f32 %v1083, 0.0
        %v1150 = vmax.f32 %v1085, 0.0
        %s1151 = scalar_lea.vmem [#allocation2], 256
        %v1152 = vld [vmem:[%s1151] sm:$0xff]
        %v1153 = vld [vmem:[%s1151 + $0x8] sm:$0xff]
        %v1154 = vld [vmem:[%s1151 + $0x10] sm:$0xff]
        %v1155 = vld [vmem:[%s1151 + $0x18] sm:$0xff]
        %v1156 = vld [vmem:[%s1151 + $0x20] sm:$0xff]
        %v1157 = vld [vmem:[%s1151 + $0x28] sm:$0xff]
        %v1158 = vld [vmem:[%s1151 + $0x30] sm:$0xff]
        %v1159 = vld [vmem:[%s1151 + $0x38] sm:$0xff]
        %v1160 = vld [vmem:[%s1151 + $0x40] sm:$0xff]
        %v1161 = vld [vmem:[%s1151 + $0x48] sm:$0xff]
        %v1162 = vld [vmem:[%s1151 + $0x50] sm:$0xff]
        %v1163 = vld [vmem:[%s1151 + $0x58] sm:$0xff]
        %v1164 = vld [vmem:[%s1151 + $0x60] sm:$0xff]
        %v1165 = vld [vmem:[%s1151 + $0x68] sm:$0xff]
        %v1166 = vld [vmem:[%s1151 + $0x70] sm:$0xff]
        %v1167 = vld [vmem:[%s1151 + $0x78] sm:$0xff]
        %v1168 = vld [vmem:[%s1151 + $0x80] sm:$0xff]
        %v1169 = vld [vmem:[%s1151 + $0x88] sm:$0xff]
        %v1170 = vld [vmem:[%s1151 + $0x90] sm:$0xff]
        %v1171 = vld [vmem:[%s1151 + $0x98] sm:$0xff]
        %v1172 = vld [vmem:[%s1151 + $0xa0] sm:$0xff]
        %v1173 = vld [vmem:[%s1151 + $0xa8] sm:$0xff]
        %v1174 = vld [vmem:[%s1151 + $0xb0] sm:$0xff]
        %v1175 = vld [vmem:[%s1151 + $0xb8] sm:$0xff]
        %v1176 = vld [vmem:[%s1151 + $0xc0] sm:$0xff]
        %v1177 = vld [vmem:[%s1151 + $0xc8] sm:$0xff]
        %v1178 = vld [vmem:[%s1151 + $0xd0] sm:$0xff]
        %v1179 = vld [vmem:[%s1151 + $0xd8] sm:$0xff]
        %v1180 = vld [vmem:[%s1151 + $0xe0] sm:$0xff]
        %v1181 = vld [vmem:[%s1151 + $0xe8] sm:$0xff]
        %v1182 = vld [vmem:[%s1151 + $0xf0] sm:$0xff]
        %v1183 = vld [vmem:[%s1151 + $0xf8] sm:$0xff]
        %s1184 = scalar_lea.vmem %s3, 2
        %v1185 = vld [vmem:[%s1184] ss:$8 sm:$0x3]
        %v1186 = vpack.c.bf16 %v1089, %v1087
        %v1187 = vpack.c.bf16 %v1090, %v1088
        %v1188 = vpack.c.bf16 %v1093, %v1091
        %v1189 = vpack.c.bf16 %v1094, %v1092
        %v1190 = vpack.c.bf16 %v1097, %v1095
        %v1191 = vpack.c.bf16 %v1098, %v1096
        %v1192 = vpack.c.bf16 %v1101, %v1099
        %v1193 = vpack.c.bf16 %v1102, %v1100
        %v1194 = vpack.c.bf16 %v1105, %v1103
        %v1195 = vpack.c.bf16 %v1106, %v1104
        %v1196 = vpack.c.bf16 %v1109, %v1107
        %v1197 = vpack.c.bf16 %v1110, %v1108
        %v1198 = vpack.c.bf16 %v1113, %v1111
        %v1199 = vpack.c.bf16 %v1114, %v1112
        %v1200 = vpack.c.bf16 %v1117, %v1115
        %v1201 = vpack.c.bf16 %v1118, %v1116
        %v1202 = vpack.c.bf16 %v1121, %v1119
        %v1203 = vpack.c.bf16 %v1122, %v1120
        %v1204 = vpack.c.bf16 %v1125, %v1123
        %v1205 = vpack.c.bf16 %v1126, %v1124
        %v1206 = vpack.c.bf16 %v1129, %v1127
        %v1207 = vpack.c.bf16 %v1130, %v1128
        %v1208 = vpack.c.bf16 %v1133, %v1131
        %v1209 = vpack.c.bf16 %v1134, %v1132
        %v1210 = vpack.c.bf16 %v1137, %v1135
        %v1211 = vpack.c.bf16 %v1138, %v1136
        %v1212 = vpack.c.bf16 %v1141, %v1139
        %v1213 = vpack.c.bf16 %v1142, %v1140
        %v1214 = vpack.c.bf16 %v1145, %v1143
        %v1215 = vpack.c.bf16 %v1146, %v1144
        %v1216 = vpack.c.bf16 %v1149, %v1147
        %v1217 = vpack.c.bf16 %v1150, %v1148
        %v1219 = vlaneseq
        %v1220 = vshrl.u32 %v1219, 7
        %v1221 = vsub.s32 0, %v1220
        %v1222 = vrot.slane %v1185, %v1221
        %v1223 = vlaneseq
        %v1224 = vshrl.u32 %v1223, 7
        %v1225 = vsub.s32 1, %v1224
        %v1226 = vrot.slane %v1185, %v1225
        %v1261 = vunpack.c.l.b16 %v1152
        %v1262 = vunpack.c.h.b16 %v1152
        %v1263 = vunpack.c.l.b16 %v1153
        %v1264 = vunpack.c.h.b16 %v1153
        %v1265 = vunpack.c.l.b16 %v1154
        %v1266 = vunpack.c.h.b16 %v1154
        %v1267 = vunpack.c.l.b16 %v1155
        %v1268 = vunpack.c.h.b16 %v1155
        %v1269 = vunpack.c.l.b16 %v1156
        %v1270 = vunpack.c.h.b16 %v1156
        %v1271 = vunpack.c.l.b16 %v1157
        %v1272 = vunpack.c.h.b16 %v1157
        %v1273 = vunpack.c.l.b16 %v1158
        %v1274 = vunpack.c.h.b16 %v1158
        %v1275 = vunpack.c.l.b16 %v1159
        %v1276 = vunpack.c.h.b16 %v1159
        %v1277 = vunpack.c.l.b16 %v1160
        %v1278 = vunpack.c.h.b16 %v1160
        %v1279 = vunpack.c.l.b16 %v1161
        %v1280 = vunpack.c.h.b16 %v1161
        %v1281 = vunpack.c.l.b16 %v1162
        %v1282 = vunpack.c.h.b16 %v1162
        %v1283 = vunpack.c.l.b16 %v1163
        %v1284 = vunpack.c.h.b16 %v1163
        %v1285 = vunpack.c.l.b16 %v1164
        %v1286 = vunpack.c.h.b16 %v1164
        %v1287 = vunpack.c.l.b16 %v1165
        %v1288 = vunpack.c.h.b16 %v1165
        %v1289 = vunpack.c.l.b16 %v1166
        %v1290 = vunpack.c.h.b16 %v1166
        %v1291 = vunpack.c.l.b16 %v1167
        %v1292 = vunpack.c.h.b16 %v1167
        %v1293 = vunpack.c.l.b16 %v1168
        %v1294 = vunpack.c.h.b16 %v1168
        %v1295 = vunpack.c.l.b16 %v1169
        %v1296 = vunpack.c.h.b16 %v1169
        %v1297 = vunpack.c.l.b16 %v1170
        %v1298 = vunpack.c.h.b16 %v1170
        %v1299 = vunpack.c.l.b16 %v1171
        %v1300 = vunpack.c.h.b16 %v1171
        %v1301 = vunpack.c.l.b16 %v1172
        %v1302 = vunpack.c.h.b16 %v1172
        %v1303 = vunpack.c.l.b16 %v1173
        %v1304 = vunpack.c.h.b16 %v1173
        %v1305 = vunpack.c.l.b16 %v1174
        %v1306 = vunpack.c.h.b16 %v1174
        %v1307 = vunpack.c.l.b16 %v1175
        %v1308 = vunpack.c.h.b16 %v1175
        %v1309 = vunpack.c.l.b16 %v1176
        %v1310 = vunpack.c.h.b16 %v1176
        %v1311 = vunpack.c.l.b16 %v1177
        %v1312 = vunpack.c.h.b16 %v1177
        %v1313 = vunpack.c.l.b16 %v1178
        %v1314 = vunpack.c.h.b16 %v1178
        %v1315 = vunpack.c.l.b16 %v1179
        %v1316 = vunpack.c.h.b16 %v1179
        %v1317 = vunpack.c.l.b16 %v1180
        %v1318 = vunpack.c.h.b16 %v1180
        %v1319 = vunpack.c.l.b16 %v1181
        %v1320 = vunpack.c.h.b16 %v1181
        %v1321 = vunpack.c.l.b16 %v1182
        %v1322 = vunpack.c.h.b16 %v1182
        %v1323 = vunpack.c.l.b16 %v1183
        %v1324 = vunpack.c.h.b16 %v1183
        %v1325 = vpack.c.b16 %v1263, %v1261
        %v1326 = vpack.c.b16 %v1264, %v1262
        %v1327 = vpack.c.b16 %v1267, %v1265
        %v1328 = vpack.c.b16 %v1268, %v1266
        %v1329 = vpack.c.b16 %v1271, %v1269
        %v1330 = vpack.c.b16 %v1272, %v1270
        %v1331 = vpack.c.b16 %v1275, %v1273
        %v1332 = vpack.c.b16 %v1276, %v1274
        %v1333 = vpack.c.b16 %v1279, %v1277
        %v1334 = vpack.c.b16 %v1280, %v1278
        %v1335 = vpack.c.b16 %v1283, %v1281
        %v1336 = vpack.c.b16 %v1284, %v1282
        %v1337 = vpack.c.b16 %v1287, %v1285
        %v1338 = vpack.c.b16 %v1288, %v1286
        %v1339 = vpack.c.b16 %v1291, %v1289
        %v1340 = vpack.c.b16 %v1292, %v1290
        %v1341 = vpack.c.b16 %v1295, %v1293
        %v1342 = vpack.c.b16 %v1296, %v1294
        %v1343 = vpack.c.b16 %v1299, %v1297
        %v1344 = vpack.c.b16 %v1300, %v1298
        %v1345 = vpack.c.b16 %v1303, %v1301
        %v1346 = vpack.c.b16 %v1304, %v1302
        %v1347 = vpack.c.b16 %v1307, %v1305
        %v1348 = vpack.c.b16 %v1308, %v1306
        %v1349 = vpack.c.b16 %v1311, %v1309
        %v1350 = vpack.c.b16 %v1312, %v1310
        %v1351 = vpack.c.b16 %v1315, %v1313
        %v1352 = vpack.c.b16 %v1316, %v1314
        %v1353 = vpack.c.b16 %v1319, %v1317
        %v1354 = vpack.c.b16 %v1320, %v1318
        %v1355 = vpack.c.b16 %v1323, %v1321
        %v1356 = vpack.c.b16 %v1324, %v1322
        %1389 = vmatprep.subr.bf16.mxu0 %v1326
        %1390 = vmatpush1.bf16.msra.mxu0 %v1325
        %1391 = vmatprep.subr.bf16.mxu0 %v1328
        %1392 = vmatpush1.bf16.msra.mxu0 %v1327
        %1393 = vmatprep.subr.bf16.mxu0 %v1330
        %1394 = vmatpush1.bf16.msra.mxu0 %v1329
        %1395 = vmatprep.subr.bf16.mxu0 %v1332
        %1396 = vmatpush1.bf16.msra.mxu0 %v1331
        %1397 = vmatprep.subr.bf16.mxu0 %v1334
        %1398 = vmatpush1.bf16.msra.mxu0 %v1333
        %1399 = vmatprep.subr.bf16.mxu0 %v1336
        %1400 = vmatpush1.bf16.msra.mxu0 %v1335
        %1401 = vmatprep.subr.bf16.mxu0 %v1338
        %1402 = vmatpush1.bf16.msra.mxu0 %v1337
        %1403 = vmatprep.subr.bf16.mxu0 %v1340
        %1404 = vmatpush1.bf16.msra.mxu0 %v1339
        %1405 = vmatprep.subr.bf16.mxu0 %v1342
        %1406 = vmatpush1.bf16.msra.mxu0 %v1341
        %1407 = vmatprep.subr.bf16.mxu0 %v1344
        %1408 = vmatpush1.bf16.msra.mxu0 %v1343
        %1409 = vmatprep.subr.bf16.mxu0 %v1346
        %1410 = vmatpush1.bf16.msra.mxu0 %v1345
        %1411 = vmatprep.subr.bf16.mxu0 %v1348
        %1412 = vmatpush1.bf16.msra.mxu0 %v1347
        %1413 = vmatprep.subr.bf16.mxu0 %v1350
        %1414 = vmatpush1.bf16.msra.mxu0 %v1349
        %1415 = vmatprep.subr.bf16.mxu0 %v1352
        %1416 = vmatpush1.bf16.msra.mxu0 %v1351
        %1417 = vmatprep.subr.bf16.mxu0 %v1354
        %1418 = vmatpush1.bf16.msra.mxu0 %v1353
        %1419 = vmatprep.subr.bf16.mxu0 %v1356
        %1420 = vmatpush1.bf16.msra.mxu0 %v1355
        %1421 = vmatprep.mubr.bf16.mxu0 %v1187
        %1422 = vmatmul.mubr.bf16.gmra.mrb[0].mxu0 %v1186
        %v1423 = vpop.f32.mrb[0].mxu0
        %v1424 = vadd.f32 %v1222, %v1423
        %v1425 = vpop.f32.mrb[0].mxu0
        %v1426 = vadd.f32 %v1226, %v1425
        %v1427 = vpop.f32.mrb[0].mxu0
        %v1428 = vadd.f32 %v1222, %v1427
        %v1429 = vpop.f32.mrb[0].mxu0
        %v1430 = vadd.f32 %v1226, %v1429
        %1431 = vmatprep.mubr.bf16.mxu0 %v1189
        %1432 = vmatmul.mubr.bf16.gmra.mrb[0].mxu0 %v1188
        %v1433 = vpop.f32.mrb[0].mxu0
        %v1434 = vadd.f32 %v1222, %v1433
        %v1435 = vpop.f32.mrb[0].mxu0
        %v1436 = vadd.f32 %v1226, %v1435
        %v1437 = vpop.f32.mrb[0].mxu0
        %v1438 = vadd.f32 %v1222, %v1437
        %v1439 = vpop.f32.mrb[0].mxu0
        %v1440 = vadd.f32 %v1226, %v1439
        %1441 = vmatprep.mubr.bf16.mxu0 %v1191
        %1442 = vmatmul.mubr.bf16.gmra.mrb[0].mxu0 %v1190
        %v1443 = vpop.f32.mrb[0].mxu0
        %v1444 = vadd.f32 %v1222, %v1443
        %v1445 = vpop.f32.mrb[0].mxu0
        %v1446 = vadd.f32 %v1226, %v1445
        %v1447 = vpop.f32.mrb[0].mxu0
        %v1448 = vadd.f32 %v1222, %v1447
        %v1449 = vpop.f32.mrb[0].mxu0
        %v1450 = vadd.f32 %v1226, %v1449
        %1451 = vmatprep.mubr.bf16.mxu0 %v1193
        %1452 = vmatmul.mubr.bf16.gmra.mrb[0].mxu0 %v1192
        %v1453 = vpop.f32.mrb[0].mxu0
        %v1454 = vadd.f32 %v1222, %v1453
        %v1455 = vpop.f32.mrb[0].mxu0
        %v1456 = vadd.f32 %v1226, %v1455
        %v1457 = vpop.f32.mrb[0].mxu0
        %v1458 = vadd.f32 %v1222, %v1457
        %v1459 = vpop.f32.mrb[0].mxu0
        %v1460 = vadd.f32 %v1226, %v1459
        %1461 = vmatprep.mubr.bf16.mxu0 %v1195
        %1462 = vmatmul.mubr.bf16.gmra.mrb[0].mxu0 %v1194
        %v1463 = vpop.f32.mrb[0].mxu0
        %v1464 = vadd.f32 %v1222, %v1463
        %v1465 = vpop.f32.mrb[0].mxu0
        %v1466 = vadd.f32 %v1226, %v1465
        %v1467 = vpop.f32.mrb[0].mxu0
        %v1468 = vadd.f32 %v1222, %v1467
        %v1469 = vpop.f32.mrb[0].mxu0
        %v1470 = vadd.f32 %v1226, %v1469
        %1471 = vmatprep.mubr.bf16.mxu0 %v1197
        %1472 = vmatmul.mubr.bf16.gmra.mrb[0].mxu0 %v1196
        %v1473 = vpop.f32.mrb[0].mxu0
        %v1474 = vadd.f32 %v1222, %v1473
        %v1475 = vpop.f32.mrb[0].mxu0
        %v1476 = vadd.f32 %v1226, %v1475
        %v1477 = vpop.f32.mrb[0].mxu0
        %v1478 = vadd.f32 %v1222, %v1477
        %v1479 = vpop.f32.mrb[0].mxu0
        %v1480 = vadd.f32 %v1226, %v1479
        %1481 = vmatprep.mubr.bf16.mxu0 %v1199
        %1482 = vmatmul.mubr.bf16.gmra.mrb[0].mxu0 %v1198
        %v1483 = vpop.f32.mrb[0].mxu0
        %v1484 = vadd.f32 %v1222, %v1483
        %v1485 = vpop.f32.mrb[0].mxu0
        %v1486 = vadd.f32 %v1226, %v1485
        %v1487 = vpop.f32.mrb[0].mxu0
        %v1488 = vadd.f32 %v1222, %v1487
        %v1489 = vpop.f32.mrb[0].mxu0
        %v1490 = vadd.f32 %v1226, %v1489
        %1491 = vmatprep.mubr.bf16.mxu0 %v1201
        %1492 = vmatmul.mubr.bf16.gmra.mrb[0].mxu0 %v1200
        %v1493 = vpop.f32.mrb[0].mxu0
        %v1494 = vadd.f32 %v1222, %v1493
        %v1495 = vpop.f32.mrb[0].mxu0
        %v1496 = vadd.f32 %v1226, %v1495
        %v1497 = vpop.f32.mrb[0].mxu0
        %v1498 = vadd.f32 %v1222, %v1497
        %v1499 = vpop.f32.mrb[0].mxu0
        %v1500 = vadd.f32 %v1226, %v1499
        %1501 = vmatprep.mubr.bf16.mxu0 %v1203
        %1502 = vmatmul.mubr.bf16.gmra.mrb[0].mxu0 %v1202
        %v1503 = vpop.f32.mrb[0].mxu0
        %v1504 = vadd.f32 %v1222, %v1503
        %v1505 = vpop.f32.mrb[0].mxu0
        %v1506 = vadd.f32 %v1226, %v1505
        %v1507 = vpop.f32.mrb[0].mxu0
        %v1508 = vadd.f32 %v1222, %v1507
        %v1509 = vpop.f32.mrb[0].mxu0
        %v1510 = vadd.f32 %v1226, %v1509
        %1511 = vmatprep.mubr.bf16.mxu0 %v1205
        %1512 = vmatmul.mubr.bf16.gmra.mrb[0].mxu0 %v1204
        %v1513 = vpop.f32.mrb[0].mxu0
        %v1514 = vadd.f32 %v1222, %v1513
        %v1515 = vpop.f32.mrb[0].mxu0
        %v1516 = vadd.f32 %v1226, %v1515
        %v1517 = vpop.f32.mrb[0].mxu0
        %v1518 = vadd.f32 %v1222, %v1517
        %v1519 = vpop.f32.mrb[0].mxu0
        %v1520 = vadd.f32 %v1226, %v1519
        %1521 = vmatprep.mubr.bf16.mxu0 %v1207
        %1522 = vmatmul.mubr.bf16.gmra.mrb[0].mxu0 %v1206
        %v1523 = vpop.f32.mrb[0].mxu0
        %v1524 = vadd.f32 %v1222, %v1523
        %v1525 = vpop.f32.mrb[0].mxu0
        %v1526 = vadd.f32 %v1226, %v1525
        %v1527 = vpop.f32.mrb[0].mxu0
        %v1528 = vadd.f32 %v1222, %v1527
        %v1529 = vpop.f32.mrb[0].mxu0
        %v1530 = vadd.f32 %v1226, %v1529
        %1531 = vmatprep.mubr.bf16.mxu0 %v1209
        %1532 = vmatmul.mubr.bf16.gmra.mrb[0].mxu0 %v1208
        %v1533 = vpop.f32.mrb[0].mxu0
        %v1534 = vadd.f32 %v1222, %v1533
        %v1535 = vpop.f32.mrb[0].mxu0
        %v1536 = vadd.f32 %v1226, %v1535
        %v1537 = vpop.f32.mrb[0].mxu0
        %v1538 = vadd.f32 %v1222, %v1537
        %v1539 = vpop.f32.mrb[0].mxu0
        %v1540 = vadd.f32 %v1226, %v1539
        %1541 = vmatprep.mubr.bf16.mxu0 %v1211
        %1542 = vmatmul.mubr.bf16.gmra.mrb[0].mxu0 %v1210
        %v1543 = vpop.f32.mrb[0].mxu0
        %v1544 = vadd.f32 %v1222, %v1543
        %v1545 = vpop.f32.mrb[0].mxu0
        %v1546 = vadd.f32 %v1226, %v1545
        %v1547 = vpop.f32.mrb[0].mxu0
        %v1548 = vadd.f32 %v1222, %v1547
        %v1549 = vpop.f32.mrb[0].mxu0
        %v1550 = vadd.f32 %v1226, %v1549
        %1551 = vmatprep.mubr.bf16.mxu0 %v1213
        %1552 = vmatmul.mubr.bf16.gmra.mrb[0].mxu0 %v1212
        %v1553 = vpop.f32.mrb[0].mxu0
        %v1554 = vadd.f32 %v1222, %v1553
        %v1555 = vpop.f32.mrb[0].mxu0
        %v1556 = vadd.f32 %v1226, %v1555
        %v1557 = vpop.f32.mrb[0].mxu0
        %v1558 = vadd.f32 %v1222, %v1557
        %v1559 = vpop.f32.mrb[0].mxu0
        %v1560 = vadd.f32 %v1226, %v1559
        %1561 = vmatprep.mubr.bf16.mxu0 %v1215
        %1562 = vmatmul.mubr.bf16.gmra.mrb[0].mxu0 %v1214
        %v1563 = vpop.f32.mrb[0].mxu0
        %v1564 = vadd.f32 %v1222, %v1563
        %v1565 = vpop.f32.mrb[0].mxu0
        %v1566 = vadd.f32 %v1226, %v1565
        %v1567 = vpop.f32.mrb[0].mxu0
        %v1568 = vadd.f32 %v1222, %v1567
        %v1569 = vpop.f32.mrb[0].mxu0
        %v1570 = vadd.f32 %v1226, %v1569
        %1571 = vmatprep.mubr.bf16.mxu0 %v1217
        %1572 = vmatmul.mubr.bf16.gmra.mrb[0].mxu0 %v1216
        %v1573 = vpop.f32.mrb[0].mxu0
        %v1574 = vadd.f32 %v1222, %v1573
        %v1575 = vpop.f32.mrb[0].mxu0
        %v1576 = vadd.f32 %v1226, %v1575
        %v1577 = vpop.f32.mrb[0].mxu0
        %v1578 = vadd.f32 %v1222, %v1577
        %v1579 = vpop.f32.mrb[0].mxu0
        %v1580 = vadd.f32 %v1226, %v1579
        %1581 = vdwg.mxu0
        %v1582 = vmax.f32 %v1424, 0.0
        %v1583 = vmax.f32 %v1426, 0.0
        %v1584 = vmax.f32 %v1428, 0.0
        %v1585 = vmax.f32 %v1430, 0.0
        %v1586 = vmax.f32 %v1434, 0.0
        %v1587 = vmax.f32 %v1436, 0.0
        %v1588 = vmax.f32 %v1438, 0.0
        %v1589 = vmax.f32 %v1440, 0.0
        %v1590 = vmax.f32 %v1444, 0.0
        %v1591 = vmax.f32 %v1446, 0.0
        %v1592 = vmax.f32 %v1448, 0.0
        %v1593 = vmax.f32 %v1450, 0.0
        %v1594 = vmax.f32 %v1454, 0.0
        %v1595 = vmax.f32 %v1456, 0.0
        %v1596 = vmax.f32 %v1458, 0.0
        %v1597 = vmax.f32 %v1460, 0.0
        %v1598 = vmax.f32 %v1464, 0.0
        %v1599 = vmax.f32 %v1466, 0.0
        %v1600 = vmax.f32 %v1468, 0.0
        %v1601 = vmax.f32 %v1470, 0.0
        %v1602 = vmax.f32 %v1474, 0.0
        %v1603 = vmax.f32 %v1476, 0.0
        %v1604 = vmax.f32 %v1478, 0.0
        %v1605 = vmax.f32 %v1480, 0.0
        %v1606 = vmax.f32 %v1484, 0.0
        %v1607 = vmax.f32 %v1486, 0.0
        %v1608 = vmax.f32 %v1488, 0.0
        %v1609 = vmax.f32 %v1490, 0.0
        %v1610 = vmax.f32 %v1494, 0.0
        %v1611 = vmax.f32 %v1496, 0.0
        %v1612 = vmax.f32 %v1498, 0.0
        %v1613 = vmax.f32 %v1500, 0.0
        %v1614 = vmax.f32 %v1504, 0.0
        %v1615 = vmax.f32 %v1506, 0.0
        %v1616 = vmax.f32 %v1508, 0.0
        %v1617 = vmax.f32 %v1510, 0.0
        %v1618 = vmax.f32 %v1514, 0.0
        %v1619 = vmax.f32 %v1516, 0.0
        %v1620 = vmax.f32 %v1518, 0.0
        %v1621 = vmax.f32 %v1520, 0.0
        %v1622 = vmax.f32 %v1524, 0.0
        %v1623 = vmax.f32 %v1526, 0.0
        %v1624 = vmax.f32 %v1528, 0.0
        %v1625 = vmax.f32 %v1530, 0.0
        %v1626 = vmax.f32 %v1534, 0.0
        %v1627 = vmax.f32 %v1536, 0.0
        %v1628 = vmax.f32 %v1538, 0.0
        %v1629 = vmax.f32 %v1540, 0.0
        %v1630 = vmax.f32 %v1544, 0.0
        %v1631 = vmax.f32 %v1546, 0.0
        %v1632 = vmax.f32 %v1548, 0.0
        %v1633 = vmax.f32 %v1550, 0.0
        %v1634 = vmax.f32 %v1554, 0.0
        %v1635 = vmax.f32 %v1556, 0.0
        %v1636 = vmax.f32 %v1558, 0.0
        %v1637 = vmax.f32 %v1560, 0.0
        %v1638 = vmax.f32 %v1564, 0.0
        %v1639 = vmax.f32 %v1566, 0.0
        %v1640 = vmax.f32 %v1568, 0.0
        %v1641 = vmax.f32 %v1570, 0.0
        %v1642 = vmax.f32 %v1574, 0.0
        %v1643 = vmax.f32 %v1576, 0.0
        %v1644 = vmax.f32 %v1578, 0.0
        %v1645 = vmax.f32 %v1580, 0.0
        %s1646 = scalar_lea.vmem [#allocation2], 512
        %v1647 = vld [vmem:[%s1646] sm:$0xff]
        %v1648 = vld [vmem:[%s1646 + $0x8] sm:$0xff]
        %v1649 = vld [vmem:[%s1646 + $0x10] sm:$0xff]
        %v1650 = vld [vmem:[%s1646 + $0x18] sm:$0xff]
        %v1651 = vld [vmem:[%s1646 + $0x20] sm:$0xff]
        %v1652 = vld [vmem:[%s1646 + $0x28] sm:$0xff]
        %v1653 = vld [vmem:[%s1646 + $0x30] sm:$0xff]
        %v1654 = vld [vmem:[%s1646 + $0x38] sm:$0xff]
        %v1655 = vld [vmem:[%s1646 + $0x40] sm:$0xff]
        %v1656 = vld [vmem:[%s1646 + $0x48] sm:$0xff]
        %v1657 = vld [vmem:[%s1646 + $0x50] sm:$0xff]
        %v1658 = vld [vmem:[%s1646 + $0x58] sm:$0xff]
        %v1659 = vld [vmem:[%s1646 + $0x60] sm:$0xff]
        %v1660 = vld [vmem:[%s1646 + $0x68] sm:$0xff]
        %v1661 = vld [vmem:[%s1646 + $0x70] sm:$0xff]
        %v1662 = vld [vmem:[%s1646 + $0x78] sm:$0xff]
        %v1663 = vld [vmem:[%s1646 + $0x80] sm:$0xff]
        %v1664 = vld [vmem:[%s1646 + $0x88] sm:$0xff]
        %v1665 = vld [vmem:[%s1646 + $0x90] sm:$0xff]
        %v1666 = vld [vmem:[%s1646 + $0x98] sm:$0xff]
        %v1667 = vld [vmem:[%s1646 + $0xa0] sm:$0xff]
        %v1668 = vld [vmem:[%s1646 + $0xa8] sm:$0xff]
        %v1669 = vld [vmem:[%s1646 + $0xb0] sm:$0xff]
        %v1670 = vld [vmem:[%s1646 + $0xb8] sm:$0xff]
        %v1671 = vld [vmem:[%s1646 + $0xc0] sm:$0xff]
        %v1672 = vld [vmem:[%s1646 + $0xc8] sm:$0xff]
        %v1673 = vld [vmem:[%s1646 + $0xd0] sm:$0xff]
        %v1674 = vld [vmem:[%s1646 + $0xd8] sm:$0xff]
        %v1675 = vld [vmem:[%s1646 + $0xe0] sm:$0xff]
        %v1676 = vld [vmem:[%s1646 + $0xe8] sm:$0xff]
        %v1677 = vld [vmem:[%s1646 + $0xf0] sm:$0xff]
        %v1678 = vld [vmem:[%s1646 + $0xf8] sm:$0xff]
        %s1679 = scalar_lea.vmem %s3, 3
        %v1680 = vld [vmem:[%s1679] ss:$8 sm:$0x3]
        %v1681 = vpack.c.bf16 %v1584, %v1582
        %v1682 = vpack.c.bf16 %v1585, %v1583
        %v1683 = vpack.c.bf16 %v1588, %v1586
        %v1684 = vpack.c.bf16 %v1589, %v1587
        %v1685 = vpack.c.bf16 %v1592, %v1590
        %v1686 = vpack.c.bf16 %v1593, %v1591
        %v1687 = vpack.c.bf16 %v1596, %v1594
        %v1688 = vpack.c.bf16 %v1597, %v1595
        %v1689 = vpack.c.bf16 %v1600, %v1598
        %v1690 = vpack.c.bf16 %v1601, %v1599
        %v1691 = vpack.c.bf16 %v1604, %v1602
        %v1692 = vpack.c.bf16 %v1605, %v1603
        %v1693 = vpack.c.bf16 %v1608, %v1606
        %v1694 = vpack.c.bf16 %v1609, %v1607
        %v1695 = vpack.c.bf16 %v1612, %v1610
        %v1696 = vpack.c.bf16 %v1613, %v1611
        %v1697 = vpack.c.bf16 %v1616, %v1614
        %v1698 = vpack.c.bf16 %v1617, %v1615
        %v1699 = vpack.c.bf16 %v1620, %v1618
        %v1700 = vpack.c.bf16 %v1621, %v1619
        %v1701 = vpack.c.bf16 %v1624, %v1622
        %v1702 = vpack.c.bf16 %v1625, %v1623
        %v1703 = vpack.c.bf16 %v1628, %v1626
        %v1704 = vpack.c.bf16 %v1629, %v1627
        %v1705 = vpack.c.bf16 %v1632, %v1630
        %v1706 = vpack.c.bf16 %v1633, %v1631
        %v1707 = vpack.c.bf16 %v1636, %v1634
        %v1708 = vpack.c.bf16 %v1637, %v1635
        %v1709 = vpack.c.bf16 %v1640, %v1638
        %v1710 = vpack.c.bf16 %v1641, %v1639
        %v1711 = vpack.c.bf16 %v1644, %v1642
        %v1712 = vpack.c.bf16 %v1645, %v1643
        %v1714 = vlaneseq
        %v1715 = vshrl.u32 %v1714, 7
        %v1716 = vsub.s32 0, %v1715
        %v1717 = vrot.slane %v1680, %v1716
        %v1718 = vlaneseq
        %v1719 = vshrl.u32 %v1718, 7
        %v1720 = vsub.s32 1, %v1719
        %v1721 = vrot.slane %v1680, %v1720
        %v1756 = vunpack.c.l.b16 %v1647
        %v1757 = vunpack.c.h.b16 %v1647
        %v1758 = vunpack.c.l.b16 %v1648
        %v1759 = vunpack.c.h.b16 %v1648
        %v1760 = vunpack.c.l.b16 %v1649
        %v1761 = vunpack.c.h.b16 %v1649
        %v1762 = vunpack.c.l.b16 %v1650
        %v1763 = vunpack.c.h.b16 %v1650
        %v1764 = vunpack.c.l.b16 %v1651
        %v1765 = vunpack.c.h.b16 %v1651
        %v1766 = vunpack.c.l.b16 %v1652
        %v1767 = vunpack.c.h.b16 %v1652
        %v1768 = vunpack.c.l.b16 %v1653
        %v1769 = vunpack.c.h.b16 %v1653
        %v1770 = vunpack.c.l.b16 %v1654
        %v1771 = vunpack.c.h.b16 %v1654
        %v1772 = vunpack.c.l.b16 %v1655
        %v1773 = vunpack.c.h.b16 %v1655
        %v1774 = vunpack.c.l.b16 %v1656
        %v1775 = vunpack.c.h.b16 %v1656
        %v1776 = vunpack.c.l.b16 %v1657
        %v1777 = vunpack.c.h.b16 %v1657
        %v1778 = vunpack.c.l.b16 %v1658
        %v1779 = vunpack.c.h.b16 %v1658
        %v1780 = vunpack.c.l.b16 %v1659
        %v1781 = vunpack.c.h.b16 %v1659
        %v1782 = vunpack.c.l.b16 %v1660
        %v1783 = vunpack.c.h.b16 %v1660
        %v1784 = vunpack.c.l.b16 %v1661
        %v1785 = vunpack.c.h.b16 %v1661
        %v1786 = vunpack.c.l.b16 %v1662
        %v1787 = vunpack.c.h.b16 %v1662
        %v1788 = vunpack.c.l.b16 %v1663
        %v1789 = vunpack.c.h.b16 %v1663
        %v1790 = vunpack.c.l.b16 %v1664
        %v1791 = vunpack.c.h.b16 %v1664
        %v1792 = vunpack.c.l.b16 %v1665
        %v1793 = vunpack.c.h.b16 %v1665
        %v1794 = vunpack.c.l.b16 %v1666
        %v1795 = vunpack.c.h.b16 %v1666
        %v1796 = vunpack.c.l.b16 %v1667
        %v1797 = vunpack.c.h.b16 %v1667
        %v1798 = vunpack.c.l.b16 %v1668
        %v1799 = vunpack.c.h.b16 %v1668
        %v1800 = vunpack.c.l.b16 %v1669
        %v1801 = vunpack.c.h.b16 %v1669
        %v1802 = vunpack.c.l.b16 %v1670
        %v1803 = vunpack.c.h.b16 %v1670
        %v1804 = vunpack.c.l.b16 %v1671
        %v1805 = vunpack.c.h.b16 %v1671
        %v1806 = vunpack.c.l.b16 %v1672
        %v1807 = vunpack.c.h.b16 %v1672
        %v1808 = vunpack.c.l.b16 %v1673
        %v1809 = vunpack.c.h.b16 %v1673
        %v1810 = vunpack.c.l.b16 %v1674
        %v1811 = vunpack.c.h.b16 %v1674
        %v1812 = vunpack.c.l.b16 %v1675
        %v1813 = vunpack.c.h.b16 %v1675
        %v1814 = vunpack.c.l.b16 %v1676
        %v1815 = vunpack.c.h.b16 %v1676
        %v1816 = vunpack.c.l.b16 %v1677
        %v1817 = vunpack.c.h.b16 %v1677
        %v1818 = vunpack.c.l.b16 %v1678
        %v1819 = vunpack.c.h.b16 %v1678
        %v1820 = vpack.c.b16 %v1758, %v1756
        %v1821 = vpack.c.b16 %v1759, %v1757
        %v1822 = vpack.c.b16 %v1762, %v1760
        %v1823 = vpack.c.b16 %v1763, %v1761
        %v1824 = vpack.c.b16 %v1766, %v1764
        %v1825 = vpack.c.b16 %v1767, %v1765
        %v1826 = vpack.c.b16 %v1770, %v1768
        %v1827 = vpack.c.b16 %v1771, %v1769
        %v1828 = vpack.c.b16 %v1774, %v1772
        %v1829 = vpack.c.b16 %v1775, %v1773
        %v1830 = vpack.c.b16 %v1778, %v1776
        %v1831 = vpack.c.b16 %v1779, %v1777
        %v1832 = vpack.c.b16 %v1782, %v1780
        %v1833 = vpack.c.b16 %v1783, %v1781
        %v1834 = vpack.c.b16 %v1786, %v1784
        %v1835 = vpack.c.b16 %v1787, %v1785
        %v1836 = vpack.c.b16 %v1790, %v1788
        %v1837 = vpack.c.b16 %v1791, %v1789
        %v1838 = vpack.c.b16 %v1794, %v1792
        %v1839 = vpack.c.b16 %v1795, %v1793
        %v1840 = vpack.c.b16 %v1798, %v1796
        %v1841 = vpack.c.b16 %v1799, %v1797
        %v1842 = vpack.c.b16 %v1802, %v1800
        %v1843 = vpack.c.b16 %v1803, %v1801
        %v1844 = vpack.c.b16 %v1806, %v1804
        %v1845 = vpack.c.b16 %v1807, %v1805
        %v1846 = vpack.c.b16 %v1810, %v1808
        %v1847 = vpack.c.b16 %v1811, %v1809
        %v1848 = vpack.c.b16 %v1814, %v1812
        %v1849 = vpack.c.b16 %v1815, %v1813
        %v1850 = vpack.c.b16 %v1818, %v1816
        %v1851 = vpack.c.b16 %v1819, %v1817
        %1884 = vmatprep.subr.bf16.mxu0 %v1821
        %1885 = vmatpush1.bf16.msra.mxu0 %v1820
        %1886 = vmatprep.subr.bf16.mxu0 %v1823
        %1887 = vmatpush1.bf16.msra.mxu0 %v1822
        %1888 = vmatprep.subr.bf16.mxu0 %v1825
        %1889 = vmatpush1.bf16.msra.mxu0 %v1824
        %1890 = vmatprep.subr.bf16.mxu0 %v1827
        %1891 = vmatpush1.bf16.msra.mxu0 %v1826
        %1892 = vmatprep.subr.bf16.mxu0 %v1829
        %1893 = vmatpush1.bf16.msra.mxu0 %v1828
        %1894 = vmatprep.subr.bf16.mxu0 %v1831
        %1895 = vmatpush1.bf16.msra.mxu0 %v1830
        %1896 = vmatprep.subr.bf16.mxu0 %v1833
        %1897 = vmatpush1.bf16.msra.mxu0 %v1832
        %1898 = vmatprep.subr.bf16.mxu0 %v1835
        %1899 = vmatpush1.bf16.msra.mxu0 %v1834
        %1900 = vmatprep.subr.bf16.mxu0 %v1837
        %1901 = vmatpush1.bf16.msra.mxu0 %v1836
        %1902 = vmatprep.subr.bf16.mxu0 %v1839
        %1903 = vmatpush1.bf16.msra.mxu0 %v1838
        %1904 = vmatprep.subr.bf16.mxu0 %v1841
        %1905 = vmatpush1.bf16.msra.mxu0 %v1840
        %1906 = vmatprep.subr.bf16.mxu0 %v1843
        %1907 = vmatpush1.bf16.msra.mxu0 %v1842
        %1908 = vmatprep.subr.bf16.mxu0 %v1845
        %1909 = vmatpush1.bf16.msra.mxu0 %v1844
        %1910 = vmatprep.subr.bf16.mxu0 %v1847
        %1911 = vmatpush1.bf16.msra.mxu0 %v1846
        %1912 = vmatprep.subr.bf16.mxu0 %v1849
        %1913 = vmatpush1.bf16.msra.mxu0 %v1848
        %1914 = vmatprep.subr.bf16.mxu0 %v1851
        %1915 = vmatpush1.bf16.msra.mxu0 %v1850
        %1916 = vmatprep.mubr.bf16.mxu0 %v1682
        %1917 = vmatmul.mubr.bf16.gmra.mrb[0].mxu0 %v1681
        %v1918 = vpop.f32.mrb[0].mxu0
        %v1919 = vadd.f32 %v1717, %v1918
        %v1920 = vpop.f32.mrb[0].mxu0
        %v1921 = vadd.f32 %v1721, %v1920
        %v1922 = vpop.f32.mrb[0].mxu0
        %v1923 = vadd.f32 %v1717, %v1922
        %v1924 = vpop.f32.mrb[0].mxu0
        %v1925 = vadd.f32 %v1721, %v1924
        %1926 = vmatprep.mubr.bf16.mxu0 %v1684
        %1927 = vmatmul.mubr.bf16.gmra.mrb[0].mxu0 %v1683
        %v1928 = vpop.f32.mrb[0].mxu0
        %v1929 = vadd.f32 %v1717, %v1928
        %v1930 = vpop.f32.mrb[0].mxu0
        %v1931 = vadd.f32 %v1721, %v1930
        %v1932 = vpop.f32.mrb[0].mxu0
        %v1933 = vadd.f32 %v1717, %v1932
        %v1934 = vpop.f32.mrb[0].mxu0
        %v1935 = vadd.f32 %v1721, %v1934
        %1936 = vmatprep.mubr.bf16.mxu0 %v1686
        %1937 = vmatmul.mubr.bf16.gmra.mrb[0].mxu0 %v1685
        %v1938 = vpop.f32.mrb[0].mxu0
        %v1939 = vadd.f32 %v1717, %v1938
        %v1940 = vpop.f32.mrb[0].mxu0
        %v1941 = vadd.f32 %v1721, %v1940
        %v1942 = vpop.f32.mrb[0].mxu0
        %v1943 = vadd.f32 %v1717, %v1942
        %v1944 = vpop.f32.mrb[0].mxu0
        %v1945 = vadd.f32 %v1721, %v1944
        %1946 = vmatprep.mubr.bf16.mxu0 %v1688
        %1947 = vmatmul.mubr.bf16.gmra.mrb[0].mxu0 %v1687
        %v1948 = vpop.f32.mrb[0].mxu0
        %v1949 = vadd.f32 %v1717, %v1948
        %v1950 = vpop.f32.mrb[0].mxu0
        %v1951 = vadd.f32 %v1721, %v1950
        %v1952 = vpop.f32.mrb[0].mxu0
        %v1953 = vadd.f32 %v1717, %v1952
        %v1954 = vpop.f32.mrb[0].mxu0
        %v1955 = vadd.f32 %v1721, %v1954
        %1956 = vmatprep.mubr.bf16.mxu0 %v1690
        %1957 = vmatmul.mubr.bf16.gmra.mrb[0].mxu0 %v1689
        %v1958 = vpop.f32.mrb[0].mxu0
        %v1959 = vadd.f32 %v1717, %v1958
        %v1960 = vpop.f32.mrb[0].mxu0
        %v1961 = vadd.f32 %v1721, %v1960
        %v1962 = vpop.f32.mrb[0].mxu0
        %v1963 = vadd.f32 %v1717, %v1962
        %v1964 = vpop.f32.mrb[0].mxu0
        %v1965 = vadd.f32 %v1721, %v1964
        %1966 = vmatprep.mubr.bf16.mxu0 %v1692
        %1967 = vmatmul.mubr.bf16.gmra.mrb[0].mxu0 %v1691
        %v1968 = vpop.f32.mrb[0].mxu0
        %v1969 = vadd.f32 %v1717, %v1968
        %v1970 = vpop.f32.mrb[0].mxu0
        %v1971 = vadd.f32 %v1721, %v1970
        %v1972 = vpop.f32.mrb[0].mxu0
        %v1973 = vadd.f32 %v1717, %v1972
        %v1974 = vpop.f32.mrb[0].mxu0
        %v1975 = vadd.f32 %v1721, %v1974
        %1976 = vmatprep.mubr.bf16.mxu0 %v1694
        %1977 = vmatmul.mubr.bf16.gmra.mrb[0].mxu0 %v1693
        %v1978 = vpop.f32.mrb[0].mxu0
        %v1979 = vadd.f32 %v1717, %v1978
        %v1980 = vpop.f32.mrb[0].mxu0
        %v1981 = vadd.f32 %v1721, %v1980
        %v1982 = vpop.f32.mrb[0].mxu0
        %v1983 = vadd.f32 %v1717, %v1982
        %v1984 = vpop.f32.mrb[0].mxu0
        %v1985 = vadd.f32 %v1721, %v1984
        %1986 = vmatprep.mubr.bf16.mxu0 %v1696
        %1987 = vmatmul.mubr.bf16.gmra.mrb[0].mxu0 %v1695
        %v1988 = vpop.f32.mrb[0].mxu0
        %v1989 = vadd.f32 %v1717, %v1988
        %v1990 = vpop.f32.mrb[0].mxu0
        %v1991 = vadd.f32 %v1721, %v1990
        %v1992 = vpop.f32.mrb[0].mxu0
        %v1993 = vadd.f32 %v1717, %v1992
        %v1994 = vpop.f32.mrb[0].mxu0
        %v1995 = vadd.f32 %v1721, %v1994
        %1996 = vmatprep.mubr.bf16.mxu0 %v1698
        %1997 = vmatmul.mubr.bf16.gmra.mrb[0].mxu0 %v1697
        %v1998 = vpop.f32.mrb[0].mxu0
        %v1999 = vadd.f32 %v1717, %v1998
        %v2000 = vpop.f32.mrb[0].mxu0
        %v2001 = vadd.f32 %v1721, %v2000
        %v2002 = vpop.f32.mrb[0].mxu0
        %v2003 = vadd.f32 %v1717, %v2002
        %v2004 = vpop.f32.mrb[0].mxu0
        %v2005 = vadd.f32 %v1721, %v2004
        %2006 = vmatprep.mubr.bf16.mxu0 %v1700
        %2007 = vmatmul.mubr.bf16.gmra.mrb[0].mxu0 %v1699
        %v2008 = vpop.f32.mrb[0].mxu0
        %v2009 = vadd.f32 %v1717, %v2008
        %v2010 = vpop.f32.mrb[0].mxu0
        %v2011 = vadd.f32 %v1721, %v2010
        %v2012 = vpop.f32.mrb[0].mxu0
        %v2013 = vadd.f32 %v1717, %v2012
        %v2014 = vpop.f32.mrb[0].mxu0
        %v2015 = vadd.f32 %v1721, %v2014
        %2016 = vmatprep.mubr.bf16.mxu0 %v1702
        %2017 = vmatmul.mubr.bf16.gmra.mrb[0].mxu0 %v1701
        %v2018 = vpop.f32.mrb[0].mxu0
        %v2019 = vadd.f32 %v1717, %v2018
        %v2020 = vpop.f32.mrb[0].mxu0
        %v2021 = vadd.f32 %v1721, %v2020
        %v2022 = vpop.f32.mrb[0].mxu0
        %v2023 = vadd.f32 %v1717, %v2022
        %v2024 = vpop.f32.mrb[0].mxu0
        %v2025 = vadd.f32 %v1721, %v2024
        %2026 = vmatprep.mubr.bf16.mxu0 %v1704
        %2027 = vmatmul.mubr.bf16.gmra.mrb[0].mxu0 %v1703
        %v2028 = vpop.f32.mrb[0].mxu0
        %v2029 = vadd.f32 %v1717, %v2028
        %v2030 = vpop.f32.mrb[0].mxu0
        %v2031 = vadd.f32 %v1721, %v2030
        %v2032 = vpop.f32.mrb[0].mxu0
        %v2033 = vadd.f32 %v1717, %v2032
        %v2034 = vpop.f32.mrb[0].mxu0
        %v2035 = vadd.f32 %v1721, %v2034
        %2036 = vmatprep.mubr.bf16.mxu0 %v1706
        %2037 = vmatmul.mubr.bf16.gmra.mrb[0].mxu0 %v1705
        %v2038 = vpop.f32.mrb[0].mxu0
        %v2039 = vadd.f32 %v1717, %v2038
        %v2040 = vpop.f32.mrb[0].mxu0
        %v2041 = vadd.f32 %v1721, %v2040
        %v2042 = vpop.f32.mrb[0].mxu0
        %v2043 = vadd.f32 %v1717, %v2042
        %v2044 = vpop.f32.mrb[0].mxu0
        %v2045 = vadd.f32 %v1721, %v2044
        %2046 = vmatprep.mubr.bf16.mxu0 %v1708
        %2047 = vmatmul.mubr.bf16.gmra.mrb[0].mxu0 %v1707
        %v2048 = vpop.f32.mrb[0].mxu0
        %v2049 = vadd.f32 %v1717, %v2048
        %v2050 = vpop.f32.mrb[0].mxu0
        %v2051 = vadd.f32 %v1721, %v2050
        %v2052 = vpop.f32.mrb[0].mxu0
        %v2053 = vadd.f32 %v1717, %v2052
        %v2054 = vpop.f32.mrb[0].mxu0
        %v2055 = vadd.f32 %v1721, %v2054
        %2056 = vmatprep.mubr.bf16.mxu0 %v1710
        %2057 = vmatmul.mubr.bf16.gmra.mrb[0].mxu0 %v1709
        %v2058 = vpop.f32.mrb[0].mxu0
        %v2059 = vadd.f32 %v1717, %v2058
        %v2060 = vpop.f32.mrb[0].mxu0
        %v2061 = vadd.f32 %v1721, %v2060
        %v2062 = vpop.f32.mrb[0].mxu0
        %v2063 = vadd.f32 %v1717, %v2062
        %v2064 = vpop.f32.mrb[0].mxu0
        %v2065 = vadd.f32 %v1721, %v2064
        %2066 = vmatprep.mubr.bf16.mxu0 %v1712
        %2067 = vmatmul.mubr.bf16.gmra.mrb[0].mxu0 %v1711
        %v2068 = vpop.f32.mrb[0].mxu0
        %v2069 = vadd.f32 %v1717, %v2068
        %v2070 = vpop.f32.mrb[0].mxu0
        %v2071 = vadd.f32 %v1721, %v2070
        %v2072 = vpop.f32.mrb[0].mxu0
        %v2073 = vadd.f32 %v1717, %v2072
        %v2074 = vpop.f32.mrb[0].mxu0
        %v2075 = vadd.f32 %v1721, %v2074
        %2076 = vdwg.mxu0
        %v2077 = vmax.f32 %v1919, 0.0
        %v2078 = vmax.f32 %v1921, 0.0
        %v2079 = vmax.f32 %v1923, 0.0
        %v2080 = vmax.f32 %v1925, 0.0
        %v2081 = vmax.f32 %v1929, 0.0
        %v2082 = vmax.f32 %v1931, 0.0
        %v2083 = vmax.f32 %v1933, 0.0
        %v2084 = vmax.f32 %v1935, 0.0
        %v2085 = vmax.f32 %v1939, 0.0
        %v2086 = vmax.f32 %v1941, 0.0
        %v2087 = vmax.f32 %v1943, 0.0
        %v2088 = vmax.f32 %v1945, 0.0
        %v2089 = vmax.f32 %v1949, 0.0
        %v2090 = vmax.f32 %v1951, 0.0
        %v2091 = vmax.f32 %v1953, 0.0
        %v2092 = vmax.f32 %v1955, 0.0
        %v2093 = vmax.f32 %v1959, 0.0
        %v2094 = vmax.f32 %v1961, 0.0
        %v2095 = vmax.f32 %v1963, 0.0
        %v2096 = vmax.f32 %v1965, 0.0
        %v2097 = vmax.f32 %v1969, 0.0
        %v2098 = vmax.f32 %v1971, 0.0
        %v2099 = vmax.f32 %v1973, 0.0
        %v2100 = vmax.f32 %v1975, 0.0
        %v2101 = vmax.f32 %v1979, 0.0
        %v2102 = vmax.f32 %v1981, 0.0
        %v2103 = vmax.f32 %v1983, 0.0
        %v2104 = vmax.f32 %v1985, 0.0
        %v2105 = vmax.f32 %v1989, 0.0
        %v2106 = vmax.f32 %v1991, 0.0
        %v2107 = vmax.f32 %v1993, 0.0
        %v2108 = vmax.f32 %v1995, 0.0
        %v2109 = vmax.f32 %v1999, 0.0
        %v2110 = vmax.f32 %v2001, 0.0
        %v2111 = vmax.f32 %v2003, 0.0
        %v2112 = vmax.f32 %v2005, 0.0
        %v2113 = vmax.f32 %v2009, 0.0
        %v2114 = vmax.f32 %v2011, 0.0
        %v2115 = vmax.f32 %v2013, 0.0
        %v2116 = vmax.f32 %v2015, 0.0
        %v2117 = vmax.f32 %v2019, 0.0
        %v2118 = vmax.f32 %v2021, 0.0
        %v2119 = vmax.f32 %v2023, 0.0
        %v2120 = vmax.f32 %v2025, 0.0
        %v2121 = vmax.f32 %v2029, 0.0
        %v2122 = vmax.f32 %v2031, 0.0
        %v2123 = vmax.f32 %v2033, 0.0
        %v2124 = vmax.f32 %v2035, 0.0
        %v2125 = vmax.f32 %v2039, 0.0
        %v2126 = vmax.f32 %v2041, 0.0
        %v2127 = vmax.f32 %v2043, 0.0
        %v2128 = vmax.f32 %v2045, 0.0
        %v2129 = vmax.f32 %v2049, 0.0
        %v2130 = vmax.f32 %v2051, 0.0
        %v2131 = vmax.f32 %v2053, 0.0
        %v2132 = vmax.f32 %v2055, 0.0
        %v2133 = vmax.f32 %v2059, 0.0
        %v2134 = vmax.f32 %v2061, 0.0
        %v2135 = vmax.f32 %v2063, 0.0
        %v2136 = vmax.f32 %v2065, 0.0
        %v2137 = vmax.f32 %v2069, 0.0
        %v2138 = vmax.f32 %v2071, 0.0
        %v2139 = vmax.f32 %v2073, 0.0
        %v2140 = vmax.f32 %v2075, 0.0
        %s2141 = scalar_lea.vmem [#allocation2], 768
        %v2142 = vld [vmem:[%s2141] sm:$0xff]
        %v2143 = vld [vmem:[%s2141 + $0x8] sm:$0xff]
        %v2144 = vld [vmem:[%s2141 + $0x10] sm:$0xff]
        %v2145 = vld [vmem:[%s2141 + $0x18] sm:$0xff]
        %v2146 = vld [vmem:[%s2141 + $0x20] sm:$0xff]
        %v2147 = vld [vmem:[%s2141 + $0x28] sm:$0xff]
        %v2148 = vld [vmem:[%s2141 + $0x30] sm:$0xff]
        %v2149 = vld [vmem:[%s2141 + $0x38] sm:$0xff]
        %v2150 = vld [vmem:[%s2141 + $0x40] sm:$0xff]
        %v2151 = vld [vmem:[%s2141 + $0x48] sm:$0xff]
        %v2152 = vld [vmem:[%s2141 + $0x50] sm:$0xff]
        %v2153 = vld [vmem:[%s2141 + $0x58] sm:$0xff]
        %v2154 = vld [vmem:[%s2141 + $0x60] sm:$0xff]
        %v2155 = vld [vmem:[%s2141 + $0x68] sm:$0xff]
        %v2156 = vld [vmem:[%s2141 + $0x70] sm:$0xff]
        %v2157 = vld [vmem:[%s2141 + $0x78] sm:$0xff]
        %v2158 = vld [vmem:[%s2141 + $0x80] sm:$0xff]
        %v2159 = vld [vmem:[%s2141 + $0x88] sm:$0xff]
        %v2160 = vld [vmem:[%s2141 + $0x90] sm:$0xff]
        %v2161 = vld [vmem:[%s2141 + $0x98] sm:$0xff]
        %v2162 = vld [vmem:[%s2141 + $0xa0] sm:$0xff]
        %v2163 = vld [vmem:[%s2141 + $0xa8] sm:$0xff]
        %v2164 = vld [vmem:[%s2141 + $0xb0] sm:$0xff]
        %v2165 = vld [vmem:[%s2141 + $0xb8] sm:$0xff]
        %v2166 = vld [vmem:[%s2141 + $0xc0] sm:$0xff]
        %v2167 = vld [vmem:[%s2141 + $0xc8] sm:$0xff]
        %v2168 = vld [vmem:[%s2141 + $0xd0] sm:$0xff]
        %v2169 = vld [vmem:[%s2141 + $0xd8] sm:$0xff]
        %v2170 = vld [vmem:[%s2141 + $0xe0] sm:$0xff]
        %v2171 = vld [vmem:[%s2141 + $0xe8] sm:$0xff]
        %v2172 = vld [vmem:[%s2141 + $0xf0] sm:$0xff]
        %v2173 = vld [vmem:[%s2141 + $0xf8] sm:$0xff]
        %s2174 = scalar_lea.vmem %s3, 4
        %v2175 = vld [vmem:[%s2174] ss:$8 sm:$0x3]
        %v2176 = vpack.c.bf16 %v2079, %v2077
        %v2177 = vpack.c.bf16 %v2080, %v2078
        %v2178 = vpack.c.bf16 %v2083, %v2081
        %v2179 = vpack.c.bf16 %v2084, %v2082
        %v2180 = vpack.c.bf16 %v2087, %v2085
        %v2181 = vpack.c.bf16 %v2088, %v2086
        %v2182 = vpack.c.bf16 %v2091, %v2089
        %v2183 = vpack.c.bf16 %v2092, %v2090
        %v2184 = vpack.c.bf16 %v2095, %v2093
        %v2185 = vpack.c.bf16 %v2096, %v2094
        %v2186 = vpack.c.bf16 %v2099, %v2097
        %v2187 = vpack.c.bf16 %v2100, %v2098
        %v2188 = vpack.c.bf16 %v2103, %v2101
        %v2189 = vpack.c.bf16 %v2104, %v2102
        %v2190 = vpack.c.bf16 %v2107, %v2105
        %v2191 = vpack.c.bf16 %v2108, %v2106
        %v2192 = vpack.c.bf16 %v2111, %v2109
        %v2193 = vpack.c.bf16 %v2112, %v2110
        %v2194 = vpack.c.bf16 %v2115, %v2113
        %v2195 = vpack.c.bf16 %v2116, %v2114
        %v2196 = vpack.c.bf16 %v2119, %v2117
        %v2197 = vpack.c.bf16 %v2120, %v2118
        %v2198 = vpack.c.bf16 %v2123, %v2121
        %v2199 = vpack.c.bf16 %v2124, %v2122
        %v2200 = vpack.c.bf16 %v2127, %v2125
        %v2201 = vpack.c.bf16 %v2128, %v2126
        %v2202 = vpack.c.bf16 %v2131, %v2129
        %v2203 = vpack.c.bf16 %v2132, %v2130
        %v2204 = vpack.c.bf16 %v2135, %v2133
        %v2205 = vpack.c.bf16 %v2136, %v2134
        %v2206 = vpack.c.bf16 %v2139, %v2137
        %v2207 = vpack.c.bf16 %v2140, %v2138
        %v2209 = vlaneseq
        %v2210 = vshrl.u32 %v2209, 7
        %v2211 = vsub.s32 0, %v2210
        %v2212 = vrot.slane %v2175, %v2211
        %v2213 = vlaneseq
        %v2214 = vshrl.u32 %v2213, 7
        %v2215 = vsub.s32 1, %v2214
        %v2216 = vrot.slane %v2175, %v2215
        %v2251 = vunpack.c.l.b16 %v2142
        %v2252 = vunpack.c.h.b16 %v2142
        %v2253 = vunpack.c.l.b16 %v2143
        %v2254 = vunpack.c.h.b16 %v2143
        %v2255 = vunpack.c.l.b16 %v2144
        %v2256 = vunpack.c.h.b16 %v2144
        %v2257 = vunpack.c.l.b16 %v2145
        %v2258 = vunpack.c.h.b16 %v2145
        %v2259 = vunpack.c.l.b16 %v2146
        %v2260 = vunpack.c.h.b16 %v2146
        %v2261 = vunpack.c.l.b16 %v2147
        %v2262 = vunpack.c.h.b16 %v2147
        %v2263 = vunpack.c.l.b16 %v2148
        %v2264 = vunpack.c.h.b16 %v2148
        %v2265 = vunpack.c.l.b16 %v2149
        %v2266 = vunpack.c.h.b16 %v2149
        %v2267 = vunpack.c.l.b16 %v2150
        %v2268 = vunpack.c.h.b16 %v2150
        %v2269 = vunpack.c.l.b16 %v2151
        %v2270 = vunpack.c.h.b16 %v2151
        %v2271 = vunpack.c.l.b16 %v2152
        %v2272 = vunpack.c.h.b16 %v2152
        %v2273 = vunpack.c.l.b16 %v2153
        %v2274 = vunpack.c.h.b16 %v2153
        %v2275 = vunpack.c.l.b16 %v2154
        %v2276 = vunpack.c.h.b16 %v2154
        %v2277 = vunpack.c.l.b16 %v2155
        %v2278 = vunpack.c.h.b16 %v2155
        %v2279 = vunpack.c.l.b16 %v2156
        %v2280 = vunpack.c.h.b16 %v2156
        %v2281 = vunpack.c.l.b16 %v2157
        %v2282 = vunpack.c.h.b16 %v2157
        %v2283 = vunpack.c.l.b16 %v2158
        %v2284 = vunpack.c.h.b16 %v2158
        %v2285 = vunpack.c.l.b16 %v2159
        %v2286 = vunpack.c.h.b16 %v2159
        %v2287 = vunpack.c.l.b16 %v2160
        %v2288 = vunpack.c.h.b16 %v2160
        %v2289 = vunpack.c.l.b16 %v2161
        %v2290 = vunpack.c.h.b16 %v2161
        %v2291 = vunpack.c.l.b16 %v2162
        %v2292 = vunpack.c.h.b16 %v2162
        %v2293 = vunpack.c.l.b16 %v2163
        %v2294 = vunpack.c.h.b16 %v2163
        %v2295 = vunpack.c.l.b16 %v2164
        %v2296 = vunpack.c.h.b16 %v2164
        %v2297 = vunpack.c.l.b16 %v2165
        %v2298 = vunpack.c.h.b16 %v2165
        %v2299 = vunpack.c.l.b16 %v2166
        %v2300 = vunpack.c.h.b16 %v2166
        %v2301 = vunpack.c.l.b16 %v2167
        %v2302 = vunpack.c.h.b16 %v2167
        %v2303 = vunpack.c.l.b16 %v2168
        %v2304 = vunpack.c.h.b16 %v2168
        %v2305 = vunpack.c.l.b16 %v2169
        %v2306 = vunpack.c.h.b16 %v2169
        %v2307 = vunpack.c.l.b16 %v2170
        %v2308 = vunpack.c.h.b16 %v2170
        %v2309 = vunpack.c.l.b16 %v2171
        %v2310 = vunpack.c.h.b16 %v2171
        %v2311 = vunpack.c.l.b16 %v2172
        %v2312 = vunpack.c.h.b16 %v2172
        %v2313 = vunpack.c.l.b16 %v2173
        %v2314 = vunpack.c.h.b16 %v2173
        %v2315 = vpack.c.b16 %v2253, %v2251
        %v2316 = vpack.c.b16 %v2254, %v2252
        %v2317 = vpack.c.b16 %v2257, %v2255
        %v2318 = vpack.c.b16 %v2258, %v2256
        %v2319 = vpack.c.b16 %v2261, %v2259
        %v2320 = vpack.c.b16 %v2262, %v2260
        %v2321 = vpack.c.b16 %v2265, %v2263
        %v2322 = vpack.c.b16 %v2266, %v2264
        %v2323 = vpack.c.b16 %v2269, %v2267
        %v2324 = vpack.c.b16 %v2270, %v2268
        %v2325 = vpack.c.b16 %v2273, %v2271
        %v2326 = vpack.c.b16 %v2274, %v2272
        %v2327 = vpack.c.b16 %v2277, %v2275
        %v2328 = vpack.c.b16 %v2278, %v2276
        %v2329 = vpack.c.b16 %v2281, %v2279
        %v2330 = vpack.c.b16 %v2282, %v2280
        %v2331 = vpack.c.b16 %v2285, %v2283
        %v2332 = vpack.c.b16 %v2286, %v2284
        %v2333 = vpack.c.b16 %v2289, %v2287
        %v2334 = vpack.c.b16 %v2290, %v2288
        %v2335 = vpack.c.b16 %v2293, %v2291
        %v2336 = vpack.c.b16 %v2294, %v2292
        %v2337 = vpack.c.b16 %v2297, %v2295
        %v2338 = vpack.c.b16 %v2298, %v2296
        %v2339 = vpack.c.b16 %v2301, %v2299
        %v2340 = vpack.c.b16 %v2302, %v2300
        %v2341 = vpack.c.b16 %v2305, %v2303
        %v2342 = vpack.c.b16 %v2306, %v2304
        %v2343 = vpack.c.b16 %v2309, %v2307
        %v2344 = vpack.c.b16 %v2310, %v2308
        %v2345 = vpack.c.b16 %v2313, %v2311
        %v2346 = vpack.c.b16 %v2314, %v2312
        %2379 = vmatprep.subr.bf16.mxu0 %v2316
        %2380 = vmatpush1.bf16.msra.mxu0 %v2315
        %2381 = vmatprep.subr.bf16.mxu0 %v2318
        %2382 = vmatpush1.bf16.msra.mxu0 %v2317
        %2383 = vmatprep.subr.bf16.mxu0 %v2320
        %2384 = vmatpush1.bf16.msra.mxu0 %v2319
        %2385 = vmatprep.subr.bf16.mxu0 %v2322
        %2386 = vmatpush1.bf16.msra.mxu0 %v2321
        %2387 = vmatprep.subr.bf16.mxu0 %v2324
        %2388 = vmatpush1.bf16.msra.mxu0 %v2323
        %2389 = vmatprep.subr.bf16.mxu0 %v2326
        %2390 = vmatpush1.bf16.msra.mxu0 %v2325
        %2391 = vmatprep.subr.bf16.mxu0 %v2328
        %2392 = vmatpush1.bf16.msra.mxu0 %v2327
        %2393 = vmatprep.subr.bf16.mxu0 %v2330
        %2394 = vmatpush1.bf16.msra.mxu0 %v2329
        %2395 = vmatprep.subr.bf16.mxu0 %v2332
        %2396 = vmatpush1.bf16.msra.mxu0 %v2331
        %2397 = vmatprep.subr.bf16.mxu0 %v2334
        %2398 = vmatpush1.bf16.msra.mxu0 %v2333
        %2399 = vmatprep.subr.bf16.mxu0 %v2336
        %2400 = vmatpush1.bf16.msra.mxu0 %v2335
        %2401 = vmatprep.subr.bf16.mxu0 %v2338
        %2402 = vmatpush1.bf16.msra.mxu0 %v2337
        %2403 = vmatprep.subr.bf16.mxu0 %v2340
        %2404 = vmatpush1.bf16.msra.mxu0 %v2339
        %2405 = vmatprep.subr.bf16.mxu0 %v2342
        %2406 = vmatpush1.bf16.msra.mxu0 %v2341
        %2407 = vmatprep.subr.bf16.mxu0 %v2344
        %2408 = vmatpush1.bf16.msra.mxu0 %v2343
        %2409 = vmatprep.subr.bf16.mxu0 %v2346
        %2410 = vmatpush1.bf16.msra.mxu0 %v2345
        %2411 = vmatprep.mubr.bf16.mxu0 %v2177
        %2412 = vmatmul.mubr.bf16.gmra.mrb[0].mxu0 %v2176
        %v2413 = vpop.f32.mrb[0].mxu0
        %v2414 = vadd.f32 %v2212, %v2413
        %v2415 = vpop.f32.mrb[0].mxu0
        %v2416 = vadd.f32 %v2216, %v2415
        %v2417 = vpop.f32.mrb[0].mxu0
        %v2418 = vadd.f32 %v2212, %v2417
        %v2419 = vpop.f32.mrb[0].mxu0
        %v2420 = vadd.f32 %v2216, %v2419
        %2421 = vmatprep.mubr.bf16.mxu0 %v2179
        %2422 = vmatmul.mubr.bf16.gmra.mrb[0].mxu0 %v2178
        %v2423 = vpop.f32.mrb[0].mxu0
        %v2424 = vadd.f32 %v2212, %v2423
        %v2425 = vpop.f32.mrb[0].mxu0
        %v2426 = vadd.f32 %v2216, %v2425
        %v2427 = vpop.f32.mrb[0].mxu0
        %v2428 = vadd.f32 %v2212, %v2427
        %v2429 = vpop.f32.mrb[0].mxu0
        %v2430 = vadd.f32 %v2216, %v2429
        %2431 = vmatprep.mubr.bf16.mxu0 %v2181
        %2432 = vmatmul.mubr.bf16.gmra.mrb[0].mxu0 %v2180
        %v2433 = vpop.f32.mrb[0].mxu0
        %v2434 = vadd.f32 %v2212, %v2433
        %v2435 = vpop.f32.mrb[0].mxu0
        %v2436 = vadd.f32 %v2216, %v2435
        %v2437 = vpop.f32.mrb[0].mxu0
        %v2438 = vadd.f32 %v2212, %v2437
        %v2439 = vpop.f32.mrb[0].mxu0
        %v2440 = vadd.f32 %v2216, %v2439
        %2441 = vmatprep.mubr.bf16.mxu0 %v2183
        %2442 = vmatmul.mubr.bf16.gmra.mrb[0].mxu0 %v2182
        %v2443 = vpop.f32.mrb[0].mxu0
        %v2444 = vadd.f32 %v2212, %v2443
        %v2445 = vpop.f32.mrb[0].mxu0
        %v2446 = vadd.f32 %v2216, %v2445
        %v2447 = vpop.f32.mrb[0].mxu0
        %v2448 = vadd.f32 %v2212, %v2447
        %v2449 = vpop.f32.mrb[0].mxu0
        %v2450 = vadd.f32 %v2216, %v2449
        %2451 = vmatprep.mubr.bf16.mxu0 %v2185
        %2452 = vmatmul.mubr.bf16.gmra.mrb[0].mxu0 %v2184
        %v2453 = vpop.f32.mrb[0].mxu0
        %v2454 = vadd.f32 %v2212, %v2453
        %v2455 = vpop.f32.mrb[0].mxu0
        %v2456 = vadd.f32 %v2216, %v2455
        %v2457 = vpop.f32.mrb[0].mxu0
        %v2458 = vadd.f32 %v2212, %v2457
        %v2459 = vpop.f32.mrb[0].mxu0
        %v2460 = vadd.f32 %v2216, %v2459
        %2461 = vmatprep.mubr.bf16.mxu0 %v2187
        %2462 = vmatmul.mubr.bf16.gmra.mrb[0].mxu0 %v2186
        %v2463 = vpop.f32.mrb[0].mxu0
        %v2464 = vadd.f32 %v2212, %v2463
        %v2465 = vpop.f32.mrb[0].mxu0
        %v2466 = vadd.f32 %v2216, %v2465
        %v2467 = vpop.f32.mrb[0].mxu0
        %v2468 = vadd.f32 %v2212, %v2467
        %v2469 = vpop.f32.mrb[0].mxu0
        %v2470 = vadd.f32 %v2216, %v2469
        %2471 = vmatprep.mubr.bf16.mxu0 %v2189
        %2472 = vmatmul.mubr.bf16.gmra.mrb[0].mxu0 %v2188
        %v2473 = vpop.f32.mrb[0].mxu0
        %v2474 = vadd.f32 %v2212, %v2473
        %v2475 = vpop.f32.mrb[0].mxu0
        %v2476 = vadd.f32 %v2216, %v2475
        %v2477 = vpop.f32.mrb[0].mxu0
        %v2478 = vadd.f32 %v2212, %v2477
        %v2479 = vpop.f32.mrb[0].mxu0
        %v2480 = vadd.f32 %v2216, %v2479
        %2481 = vmatprep.mubr.bf16.mxu0 %v2191
        %2482 = vmatmul.mubr.bf16.gmra.mrb[0].mxu0 %v2190
        %v2483 = vpop.f32.mrb[0].mxu0
        %v2484 = vadd.f32 %v2212, %v2483
        %v2485 = vpop.f32.mrb[0].mxu0
        %v2486 = vadd.f32 %v2216, %v2485
        %v2487 = vpop.f32.mrb[0].mxu0
        %v2488 = vadd.f32 %v2212, %v2487
        %v2489 = vpop.f32.mrb[0].mxu0
        %v2490 = vadd.f32 %v2216, %v2489
        %2491 = vmatprep.mubr.bf16.mxu0 %v2193
        %2492 = vmatmul.mubr.bf16.gmra.mrb[0].mxu0 %v2192
        %v2493 = vpop.f32.mrb[0].mxu0
        %v2494 = vadd.f32 %v2212, %v2493
        %v2495 = vpop.f32.mrb[0].mxu0
        %v2496 = vadd.f32 %v2216, %v2495
        %v2497 = vpop.f32.mrb[0].mxu0
        %v2498 = vadd.f32 %v2212, %v2497
        %v2499 = vpop.f32.mrb[0].mxu0
        %v2500 = vadd.f32 %v2216, %v2499
        %2501 = vmatprep.mubr.bf16.mxu0 %v2195
        %2502 = vmatmul.mubr.bf16.gmra.mrb[0].mxu0 %v2194
        %v2503 = vpop.f32.mrb[0].mxu0
        %v2504 = vadd.f32 %v2212, %v2503
        %v2505 = vpop.f32.mrb[0].mxu0
        %v2506 = vadd.f32 %v2216, %v2505
        %v2507 = vpop.f32.mrb[0].mxu0
        %v2508 = vadd.f32 %v2212, %v2507
        %v2509 = vpop.f32.mrb[0].mxu0
        %v2510 = vadd.f32 %v2216, %v2509
        %2511 = vmatprep.mubr.bf16.mxu0 %v2197
        %2512 = vmatmul.mubr.bf16.gmra.mrb[0].mxu0 %v2196
        %v2513 = vpop.f32.mrb[0].mxu0
        %v2514 = vadd.f32 %v2212, %v2513
        %v2515 = vpop.f32.mrb[0].mxu0
        %v2516 = vadd.f32 %v2216, %v2515
        %v2517 = vpop.f32.mrb[0].mxu0
        %v2518 = vadd.f32 %v2212, %v2517
        %v2519 = vpop.f32.mrb[0].mxu0
        %v2520 = vadd.f32 %v2216, %v2519
        %2521 = vmatprep.mubr.bf16.mxu0 %v2199
        %2522 = vmatmul.mubr.bf16.gmra.mrb[0].mxu0 %v2198
        %v2523 = vpop.f32.mrb[0].mxu0
        %v2524 = vadd.f32 %v2212, %v2523
        %v2525 = vpop.f32.mrb[0].mxu0
        %v2526 = vadd.f32 %v2216, %v2525
        %v2527 = vpop.f32.mrb[0].mxu0
        %v2528 = vadd.f32 %v2212, %v2527
        %v2529 = vpop.f32.mrb[0].mxu0
        %v2530 = vadd.f32 %v2216, %v2529
        %2531 = vmatprep.mubr.bf16.mxu0 %v2201
        %2532 = vmatmul.mubr.bf16.gmra.mrb[0].mxu0 %v2200
        %v2533 = vpop.f32.mrb[0].mxu0
        %v2534 = vadd.f32 %v2212, %v2533
        %v2535 = vpop.f32.mrb[0].mxu0
        %v2536 = vadd.f32 %v2216, %v2535
        %v2537 = vpop.f32.mrb[0].mxu0
        %v2538 = vadd.f32 %v2212, %v2537
        %v2539 = vpop.f32.mrb[0].mxu0
        %v2540 = vadd.f32 %v2216, %v2539
        %2541 = vmatprep.mubr.bf16.mxu0 %v2203
        %2542 = vmatmul.mubr.bf16.gmra.mrb[0].mxu0 %v2202
        %v2543 = vpop.f32.mrb[0].mxu0
        %v2544 = vadd.f32 %v2212, %v2543
        %v2545 = vpop.f32.mrb[0].mxu0
        %v2546 = vadd.f32 %v2216, %v2545
        %v2547 = vpop.f32.mrb[0].mxu0
        %v2548 = vadd.f32 %v2212, %v2547
        %v2549 = vpop.f32.mrb[0].mxu0
        %v2550 = vadd.f32 %v2216, %v2549
        %2551 = vmatprep.mubr.bf16.mxu0 %v2205
        %2552 = vmatmul.mubr.bf16.gmra.mrb[0].mxu0 %v2204
        %v2553 = vpop.f32.mrb[0].mxu0
        %v2554 = vadd.f32 %v2212, %v2553
        %v2555 = vpop.f32.mrb[0].mxu0
        %v2556 = vadd.f32 %v2216, %v2555
        %v2557 = vpop.f32.mrb[0].mxu0
        %v2558 = vadd.f32 %v2212, %v2557
        %v2559 = vpop.f32.mrb[0].mxu0
        %v2560 = vadd.f32 %v2216, %v2559
        %2561 = vmatprep.mubr.bf16.mxu0 %v2207
        %2562 = vmatmul.mubr.bf16.gmra.mrb[0].mxu0 %v2206
        %v2563 = vpop.f32.mrb[0].mxu0
        %v2564 = vadd.f32 %v2212, %v2563
        %v2565 = vpop.f32.mrb[0].mxu0
        %v2566 = vadd.f32 %v2216, %v2565
        %v2567 = vpop.f32.mrb[0].mxu0
        %v2568 = vadd.f32 %v2212, %v2567
        %v2569 = vpop.f32.mrb[0].mxu0
        %v2570 = vadd.f32 %v2216, %v2569
        %2571 = vdwg.mxu0
        %v2572 = vmax.f32 %v2414, 0.0
        %v2573 = vmax.f32 %v2416, 0.0
        %v2574 = vmax.f32 %v2418, 0.0
        %v2575 = vmax.f32 %v2420, 0.0
        %v2576 = vmax.f32 %v2424, 0.0
        %v2577 = vmax.f32 %v2426, 0.0
        %v2578 = vmax.f32 %v2428, 0.0
        %v2579 = vmax.f32 %v2430, 0.0
        %v2580 = vmax.f32 %v2434, 0.0
        %v2581 = vmax.f32 %v2436, 0.0
        %v2582 = vmax.f32 %v2438, 0.0
        %v2583 = vmax.f32 %v2440, 0.0
        %v2584 = vmax.f32 %v2444, 0.0
        %v2585 = vmax.f32 %v2446, 0.0
        %v2586 = vmax.f32 %v2448, 0.0
        %v2587 = vmax.f32 %v2450, 0.0
        %v2588 = vmax.f32 %v2454, 0.0
        %v2589 = vmax.f32 %v2456, 0.0
        %v2590 = vmax.f32 %v2458, 0.0
        %v2591 = vmax.f32 %v2460, 0.0
        %v2592 = vmax.f32 %v2464, 0.0
        %v2593 = vmax.f32 %v2466, 0.0
        %v2594 = vmax.f32 %v2468, 0.0
        %v2595 = vmax.f32 %v2470, 0.0
        %v2596 = vmax.f32 %v2474, 0.0
        %v2597 = vmax.f32 %v2476, 0.0
        %v2598 = vmax.f32 %v2478, 0.0
        %v2599 = vmax.f32 %v2480, 0.0
        %v2600 = vmax.f32 %v2484, 0.0
        %v2601 = vmax.f32 %v2486, 0.0
        %v2602 = vmax.f32 %v2488, 0.0
        %v2603 = vmax.f32 %v2490, 0.0
        %v2604 = vmax.f32 %v2494, 0.0
        %v2605 = vmax.f32 %v2496, 0.0
        %v2606 = vmax.f32 %v2498, 0.0
        %v2607 = vmax.f32 %v2500, 0.0
        %v2608 = vmax.f32 %v2504, 0.0
        %v2609 = vmax.f32 %v2506, 0.0
        %v2610 = vmax.f32 %v2508, 0.0
        %v2611 = vmax.f32 %v2510, 0.0
        %v2612 = vmax.f32 %v2514, 0.0
        %v2613 = vmax.f32 %v2516, 0.0
        %v2614 = vmax.f32 %v2518, 0.0
        %v2615 = vmax.f32 %v2520, 0.0
        %v2616 = vmax.f32 %v2524, 0.0
        %v2617 = vmax.f32 %v2526, 0.0
        %v2618 = vmax.f32 %v2528, 0.0
        %v2619 = vmax.f32 %v2530, 0.0
        %v2620 = vmax.f32 %v2534, 0.0
        %v2621 = vmax.f32 %v2536, 0.0
        %v2622 = vmax.f32 %v2538, 0.0
        %v2623 = vmax.f32 %v2540, 0.0
        %v2624 = vmax.f32 %v2544, 0.0
        %v2625 = vmax.f32 %v2546, 0.0
        %v2626 = vmax.f32 %v2548, 0.0
        %v2627 = vmax.f32 %v2550, 0.0
        %v2628 = vmax.f32 %v2554, 0.0
        %v2629 = vmax.f32 %v2556, 0.0
        %v2630 = vmax.f32 %v2558, 0.0
        %v2631 = vmax.f32 %v2560, 0.0
        %v2632 = vmax.f32 %v2564, 0.0
        %v2633 = vmax.f32 %v2566, 0.0
        %v2634 = vmax.f32 %v2568, 0.0
        %v2635 = vmax.f32 %v2570, 0.0
        %s2636 = scalar_lea.vmem %s1, 4
        %v2637 = vld [vmem:[%s2636] sm:$0xf]
        %s2638 = scalar_lea.vmem [#allocation2], 1024
        %v2639 = vld [vmem:[%s2638] sm:$0xff]
        %v2640 = vld [vmem:[%s2638 + $0x8] sm:$0xff]
        %v2641 = vld [vmem:[%s2638 + $0x10] sm:$0xff]
        %v2642 = vld [vmem:[%s2638 + $0x18] sm:$0xff]
        %v2643 = vld [vmem:[%s2638 + $0x20] sm:$0xff]
        %v2644 = vld [vmem:[%s2638 + $0x28] sm:$0xff]
        %v2645 = vld [vmem:[%s2638 + $0x30] sm:$0xff]
        %v2646 = vld [vmem:[%s2638 + $0x38] sm:$0xff]
        %v2647 = vld [vmem:[%s2638 + $0x40] sm:$0xff]
        %v2648 = vld [vmem:[%s2638 + $0x48] sm:$0xff]
        %v2649 = vld [vmem:[%s2638 + $0x50] sm:$0xff]
        %v2650 = vld [vmem:[%s2638 + $0x58] sm:$0xff]
        %v2651 = vld [vmem:[%s2638 + $0x60] sm:$0xff]
        %v2652 = vld [vmem:[%s2638 + $0x68] sm:$0xff]
        %v2653 = vld [vmem:[%s2638 + $0x70] sm:$0xff]
        %v2654 = vld [vmem:[%s2638 + $0x78] sm:$0xff]
        %v2655 = vld [vmem:[%s2638 + $0x80] sm:$0xff]
        %v2656 = vld [vmem:[%s2638 + $0x88] sm:$0xff]
        %v2657 = vld [vmem:[%s2638 + $0x90] sm:$0xff]
        %v2658 = vld [vmem:[%s2638 + $0x98] sm:$0xff]
        %v2659 = vld [vmem:[%s2638 + $0xa0] sm:$0xff]
        %v2660 = vld [vmem:[%s2638 + $0xa8] sm:$0xff]
        %v2661 = vld [vmem:[%s2638 + $0xb0] sm:$0xff]
        %v2662 = vld [vmem:[%s2638 + $0xb8] sm:$0xff]
        %v2663 = vld [vmem:[%s2638 + $0xc0] sm:$0xff]
        %v2664 = vld [vmem:[%s2638 + $0xc8] sm:$0xff]
        %v2665 = vld [vmem:[%s2638 + $0xd0] sm:$0xff]
        %v2666 = vld [vmem:[%s2638 + $0xd8] sm:$0xff]
        %v2667 = vld [vmem:[%s2638 + $0xe0] sm:$0xff]
        %v2668 = vld [vmem:[%s2638 + $0xe8] sm:$0xff]
        %v2669 = vld [vmem:[%s2638 + $0xf0] sm:$0xff]
        %v2670 = vld [vmem:[%s2638 + $0xf8] sm:$0xff]
        %s2671 = scalar_lea.vmem %s3, 5
        %v2672 = vld [vmem:[%s2671] ss:$8 sm:$0x3]
        %v2673 = vpack.c.bf16 %v2574, %v2572
        %v2674 = vpack.c.bf16 %v2575, %v2573
        %v2675 = vpack.c.bf16 %v2578, %v2576
        %v2676 = vpack.c.bf16 %v2579, %v2577
        %v2677 = vpack.c.bf16 %v2582, %v2580
        %v2678 = vpack.c.bf16 %v2583, %v2581
        %v2679 = vpack.c.bf16 %v2586, %v2584
        %v2680 = vpack.c.bf16 %v2587, %v2585
        %v2681 = vpack.c.bf16 %v2590, %v2588
        %v2682 = vpack.c.bf16 %v2591, %v2589
        %v2683 = vpack.c.bf16 %v2594, %v2592
        %v2684 = vpack.c.bf16 %v2595, %v2593
        %v2685 = vpack.c.bf16 %v2598, %v2596
        %v2686 = vpack.c.bf16 %v2599, %v2597
        %v2687 = vpack.c.bf16 %v2602, %v2600
        %v2688 = vpack.c.bf16 %v2603, %v2601
        %v2689 = vpack.c.bf16 %v2606, %v2604
        %v2690 = vpack.c.bf16 %v2607, %v2605
        %v2691 = vpack.c.bf16 %v2610, %v2608
        %v2692 = vpack.c.bf16 %v2611, %v2609
        %v2693 = vpack.c.bf16 %v2614, %v2612
        %v2694 = vpack.c.bf16 %v2615, %v2613
        %v2695 = vpack.c.bf16 %v2618, %v2616
        %v2696 = vpack.c.bf16 %v2619, %v2617
        %v2697 = vpack.c.bf16 %v2622, %v2620
        %v2698 = vpack.c.bf16 %v2623, %v2621
        %v2699 = vpack.c.bf16 %v2626, %v2624
        %v2700 = vpack.c.bf16 %v2627, %v2625
        %v2701 = vpack.c.bf16 %v2630, %v2628
        %v2702 = vpack.c.bf16 %v2631, %v2629
        %v2703 = vpack.c.bf16 %v2634, %v2632
        %v2704 = vpack.c.bf16 %v2635, %v2633
        %v2706 = vlaneseq
        %v2707 = vshrl.u32 %v2706, 7
        %v2708 = vsub.s32 0, %v2707
        %v2709 = vrot.slane %v2672, %v2708
        %v2710 = vlaneseq
        %v2711 = vshrl.u32 %v2710, 7
        %v2712 = vsub.s32 1, %v2711
        %v2713 = vrot.slane %v2672, %v2712
        %v2748 = vunpack.c.l.b16 %v2639
        %v2749 = vunpack.c.h.b16 %v2639
        %v2750 = vunpack.c.l.b16 %v2640
        %v2751 = vunpack.c.h.b16 %v2640
        %v2752 = vunpack.c.l.b16 %v2641
        %v2753 = vunpack.c.h.b16 %v2641
        %v2754 = vunpack.c.l.b16 %v2642
        %v2755 = vunpack.c.h.b16 %v2642
        %v2756 = vunpack.c.l.b16 %v2643
        %v2757 = vunpack.c.h.b16 %v2643
        %v2758 = vunpack.c.l.b16 %v2644
        %v2759 = vunpack.c.h.b16 %v2644
        %v2760 = vunpack.c.l.b16 %v2645
        %v2761 = vunpack.c.h.b16 %v2645
        %v2762 = vunpack.c.l.b16 %v2646
        %v2763 = vunpack.c.h.b16 %v2646
        %v2764 = vunpack.c.l.b16 %v2647
        %v2765 = vunpack.c.h.b16 %v2647
        %v2766 = vunpack.c.l.b16 %v2648
        %v2767 = vunpack.c.h.b16 %v2648
        %v2768 = vunpack.c.l.b16 %v2649
        %v2769 = vunpack.c.h.b16 %v2649
        %v2770 = vunpack.c.l.b16 %v2650
        %v2771 = vunpack.c.h.b16 %v2650
        %v2772 = vunpack.c.l.b16 %v2651
        %v2773 = vunpack.c.h.b16 %v2651
        %v2774 = vunpack.c.l.b16 %v2652
        %v2775 = vunpack.c.h.b16 %v2652
        %v2776 = vunpack.c.l.b16 %v2653
        %v2777 = vunpack.c.h.b16 %v2653
        %v2778 = vunpack.c.l.b16 %v2654
        %v2779 = vunpack.c.h.b16 %v2654
        %v2780 = vunpack.c.l.b16 %v2655
        %v2781 = vunpack.c.h.b16 %v2655
        %v2782 = vunpack.c.l.b16 %v2656
        %v2783 = vunpack.c.h.b16 %v2656
        %v2784 = vunpack.c.l.b16 %v2657
        %v2785 = vunpack.c.h.b16 %v2657
        %v2786 = vunpack.c.l.b16 %v2658
        %v2787 = vunpack.c.h.b16 %v2658
        %v2788 = vunpack.c.l.b16 %v2659
        %v2789 = vunpack.c.h.b16 %v2659
        %v2790 = vunpack.c.l.b16 %v2660
        %v2791 = vunpack.c.h.b16 %v2660
        %v2792 = vunpack.c.l.b16 %v2661
        %v2793 = vunpack.c.h.b16 %v2661
        %v2794 = vunpack.c.l.b16 %v2662
        %v2795 = vunpack.c.h.b16 %v2662
        %v2796 = vunpack.c.l.b16 %v2663
        %v2797 = vunpack.c.h.b16 %v2663
        %v2798 = vunpack.c.l.b16 %v2664
        %v2799 = vunpack.c.h.b16 %v2664
        %v2800 = vunpack.c.l.b16 %v2665
        %v2801 = vunpack.c.h.b16 %v2665
        %v2802 = vunpack.c.l.b16 %v2666
        %v2803 = vunpack.c.h.b16 %v2666
        %v2804 = vunpack.c.l.b16 %v2667
        %v2805 = vunpack.c.h.b16 %v2667
        %v2806 = vunpack.c.l.b16 %v2668
        %v2807 = vunpack.c.h.b16 %v2668
        %v2808 = vunpack.c.l.b16 %v2669
        %v2809 = vunpack.c.h.b16 %v2669
        %v2810 = vunpack.c.l.b16 %v2670
        %v2811 = vunpack.c.h.b16 %v2670
        %v2812 = vpack.c.b16 %v2750, %v2748
        %v2813 = vpack.c.b16 %v2751, %v2749
        %v2814 = vpack.c.b16 %v2754, %v2752
        %v2815 = vpack.c.b16 %v2755, %v2753
        %v2816 = vpack.c.b16 %v2758, %v2756
        %v2817 = vpack.c.b16 %v2759, %v2757
        %v2818 = vpack.c.b16 %v2762, %v2760
        %v2819 = vpack.c.b16 %v2763, %v2761
        %v2820 = vpack.c.b16 %v2766, %v2764
        %v2821 = vpack.c.b16 %v2767, %v2765
        %v2822 = vpack.c.b16 %v2770, %v2768
        %v2823 = vpack.c.b16 %v2771, %v2769
        %v2824 = vpack.c.b16 %v2774, %v2772
        %v2825 = vpack.c.b16 %v2775, %v2773
        %v2826 = vpack.c.b16 %v2778, %v2776
        %v2827 = vpack.c.b16 %v2779, %v2777
        %v2828 = vpack.c.b16 %v2782, %v2780
        %v2829 = vpack.c.b16 %v2783, %v2781
        %v2830 = vpack.c.b16 %v2786, %v2784
        %v2831 = vpack.c.b16 %v2787, %v2785
        %v2832 = vpack.c.b16 %v2790, %v2788
        %v2833 = vpack.c.b16 %v2791, %v2789
        %v2834 = vpack.c.b16 %v2794, %v2792
        %v2835 = vpack.c.b16 %v2795, %v2793
        %v2836 = vpack.c.b16 %v2798, %v2796
        %v2837 = vpack.c.b16 %v2799, %v2797
        %v2838 = vpack.c.b16 %v2802, %v2800
        %v2839 = vpack.c.b16 %v2803, %v2801
        %v2840 = vpack.c.b16 %v2806, %v2804
        %v2841 = vpack.c.b16 %v2807, %v2805
        %v2842 = vpack.c.b16 %v2810, %v2808
        %v2843 = vpack.c.b16 %v2811, %v2809
        %2876 = vmatprep.subr.bf16.mxu0 %v2813
        %2877 = vmatpush1.bf16.msra.mxu0 %v2812
        %2878 = vmatprep.subr.bf16.mxu0 %v2815
        %2879 = vmatpush1.bf16.msra.mxu0 %v2814
        %2880 = vmatprep.subr.bf16.mxu0 %v2817
        %2881 = vmatpush1.bf16.msra.mxu0 %v2816
        %2882 = vmatprep.subr.bf16.mxu0 %v2819
        %2883 = vmatpush1.bf16.msra.mxu0 %v2818
        %2884 = vmatprep.subr.bf16.mxu0 %v2821
        %2885 = vmatpush1.bf16.msra.mxu0 %v2820
        %2886 = vmatprep.subr.bf16.mxu0 %v2823
        %2887 = vmatpush1.bf16.msra.mxu0 %v2822
        %2888 = vmatprep.subr.bf16.mxu0 %v2825
        %2889 = vmatpush1.bf16.msra.mxu0 %v2824
        %2890 = vmatprep.subr.bf16.mxu0 %v2827
        %2891 = vmatpush1.bf16.msra.mxu0 %v2826
        %2892 = vmatprep.subr.bf16.mxu0 %v2829
        %2893 = vmatpush1.bf16.msra.mxu0 %v2828
        %2894 = vmatprep.subr.bf16.mxu0 %v2831
        %2895 = vmatpush1.bf16.msra.mxu0 %v2830
        %2896 = vmatprep.subr.bf16.mxu0 %v2833
        %2897 = vmatpush1.bf16.msra.mxu0 %v2832
        %2898 = vmatprep.subr.bf16.mxu0 %v2835
        %2899 = vmatpush1.bf16.msra.mxu0 %v2834
        %2900 = vmatprep.subr.bf16.mxu0 %v2837
        %2901 = vmatpush1.bf16.msra.mxu0 %v2836
        %2902 = vmatprep.subr.bf16.mxu0 %v2839
        %2903 = vmatpush1.bf16.msra.mxu0 %v2838
        %2904 = vmatprep.subr.bf16.mxu0 %v2841
        %2905 = vmatpush1.bf16.msra.mxu0 %v2840
        %2906 = vmatprep.subr.bf16.mxu0 %v2843
        %2907 = vmatpush1.bf16.msra.mxu0 %v2842
        %2908 = vmatprep.mubr.bf16.mxu0 %v2674
        %2909 = vmatmul.mubr.bf16.gmra.mrb[0].mxu0 %v2673
        %v2910 = vpop.f32.mrb[0].mxu0
        %v2911 = vadd.f32 %v2709, %v2910
        %v2912 = vpop.f32.mrb[0].mxu0
        %v2913 = vadd.f32 %v2713, %v2912
        %v2914 = vpop.f32.mrb[0].mxu0
        %v2915 = vadd.f32 %v2709, %v2914
        %v2916 = vpop.f32.mrb[0].mxu0
        %v2917 = vadd.f32 %v2713, %v2916
        %2918 = vmatprep.mubr.bf16.mxu0 %v2676
        %2919 = vmatmul.mubr.bf16.gmra.mrb[0].mxu0 %v2675
        %v2920 = vpop.f32.mrb[0].mxu0
        %v2921 = vadd.f32 %v2709, %v2920
        %v2922 = vpop.f32.mrb[0].mxu0
        %v2923 = vadd.f32 %v2713, %v2922
        %v2924 = vpop.f32.mrb[0].mxu0
        %v2925 = vadd.f32 %v2709, %v2924
        %v2926 = vpop.f32.mrb[0].mxu0
        %v2927 = vadd.f32 %v2713, %v2926
        %2928 = vmatprep.mubr.bf16.mxu0 %v2678
        %2929 = vmatmul.mubr.bf16.gmra.mrb[0].mxu0 %v2677
        %v2930 = vpop.f32.mrb[0].mxu0
        %v2931 = vadd.f32 %v2709, %v2930
        %v2932 = vpop.f32.mrb[0].mxu0
        %v2933 = vadd.f32 %v2713, %v2932
        %v2934 = vpop.f32.mrb[0].mxu0
        %v2935 = vadd.f32 %v2709, %v2934
        %v2936 = vpop.f32.mrb[0].mxu0
        %v2937 = vadd.f32 %v2713, %v2936
        %2938 = vmatprep.mubr.bf16.mxu0 %v2680
        %2939 = vmatmul.mubr.bf16.gmra.mrb[0].mxu0 %v2679
        %v2940 = vpop.f32.mrb[0].mxu0
        %v2941 = vadd.f32 %v2709, %v2940
        %v2942 = vpop.f32.mrb[0].mxu0
        %v2943 = vadd.f32 %v2713, %v2942
        %v2944 = vpop.f32.mrb[0].mxu0
        %v2945 = vadd.f32 %v2709, %v2944
        %v2946 = vpop.f32.mrb[0].mxu0
        %v2947 = vadd.f32 %v2713, %v2946
        %2948 = vmatprep.mubr.bf16.mxu0 %v2682
        %2949 = vmatmul.mubr.bf16.gmra.mrb[0].mxu0 %v2681
        %v2950 = vpop.f32.mrb[0].mxu0
        %v2951 = vadd.f32 %v2709, %v2950
        %v2952 = vpop.f32.mrb[0].mxu0
        %v2953 = vadd.f32 %v2713, %v2952
        %v2954 = vpop.f32.mrb[0].mxu0
        %v2955 = vadd.f32 %v2709, %v2954
        %v2956 = vpop.f32.mrb[0].mxu0
        %v2957 = vadd.f32 %v2713, %v2956
        %2958 = vmatprep.mubr.bf16.mxu0 %v2684
        %2959 = vmatmul.mubr.bf16.gmra.mrb[0].mxu0 %v2683
        %v2960 = vpop.f32.mrb[0].mxu0
        %v2961 = vadd.f32 %v2709, %v2960
        %v2962 = vpop.f32.mrb[0].mxu0
        %v2963 = vadd.f32 %v2713, %v2962
        %v2964 = vpop.f32.mrb[0].mxu0
        %v2965 = vadd.f32 %v2709, %v2964
        %v2966 = vpop.f32.mrb[0].mxu0
        %v2967 = vadd.f32 %v2713, %v2966
        %2968 = vmatprep.mubr.bf16.mxu0 %v2686
        %2969 = vmatmul.mubr.bf16.gmra.mrb[0].mxu0 %v2685
        %v2970 = vpop.f32.mrb[0].mxu0
        %v2971 = vadd.f32 %v2709, %v2970
        %v2972 = vpop.f32.mrb[0].mxu0
        %v2973 = vadd.f32 %v2713, %v2972
        %v2974 = vpop.f32.mrb[0].mxu0
        %v2975 = vadd.f32 %v2709, %v2974
        %v2976 = vpop.f32.mrb[0].mxu0
        %v2977 = vadd.f32 %v2713, %v2976
        %2978 = vmatprep.mubr.bf16.mxu0 %v2688
        %2979 = vmatmul.mubr.bf16.gmra.mrb[0].mxu0 %v2687
        %v2980 = vpop.f32.mrb[0].mxu0
        %v2981 = vadd.f32 %v2709, %v2980
        %v2982 = vpop.f32.mrb[0].mxu0
        %v2983 = vadd.f32 %v2713, %v2982
        %v2984 = vpop.f32.mrb[0].mxu0
        %v2985 = vadd.f32 %v2709, %v2984
        %v2986 = vpop.f32.mrb[0].mxu0
        %v2987 = vadd.f32 %v2713, %v2986
        %2988 = vmatprep.mubr.bf16.mxu0 %v2690
        %2989 = vmatmul.mubr.bf16.gmra.mrb[0].mxu0 %v2689
        %v2990 = vpop.f32.mrb[0].mxu0
        %v2991 = vadd.f32 %v2709, %v2990
        %v2992 = vpop.f32.mrb[0].mxu0
        %v2993 = vadd.f32 %v2713, %v2992
        %v2994 = vpop.f32.mrb[0].mxu0
        %v2995 = vadd.f32 %v2709, %v2994
        %v2996 = vpop.f32.mrb[0].mxu0
        %v2997 = vadd.f32 %v2713, %v2996
        %2998 = vmatprep.mubr.bf16.mxu0 %v2692
        %2999 = vmatmul.mubr.bf16.gmra.mrb[0].mxu0 %v2691
        %v3000 = vpop.f32.mrb[0].mxu0
        %v3001 = vadd.f32 %v2709, %v3000
        %v3002 = vpop.f32.mrb[0].mxu0
        %v3003 = vadd.f32 %v2713, %v3002
        %v3004 = vpop.f32.mrb[0].mxu0
        %v3005 = vadd.f32 %v2709, %v3004
        %v3006 = vpop.f32.mrb[0].mxu0
        %v3007 = vadd.f32 %v2713, %v3006
        %3008 = vmatprep.mubr.bf16.mxu0 %v2694
        %3009 = vmatmul.mubr.bf16.gmra.mrb[0].mxu0 %v2693
        %v3010 = vpop.f32.mrb[0].mxu0
        %v3011 = vadd.f32 %v2709, %v3010
        %v3012 = vpop.f32.mrb[0].mxu0
        %v3013 = vadd.f32 %v2713, %v3012
        %v3014 = vpop.f32.mrb[0].mxu0
        %v3015 = vadd.f32 %v2709, %v3014
        %v3016 = vpop.f32.mrb[0].mxu0
        %v3017 = vadd.f32 %v2713, %v3016
        %3018 = vmatprep.mubr.bf16.mxu0 %v2696
        %3019 = vmatmul.mubr.bf16.gmra.mrb[0].mxu0 %v2695
        %v3020 = vpop.f32.mrb[0].mxu0
        %v3021 = vadd.f32 %v2709, %v3020
        %v3022 = vpop.f32.mrb[0].mxu0
        %v3023 = vadd.f32 %v2713, %v3022
        %v3024 = vpop.f32.mrb[0].mxu0
        %v3025 = vadd.f32 %v2709, %v3024
        %v3026 = vpop.f32.mrb[0].mxu0
        %v3027 = vadd.f32 %v2713, %v3026
        %3028 = vmatprep.mubr.bf16.mxu0 %v2698
        %3029 = vmatmul.mubr.bf16.gmra.mrb[0].mxu0 %v2697
        %v3030 = vpop.f32.mrb[0].mxu0
        %v3031 = vadd.f32 %v2709, %v3030
        %v3032 = vpop.f32.mrb[0].mxu0
        %v3033 = vadd.f32 %v2713, %v3032
        %v3034 = vpop.f32.mrb[0].mxu0
        %v3035 = vadd.f32 %v2709, %v3034
        %v3036 = vpop.f32.mrb[0].mxu0
        %v3037 = vadd.f32 %v2713, %v3036
        %3038 = vmatprep.mubr.bf16.mxu0 %v2700
        %3039 = vmatmul.mubr.bf16.gmra.mrb[0].mxu0 %v2699
        %v3040 = vpop.f32.mrb[0].mxu0
        %v3041 = vadd.f32 %v2709, %v3040
        %v3042 = vpop.f32.mrb[0].mxu0
        %v3043 = vadd.f32 %v2713, %v3042
        %v3044 = vpop.f32.mrb[0].mxu0
        %v3045 = vadd.f32 %v2709, %v3044
        %v3046 = vpop.f32.mrb[0].mxu0
        %v3047 = vadd.f32 %v2713, %v3046
        %3048 = vmatprep.mubr.bf16.mxu0 %v2702
        %3049 = vmatmul.mubr.bf16.gmra.mrb[0].mxu0 %v2701
        %v3050 = vpop.f32.mrb[0].mxu0
        %v3051 = vadd.f32 %v2709, %v3050
        %v3052 = vpop.f32.mrb[0].mxu0
        %v3053 = vadd.f32 %v2713, %v3052
        %v3054 = vpop.f32.mrb[0].mxu0
        %v3055 = vadd.f32 %v2709, %v3054
        %v3056 = vpop.f32.mrb[0].mxu0
        %v3057 = vadd.f32 %v2713, %v3056
        %3058 = vmatprep.mubr.bf16.mxu0 %v2704
        %3059 = vmatmul.mubr.bf16.gmra.mrb[0].mxu0 %v2703
        %v3060 = vpop.f32.mrb[0].mxu0
        %v3061 = vadd.f32 %v2709, %v3060
        %v3062 = vpop.f32.mrb[0].mxu0
        %v3063 = vadd.f32 %v2713, %v3062
        %v3064 = vpop.f32.mrb[0].mxu0
        %v3065 = vadd.f32 %v2709, %v3064
        %v3066 = vpop.f32.mrb[0].mxu0
        %v3067 = vadd.f32 %v2713, %v3066
        %3068 = vdwg.mxu0
        %v3071 = vunpack.c.l.s4 1983009808
        %v3072 = vunpack.c.0.s8 %v3071
        %v3073 = vlaneseq
        %v3074 = vshrl.u32 %v3073, 7
        %v3075 = vsub.s32 %v3072, %v3074
        %v3076 = vrot.slane %v2637, %v3075
        %v3077 = vcombine.high %v3076, %v3076
        %v3079 = vand.u32 %v3076, %v393
        %v3082 = vand.u32 %v3077, %v393
        %3084 = vmatprep.subr.bf16.mxu0 %v3082
        %3085 = vmatpush1.bf16.msra.mxu0 %v3079
        %3086 = vmatprep.subr.bf16.mxu0 0
        %3087 = vmatpush1.bf16.msra.mxu0 0
        %3088 = vmatprep.subr.bf16.mxu0 0
        %3089 = vmatpush1.bf16.msra.mxu0 0
        %3090 = vmatprep.subr.bf16.mxu0 0
        %3091 = vmatpush1.bf16.msra.mxu0 0
        %3092 = vmatprep.subr.bf16.mxu0 0
        %3093 = vmatpush1.bf16.msra.mxu0 0
        %3094 = vmatprep.subr.bf16.mxu0 0
        %3095 = vmatpush1.bf16.msra.mxu0 0
        %3096 = vmatprep.subr.bf16.mxu0 0
        %3097 = vmatpush1.bf16.msra.mxu0 0
        %3098 = vmatprep.subr.bf16.mxu0 0
        %3099 = vmatpush1.bf16.msra.mxu0 0
        %3100 = vmatprep.subr.bf16.mxu0 0
        %3101 = vmatpush1.bf16.msra.mxu0 0
        %3102 = vmatprep.subr.bf16.mxu0 0
        %3103 = vmatpush1.bf16.msra.mxu0 0
        %3104 = vmatprep.subr.bf16.mxu0 0
        %3105 = vmatpush1.bf16.msra.mxu0 0
        %3106 = vmatprep.subr.bf16.mxu0 0
        %3107 = vmatpush1.bf16.msra.mxu0 0
        %3108 = vmatprep.subr.bf16.mxu0 0
        %3109 = vmatpush1.bf16.msra.mxu0 0
        %3110 = vmatprep.subr.bf16.mxu0 0
        %3111 = vmatpush1.bf16.msra.mxu0 0
        %3112 = vmatprep.subr.bf16.mxu0 0
        %3113 = vmatpush1.bf16.msra.mxu0 0
        %3114 = vmatprep.subr.bf16.mxu0 0
        %3115 = vmatpush1.bf16.msra.mxu0 0
        %3116 = vmatprep.mubr.bf16.mxu0 0
        %3117 = vmatmul.mubr.bf16.gmra.mrb[0].mxu0 %v343
        %v3118 = vpop.f32.mrb[0].mxu0
        %v3119 = vadd.f32 %v2911, %v3118
        %v3120 = vpop.f32.mrb[0].mxu0
        %v3121 = vadd.f32 %v2913, %v3120
        %v3122 = vpop.f32.mrb[0].mxu0
        %v3123 = vadd.f32 %v2915, %v3122
        %v3124 = vpop.f32.mrb[0].mxu0
        %v3125 = vadd.f32 %v2917, %v3124
        %3126 = vmatprep.mubr.bf16.mxu0 0
        %3127 = vmatmul.mubr.bf16.gmra.mrb[0].mxu0 %v346
        %v3128 = vpop.f32.mrb[0].mxu0
        %v3129 = vadd.f32 %v2921, %v3128
        %v3130 = vpop.f32.mrb[0].mxu0
        %v3131 = vadd.f32 %v2923, %v3130
        %v3132 = vpop.f32.mrb[0].mxu0
        %v3133 = vadd.f32 %v2925, %v3132
        %v3134 = vpop.f32.mrb[0].mxu0
        %v3135 = vadd.f32 %v2927, %v3134
        %3136 = vmatprep.mubr.bf16.mxu0 0
        %3137 = vmatmul.mubr.bf16.gmra.mrb[0].mxu0 %v349
        %v3138 = vpop.f32.mrb[0].mxu0
        %v3139 = vadd.f32 %v2931, %v3138
        %v3140 = vpop.f32.mrb[0].mxu0
        %v3141 = vadd.f32 %v2933, %v3140
        %v3142 = vpop.f32.mrb[0].mxu0
        %v3143 = vadd.f32 %v2935, %v3142
        %v3144 = vpop.f32.mrb[0].mxu0
        %v3145 = vadd.f32 %v2937, %v3144
        %3146 = vmatprep.mubr.bf16.mxu0 0
        %3147 = vmatmul.mubr.bf16.gmra.mrb[0].mxu0 %v352
        %v3148 = vpop.f32.mrb[0].mxu0
        %v3149 = vadd.f32 %v2941, %v3148
        %v3150 = vpop.f32.mrb[0].mxu0
        %v3151 = vadd.f32 %v2943, %v3150
        %v3152 = vpop.f32.mrb[0].mxu0
        %v3153 = vadd.f32 %v2945, %v3152
        %v3154 = vpop.f32.mrb[0].mxu0
        %v3155 = vadd.f32 %v2947, %v3154
        %3156 = vmatprep.mubr.bf16.mxu0 0
        %3157 = vmatmul.mubr.bf16.gmra.mrb[0].mxu0 %v355
        %v3158 = vpop.f32.mrb[0].mxu0
        %v3159 = vadd.f32 %v2951, %v3158
        %v3160 = vpop.f32.mrb[0].mxu0
        %v3161 = vadd.f32 %v2953, %v3160
        %v3162 = vpop.f32.mrb[0].mxu0
        %v3163 = vadd.f32 %v2955, %v3162
        %v3164 = vpop.f32.mrb[0].mxu0
        %v3165 = vadd.f32 %v2957, %v3164
        %3166 = vmatprep.mubr.bf16.mxu0 0
        %3167 = vmatmul.mubr.bf16.gmra.mrb[0].mxu0 %v358
        %v3168 = vpop.f32.mrb[0].mxu0
        %v3169 = vadd.f32 %v2961, %v3168
        %v3170 = vpop.f32.mrb[0].mxu0
        %v3171 = vadd.f32 %v2963, %v3170
        %v3172 = vpop.f32.mrb[0].mxu0
        %v3173 = vadd.f32 %v2965, %v3172
        %v3174 = vpop.f32.mrb[0].mxu0
        %v3175 = vadd.f32 %v2967, %v3174
        %3176 = vmatprep.mubr.bf16.mxu0 0
        %3177 = vmatmul.mubr.bf16.gmra.mrb[0].mxu0 %v361
        %v3178 = vpop.f32.mrb[0].mxu0
        %v3179 = vadd.f32 %v2971, %v3178
        %v3180 = vpop.f32.mrb[0].mxu0
        %v3181 = vadd.f32 %v2973, %v3180
        %v3182 = vpop.f32.mrb[0].mxu0
        %v3183 = vadd.f32 %v2975, %v3182
        %v3184 = vpop.f32.mrb[0].mxu0
        %v3185 = vadd.f32 %v2977, %v3184
        %3186 = vmatprep.mubr.bf16.mxu0 0
        %3187 = vmatmul.mubr.bf16.gmra.mrb[0].mxu0 %v364
        %v3188 = vpop.f32.mrb[0].mxu0
        %v3189 = vadd.f32 %v2981, %v3188
        %v3190 = vpop.f32.mrb[0].mxu0
        %v3191 = vadd.f32 %v2983, %v3190
        %v3192 = vpop.f32.mrb[0].mxu0
        %v3193 = vadd.f32 %v2985, %v3192
        %v3194 = vpop.f32.mrb[0].mxu0
        %v3195 = vadd.f32 %v2987, %v3194
        %3196 = vmatprep.mubr.bf16.mxu0 0
        %3197 = vmatmul.mubr.bf16.gmra.mrb[0].mxu0 %v367
        %v3198 = vpop.f32.mrb[0].mxu0
        %v3199 = vadd.f32 %v2991, %v3198
        %v3200 = vpop.f32.mrb[0].mxu0
        %v3201 = vadd.f32 %v2993, %v3200
        %v3202 = vpop.f32.mrb[0].mxu0
        %v3203 = vadd.f32 %v2995, %v3202
        %v3204 = vpop.f32.mrb[0].mxu0
        %v3205 = vadd.f32 %v2997, %v3204
        %3206 = vmatprep.mubr.bf16.mxu0 0
        %3207 = vmatmul.mubr.bf16.gmra.mrb[0].mxu0 %v370
        %v3208 = vpop.f32.mrb[0].mxu0
        %v3209 = vadd.f32 %v3001, %v3208
        %v3210 = vpop.f32.mrb[0].mxu0
        %v3211 = vadd.f32 %v3003, %v3210
        %v3212 = vpop.f32.mrb[0].mxu0
        %v3213 = vadd.f32 %v3005, %v3212
        %v3214 = vpop.f32.mrb[0].mxu0
        %v3215 = vadd.f32 %v3007, %v3214
        %3216 = vmatprep.mubr.bf16.mxu0 0
        %3217 = vmatmul.mubr.bf16.gmra.mrb[0].mxu0 %v373
        %v3218 = vpop.f32.mrb[0].mxu0
        %v3219 = vadd.f32 %v3011, %v3218
        %v3220 = vpop.f32.mrb[0].mxu0
        %v3221 = vadd.f32 %v3013, %v3220
        %v3222 = vpop.f32.mrb[0].mxu0
        %v3223 = vadd.f32 %v3015, %v3222
        %v3224 = vpop.f32.mrb[0].mxu0
        %v3225 = vadd.f32 %v3017, %v3224
        %3226 = vmatprep.mubr.bf16.mxu0 0
        %3227 = vmatmul.mubr.bf16.gmra.mrb[0].mxu0 %v376
        %v3228 = vpop.f32.mrb[0].mxu0
        %v3229 = vadd.f32 %v3021, %v3228
        %v3230 = vpop.f32.mrb[0].mxu0
        %v3231 = vadd.f32 %v3023, %v3230
        %v3232 = vpop.f32.mrb[0].mxu0
        %v3233 = vadd.f32 %v3025, %v3232
        %v3234 = vpop.f32.mrb[0].mxu0
        %v3235 = vadd.f32 %v3027, %v3234
        %3236 = vmatprep.mubr.bf16.mxu0 0
        %3237 = vmatmul.mubr.bf16.gmra.mrb[0].mxu0 %v379
        %v3238 = vpop.f32.mrb[0].mxu0
        %v3239 = vadd.f32 %v3031, %v3238
        %v3240 = vpop.f32.mrb[0].mxu0
        %v3241 = vadd.f32 %v3033, %v3240
        %v3242 = vpop.f32.mrb[0].mxu0
        %v3243 = vadd.f32 %v3035, %v3242
        %v3244 = vpop.f32.mrb[0].mxu0
        %v3245 = vadd.f32 %v3037, %v3244
        %3246 = vmatprep.mubr.bf16.mxu0 0
        %3247 = vmatmul.mubr.bf16.gmra.mrb[0].mxu0 %v382
        %v3248 = vpop.f32.mrb[0].mxu0
        %v3249 = vadd.f32 %v3041, %v3248
        %v3250 = vpop.f32.mrb[0].mxu0
        %v3251 = vadd.f32 %v3043, %v3250
        %v3252 = vpop.f32.mrb[0].mxu0
        %v3253 = vadd.f32 %v3045, %v3252
        %v3254 = vpop.f32.mrb[0].mxu0
        %v3255 = vadd.f32 %v3047, %v3254
        %3256 = vmatprep.mubr.bf16.mxu0 0
        %3257 = vmatmul.mubr.bf16.gmra.mrb[0].mxu0 %v385
        %v3258 = vpop.f32.mrb[0].mxu0
        %v3259 = vadd.f32 %v3051, %v3258
        %v3260 = vpop.f32.mrb[0].mxu0
        %v3261 = vadd.f32 %v3053, %v3260
        %v3262 = vpop.f32.mrb[0].mxu0
        %v3263 = vadd.f32 %v3055, %v3262
        %v3264 = vpop.f32.mrb[0].mxu0
        %v3265 = vadd.f32 %v3057, %v3264
        %3266 = vmatprep.mubr.bf16.mxu0 0
        %3267 = vmatmul.mubr.bf16.gmra.mrb[0].mxu0 %v388
        %v3268 = vpop.f32.mrb[0].mxu0
        %v3269 = vadd.f32 %v3061, %v3268
        %v3270 = vpop.f32.mrb[0].mxu0
        %v3271 = vadd.f32 %v3063, %v3270
        %v3272 = vpop.f32.mrb[0].mxu0
        %v3273 = vadd.f32 %v3065, %v3272
        %v3274 = vpop.f32.mrb[0].mxu0
        %v3275 = vadd.f32 %v3067, %v3274
        %3276 = vdwg.mxu0
        %v3277 = vmax.f32 %v3119, 0.0
        %v3278 = vmax.f32 %v3121, 0.0
        %v3279 = vmax.f32 %v3123, 0.0
        %v3280 = vmax.f32 %v3125, 0.0
        %v3281 = vmax.f32 %v3129, 0.0
        %v3282 = vmax.f32 %v3131, 0.0
        %v3283 = vmax.f32 %v3133, 0.0
        %v3284 = vmax.f32 %v3135, 0.0
        %v3285 = vmax.f32 %v3139, 0.0
        %v3286 = vmax.f32 %v3141, 0.0
        %v3287 = vmax.f32 %v3143, 0.0
        %v3288 = vmax.f32 %v3145, 0.0
        %v3289 = vmax.f32 %v3149, 0.0
        %v3290 = vmax.f32 %v3151, 0.0
        %v3291 = vmax.f32 %v3153, 0.0
        %v3292 = vmax.f32 %v3155, 0.0
        %v3293 = vmax.f32 %v3159, 0.0
        %v3294 = vmax.f32 %v3161, 0.0
        %v3295 = vmax.f32 %v3163, 0.0
        %v3296 = vmax.f32 %v3165, 0.0
        %v3297 = vmax.f32 %v3169, 0.0
        %v3298 = vmax.f32 %v3171, 0.0
        %v3299 = vmax.f32 %v3173, 0.0
        %v3300 = vmax.f32 %v3175, 0.0
        %v3301 = vmax.f32 %v3179, 0.0
        %v3302 = vmax.f32 %v3181, 0.0
        %v3303 = vmax.f32 %v3183, 0.0
        %v3304 = vmax.f32 %v3185, 0.0
        %v3305 = vmax.f32 %v3189, 0.0
        %v3306 = vmax.f32 %v3191, 0.0
        %v3307 = vmax.f32 %v3193, 0.0
        %v3308 = vmax.f32 %v3195, 0.0
        %v3309 = vmax.f32 %v3199, 0.0
        %v3310 = vmax.f32 %v3201, 0.0
        %v3311 = vmax.f32 %v3203, 0.0
        %v3312 = vmax.f32 %v3205, 0.0
        %v3313 = vmax.f32 %v3209, 0.0
        %v3314 = vmax.f32 %v3211, 0.0
        %v3315 = vmax.f32 %v3213, 0.0
        %v3316 = vmax.f32 %v3215, 0.0
        %v3317 = vmax.f32 %v3219, 0.0
        %v3318 = vmax.f32 %v3221, 0.0
        %v3319 = vmax.f32 %v3223, 0.0
        %v3320 = vmax.f32 %v3225, 0.0
        %v3321 = vmax.f32 %v3229, 0.0
        %v3322 = vmax.f32 %v3231, 0.0
        %v3323 = vmax.f32 %v3233, 0.0
        %v3324 = vmax.f32 %v3235, 0.0
        %v3325 = vmax.f32 %v3239, 0.0
        %v3326 = vmax.f32 %v3241, 0.0
        %v3327 = vmax.f32 %v3243, 0.0
        %v3328 = vmax.f32 %v3245, 0.0
        %v3329 = vmax.f32 %v3249, 0.0
        %v3330 = vmax.f32 %v3251, 0.0
        %v3331 = vmax.f32 %v3253, 0.0
        %v3332 = vmax.f32 %v3255, 0.0
        %v3333 = vmax.f32 %v3259, 0.0
        %v3334 = vmax.f32 %v3261, 0.0
        %v3335 = vmax.f32 %v3263, 0.0
        %v3336 = vmax.f32 %v3265, 0.0
        %v3337 = vmax.f32 %v3269, 0.0
        %v3338 = vmax.f32 %v3271, 0.0
        %v3339 = vmax.f32 %v3273, 0.0
        %v3340 = vmax.f32 %v3275, 0.0
        %s3341 = scalar_lea.vmem [#allocation2], 1280
        %v3342 = vld [vmem:[%s3341] sm:$0xff]
        %v3343 = vld [vmem:[%s3341 + $0x8] sm:$0xff]
        %v3344 = vld [vmem:[%s3341 + $0x10] sm:$0xff]
        %v3345 = vld [vmem:[%s3341 + $0x18] sm:$0xff]
        %v3346 = vld [vmem:[%s3341 + $0x20] sm:$0xff]
        %v3347 = vld [vmem:[%s3341 + $0x28] sm:$0xff]
        %v3348 = vld [vmem:[%s3341 + $0x30] sm:$0xff]
        %v3349 = vld [vmem:[%s3341 + $0x38] sm:$0xff]
        %v3350 = vld [vmem:[%s3341 + $0x40] sm:$0xff]
        %v3351 = vld [vmem:[%s3341 + $0x48] sm:$0xff]
        %v3352 = vld [vmem:[%s3341 + $0x50] sm:$0xff]
        %v3353 = vld [vmem:[%s3341 + $0x58] sm:$0xff]
        %v3354 = vld [vmem:[%s3341 + $0x60] sm:$0xff]
        %v3355 = vld [vmem:[%s3341 + $0x68] sm:$0xff]
        %v3356 = vld [vmem:[%s3341 + $0x70] sm:$0xff]
        %v3357 = vld [vmem:[%s3341 + $0x78] sm:$0xff]
        %v3358 = vld [vmem:[%s3341 + $0x80] sm:$0xff]
        %v3359 = vld [vmem:[%s3341 + $0x88] sm:$0xff]
        %v3360 = vld [vmem:[%s3341 + $0x90] sm:$0xff]
        %v3361 = vld [vmem:[%s3341 + $0x98] sm:$0xff]
        %v3362 = vld [vmem:[%s3341 + $0xa0] sm:$0xff]
        %v3363 = vld [vmem:[%s3341 + $0xa8] sm:$0xff]
        %v3364 = vld [vmem:[%s3341 + $0xb0] sm:$0xff]
        %v3365 = vld [vmem:[%s3341 + $0xb8] sm:$0xff]
        %v3366 = vld [vmem:[%s3341 + $0xc0] sm:$0xff]
        %v3367 = vld [vmem:[%s3341 + $0xc8] sm:$0xff]
        %v3368 = vld [vmem:[%s3341 + $0xd0] sm:$0xff]
        %v3369 = vld [vmem:[%s3341 + $0xd8] sm:$0xff]
        %v3370 = vld [vmem:[%s3341 + $0xe0] sm:$0xff]
        %v3371 = vld [vmem:[%s3341 + $0xe8] sm:$0xff]
        %v3372 = vld [vmem:[%s3341 + $0xf0] sm:$0xff]
        %v3373 = vld [vmem:[%s3341 + $0xf8] sm:$0xff]
        %s3374 = scalar_lea.vmem %s3, 6
        %v3375 = vld [vmem:[%s3374] ss:$8 sm:$0x3]
        %v3376 = vpack.c.bf16 %v3279, %v3277
        %v3377 = vpack.c.bf16 %v3280, %v3278
        %v3378 = vpack.c.bf16 %v3283, %v3281
        %v3379 = vpack.c.bf16 %v3284, %v3282
        %v3380 = vpack.c.bf16 %v3287, %v3285
        %v3381 = vpack.c.bf16 %v3288, %v3286
        %v3382 = vpack.c.bf16 %v3291, %v3289
        %v3383 = vpack.c.bf16 %v3292, %v3290
        %v3384 = vpack.c.bf16 %v3295, %v3293
        %v3385 = vpack.c.bf16 %v3296, %v3294
        %v3386 = vpack.c.bf16 %v3299, %v3297
        %v3387 = vpack.c.bf16 %v3300, %v3298
        %v3388 = vpack.c.bf16 %v3303, %v3301
        %v3389 = vpack.c.bf16 %v3304, %v3302
        %v3390 = vpack.c.bf16 %v3307, %v3305
        %v3391 = vpack.c.bf16 %v3308, %v3306
        %v3392 = vpack.c.bf16 %v3311, %v3309
        %v3393 = vpack.c.bf16 %v3312, %v3310
        %v3394 = vpack.c.bf16 %v3315, %v3313
        %v3395 = vpack.c.bf16 %v3316, %v3314
        %v3396 = vpack.c.bf16 %v3319, %v3317
        %v3397 = vpack.c.bf16 %v3320, %v3318
        %v3398 = vpack.c.bf16 %v3323, %v3321
        %v3399 = vpack.c.bf16 %v3324, %v3322
        %v3400 = vpack.c.bf16 %v3327, %v3325
        %v3401 = vpack.c.bf16 %v3328, %v3326
        %v3402 = vpack.c.bf16 %v3331, %v3329
        %v3403 = vpack.c.bf16 %v3332, %v3330
        %v3404 = vpack.c.bf16 %v3335, %v3333
        %v3405 = vpack.c.bf16 %v3336, %v3334
        %v3406 = vpack.c.bf16 %v3339, %v3337
        %v3407 = vpack.c.bf16 %v3340, %v3338
        %v3409 = vlaneseq
        %v3410 = vshrl.u32 %v3409, 7
        %v3411 = vsub.s32 0, %v3410
        %v3412 = vrot.slane %v3375, %v3411
        %v3413 = vlaneseq
        %v3414 = vshrl.u32 %v3413, 7
        %v3415 = vsub.s32 1, %v3414
        %v3416 = vrot.slane %v3375, %v3415
        %v3451 = vunpack.c.l.b16 %v3342
        %v3452 = vunpack.c.h.b16 %v3342
        %v3453 = vunpack.c.l.b16 %v3343
        %v3454 = vunpack.c.h.b16 %v3343
        %v3455 = vunpack.c.l.b16 %v3344
        %v3456 = vunpack.c.h.b16 %v3344
        %v3457 = vunpack.c.l.b16 %v3345
        %v3458 = vunpack.c.h.b16 %v3345
        %v3459 = vunpack.c.l.b16 %v3346
        %v3460 = vunpack.c.h.b16 %v3346
        %v3461 = vunpack.c.l.b16 %v3347
        %v3462 = vunpack.c.h.b16 %v3347
        %v3463 = vunpack.c.l.b16 %v3348
        %v3464 = vunpack.c.h.b16 %v3348
        %v3465 = vunpack.c.l.b16 %v3349
        %v3466 = vunpack.c.h.b16 %v3349
        %v3467 = vunpack.c.l.b16 %v3350
        %v3468 = vunpack.c.h.b16 %v3350
        %v3469 = vunpack.c.l.b16 %v3351
        %v3470 = vunpack.c.h.b16 %v3351
        %v3471 = vunpack.c.l.b16 %v3352
        %v3472 = vunpack.c.h.b16 %v3352
        %v3473 = vunpack.c.l.b16 %v3353
        %v3474 = vunpack.c.h.b16 %v3353
        %v3475 = vunpack.c.l.b16 %v3354
        %v3476 = vunpack.c.h.b16 %v3354
        %v3477 = vunpack.c.l.b16 %v3355
        %v3478 = vunpack.c.h.b16 %v3355
        %v3479 = vunpack.c.l.b16 %v3356
        %v3480 = vunpack.c.h.b16 %v3356
        %v3481 = vunpack.c.l.b16 %v3357
        %v3482 = vunpack.c.h.b16 %v3357
        %v3483 = vunpack.c.l.b16 %v3358
        %v3484 = vunpack.c.h.b16 %v3358
        %v3485 = vunpack.c.l.b16 %v3359
        %v3486 = vunpack.c.h.b16 %v3359
        %v3487 = vunpack.c.l.b16 %v3360
        %v3488 = vunpack.c.h.b16 %v3360
        %v3489 = vunpack.c.l.b16 %v3361
        %v3490 = vunpack.c.h.b16 %v3361
        %v3491 = vunpack.c.l.b16 %v3362
        %v3492 = vunpack.c.h.b16 %v3362
        %v3493 = vunpack.c.l.b16 %v3363
        %v3494 = vunpack.c.h.b16 %v3363
        %v3495 = vunpack.c.l.b16 %v3364
        %v3496 = vunpack.c.h.b16 %v3364
        %v3497 = vunpack.c.l.b16 %v3365
        %v3498 = vunpack.c.h.b16 %v3365
        %v3499 = vunpack.c.l.b16 %v3366
        %v3500 = vunpack.c.h.b16 %v3366
        %v3501 = vunpack.c.l.b16 %v3367
        %v3502 = vunpack.c.h.b16 %v3367
        %v3503 = vunpack.c.l.b16 %v3368
        %v3504 = vunpack.c.h.b16 %v3368
        %v3505 = vunpack.c.l.b16 %v3369
        %v3506 = vunpack.c.h.b16 %v3369
        %v3507 = vunpack.c.l.b16 %v3370
        %v3508 = vunpack.c.h.b16 %v3370
        %v3509 = vunpack.c.l.b16 %v3371
        %v3510 = vunpack.c.h.b16 %v3371
        %v3511 = vunpack.c.l.b16 %v3372
        %v3512 = vunpack.c.h.b16 %v3372
        %v3513 = vunpack.c.l.b16 %v3373
        %v3514 = vunpack.c.h.b16 %v3373
        %v3515 = vpack.c.b16 %v3453, %v3451
        %v3516 = vpack.c.b16 %v3454, %v3452
        %v3517 = vpack.c.b16 %v3457, %v3455
        %v3518 = vpack.c.b16 %v3458, %v3456
        %v3519 = vpack.c.b16 %v3461, %v3459
        %v3520 = vpack.c.b16 %v3462, %v3460
        %v3521 = vpack.c.b16 %v3465, %v3463
        %v3522 = vpack.c.b16 %v3466, %v3464
        %v3523 = vpack.c.b16 %v3469, %v3467
        %v3524 = vpack.c.b16 %v3470, %v3468
        %v3525 = vpack.c.b16 %v3473, %v3471
        %v3526 = vpack.c.b16 %v3474, %v3472
        %v3527 = vpack.c.b16 %v3477, %v3475
        %v3528 = vpack.c.b16 %v3478, %v3476
        %v3529 = vpack.c.b16 %v3481, %v3479
        %v3530 = vpack.c.b16 %v3482, %v3480
        %v3531 = vpack.c.b16 %v3485, %v3483
        %v3532 = vpack.c.b16 %v3486, %v3484
        %v3533 = vpack.c.b16 %v3489, %v3487
        %v3534 = vpack.c.b16 %v3490, %v3488
        %v3535 = vpack.c.b16 %v3493, %v3491
        %v3536 = vpack.c.b16 %v3494, %v3492
        %v3537 = vpack.c.b16 %v3497, %v3495
        %v3538 = vpack.c.b16 %v3498, %v3496
        %v3539 = vpack.c.b16 %v3501, %v3499
        %v3540 = vpack.c.b16 %v3502, %v3500
        %v3541 = vpack.c.b16 %v3505, %v3503
        %v3542 = vpack.c.b16 %v3506, %v3504
        %v3543 = vpack.c.b16 %v3509, %v3507
        %v3544 = vpack.c.b16 %v3510, %v3508
        %v3545 = vpack.c.b16 %v3513, %v3511
        %v3546 = vpack.c.b16 %v3514, %v3512
        %3579 = vmatprep.subr.bf16.mxu0 %v3516
        %3580 = vmatpush1.bf16.msra.mxu0 %v3515
        %3581 = vmatprep.subr.bf16.mxu0 %v3518
        %3582 = vmatpush1.bf16.msra.mxu0 %v3517
        %3583 = vmatprep.subr.bf16.mxu0 %v3520
        %3584 = vmatpush1.bf16.msra.mxu0 %v3519
        %3585 = vmatprep.subr.bf16.mxu0 %v3522
        %3586 = vmatpush1.bf16.msra.mxu0 %v3521
        %3587 = vmatprep.subr.bf16.mxu0 %v3524
        %3588 = vmatpush1.bf16.msra.mxu0 %v3523
        %3589 = vmatprep.subr.bf16.mxu0 %v3526
        %3590 = vmatpush1.bf16.msra.mxu0 %v3525
        %3591 = vmatprep.subr.bf16.mxu0 %v3528
        %3592 = vmatpush1.bf16.msra.mxu0 %v3527
        %3593 = vmatprep.subr.bf16.mxu0 %v3530
        %3594 = vmatpush1.bf16.msra.mxu0 %v3529
        %3595 = vmatprep.subr.bf16.mxu0 %v3532
        %3596 = vmatpush1.bf16.msra.mxu0 %v3531
        %3597 = vmatprep.subr.bf16.mxu0 %v3534
        %3598 = vmatpush1.bf16.msra.mxu0 %v3533
        %3599 = vmatprep.subr.bf16.mxu0 %v3536
        %3600 = vmatpush1.bf16.msra.mxu0 %v3535
        %3601 = vmatprep.subr.bf16.mxu0 %v3538
        %3602 = vmatpush1.bf16.msra.mxu0 %v3537
        %3603 = vmatprep.subr.bf16.mxu0 %v3540
        %3604 = vmatpush1.bf16.msra.mxu0 %v3539
        %3605 = vmatprep.subr.bf16.mxu0 %v3542
        %3606 = vmatpush1.bf16.msra.mxu0 %v3541
        %3607 = vmatprep.subr.bf16.mxu0 %v3544
        %3608 = vmatpush1.bf16.msra.mxu0 %v3543
        %3609 = vmatprep.subr.bf16.mxu0 %v3546
        %3610 = vmatpush1.bf16.msra.mxu0 %v3545
        %3611 = vmatprep.mubr.bf16.mxu0 %v3377
        %3612 = vmatmul.mubr.bf16.gmra.mrb[0].mxu0 %v3376
        %v3613 = vpop.f32.mrb[0].mxu0
        %v3614 = vadd.f32 %v3412, %v3613
        %v3615 = vpop.f32.mrb[0].mxu0
        %v3616 = vadd.f32 %v3416, %v3615
        %v3617 = vpop.f32.mrb[0].mxu0
        %v3618 = vadd.f32 %v3412, %v3617
        %v3619 = vpop.f32.mrb[0].mxu0
        %v3620 = vadd.f32 %v3416, %v3619
        %3621 = vmatprep.mubr.bf16.mxu0 %v3379
        %3622 = vmatmul.mubr.bf16.gmra.mrb[0].mxu0 %v3378
        %v3623 = vpop.f32.mrb[0].mxu0
        %v3624 = vadd.f32 %v3412, %v3623
        %v3625 = vpop.f32.mrb[0].mxu0
        %v3626 = vadd.f32 %v3416, %v3625
        %v3627 = vpop.f32.mrb[0].mxu0
        %v3628 = vadd.f32 %v3412, %v3627
        %v3629 = vpop.f32.mrb[0].mxu0
        %v3630 = vadd.f32 %v3416, %v3629
        %3631 = vmatprep.mubr.bf16.mxu0 %v3381
        %3632 = vmatmul.mubr.bf16.gmra.mrb[0].mxu0 %v3380
        %v3633 = vpop.f32.mrb[0].mxu0
        %v3634 = vadd.f32 %v3412, %v3633
        %v3635 = vpop.f32.mrb[0].mxu0
        %v3636 = vadd.f32 %v3416, %v3635
        %v3637 = vpop.f32.mrb[0].mxu0
        %v3638 = vadd.f32 %v3412, %v3637
        %v3639 = vpop.f32.mrb[0].mxu0
        %v3640 = vadd.f32 %v3416, %v3639
        %3641 = vmatprep.mubr.bf16.mxu0 %v3383
        %3642 = vmatmul.mubr.bf16.gmra.mrb[0].mxu0 %v3382
        %v3643 = vpop.f32.mrb[0].mxu0
        %v3644 = vadd.f32 %v3412, %v3643
        %v3645 = vpop.f32.mrb[0].mxu0
        %v3646 = vadd.f32 %v3416, %v3645
        %v3647 = vpop.f32.mrb[0].mxu0
        %v3648 = vadd.f32 %v3412, %v3647
        %v3649 = vpop.f32.mrb[0].mxu0
        %v3650 = vadd.f32 %v3416, %v3649
        %3651 = vmatprep.mubr.bf16.mxu0 %v3385
        %3652 = vmatmul.mubr.bf16.gmra.mrb[0].mxu0 %v3384
        %v3653 = vpop.f32.mrb[0].mxu0
        %v3654 = vadd.f32 %v3412, %v3653
        %v3655 = vpop.f32.mrb[0].mxu0
        %v3656 = vadd.f32 %v3416, %v3655
        %v3657 = vpop.f32.mrb[0].mxu0
        %v3658 = vadd.f32 %v3412, %v3657
        %v3659 = vpop.f32.mrb[0].mxu0
        %v3660 = vadd.f32 %v3416, %v3659
        %3661 = vmatprep.mubr.bf16.mxu0 %v3387
        %3662 = vmatmul.mubr.bf16.gmra.mrb[0].mxu0 %v3386
        %v3663 = vpop.f32.mrb[0].mxu0
        %v3664 = vadd.f32 %v3412, %v3663
        %v3665 = vpop.f32.mrb[0].mxu0
        %v3666 = vadd.f32 %v3416, %v3665
        %v3667 = vpop.f32.mrb[0].mxu0
        %v3668 = vadd.f32 %v3412, %v3667
        %v3669 = vpop.f32.mrb[0].mxu0
        %v3670 = vadd.f32 %v3416, %v3669
        %3671 = vmatprep.mubr.bf16.mxu0 %v3389
        %3672 = vmatmul.mubr.bf16.gmra.mrb[0].mxu0 %v3388
        %v3673 = vpop.f32.mrb[0].mxu0
        %v3674 = vadd.f32 %v3412, %v3673
        %v3675 = vpop.f32.mrb[0].mxu0
        %v3676 = vadd.f32 %v3416, %v3675
        %v3677 = vpop.f32.mrb[0].mxu0
        %v3678 = vadd.f32 %v3412, %v3677
        %v3679 = vpop.f32.mrb[0].mxu0
        %v3680 = vadd.f32 %v3416, %v3679
        %3681 = vmatprep.mubr.bf16.mxu0 %v3391
        %3682 = vmatmul.mubr.bf16.gmra.mrb[0].mxu0 %v3390
        %v3683 = vpop.f32.mrb[0].mxu0
        %v3684 = vadd.f32 %v3412, %v3683
        %v3685 = vpop.f32.mrb[0].mxu0
        %v3686 = vadd.f32 %v3416, %v3685
        %v3687 = vpop.f32.mrb[0].mxu0
        %v3688 = vadd.f32 %v3412, %v3687
        %v3689 = vpop.f32.mrb[0].mxu0
        %v3690 = vadd.f32 %v3416, %v3689
        %3691 = vmatprep.mubr.bf16.mxu0 %v3393
        %3692 = vmatmul.mubr.bf16.gmra.mrb[0].mxu0 %v3392
        %v3693 = vpop.f32.mrb[0].mxu0
        %v3694 = vadd.f32 %v3412, %v3693
        %v3695 = vpop.f32.mrb[0].mxu0
        %v3696 = vadd.f32 %v3416, %v3695
        %v3697 = vpop.f32.mrb[0].mxu0
        %v3698 = vadd.f32 %v3412, %v3697
        %v3699 = vpop.f32.mrb[0].mxu0
        %v3700 = vadd.f32 %v3416, %v3699
        %3701 = vmatprep.mubr.bf16.mxu0 %v3395
        %3702 = vmatmul.mubr.bf16.gmra.mrb[0].mxu0 %v3394
        %v3703 = vpop.f32.mrb[0].mxu0
        %v3704 = vadd.f32 %v3412, %v3703
        %v3705 = vpop.f32.mrb[0].mxu0
        %v3706 = vadd.f32 %v3416, %v3705
        %v3707 = vpop.f32.mrb[0].mxu0
        %v3708 = vadd.f32 %v3412, %v3707
        %v3709 = vpop.f32.mrb[0].mxu0
        %v3710 = vadd.f32 %v3416, %v3709
        %3711 = vmatprep.mubr.bf16.mxu0 %v3397
        %3712 = vmatmul.mubr.bf16.gmra.mrb[0].mxu0 %v3396
        %v3713 = vpop.f32.mrb[0].mxu0
        %v3714 = vadd.f32 %v3412, %v3713
        %v3715 = vpop.f32.mrb[0].mxu0
        %v3716 = vadd.f32 %v3416, %v3715
        %v3717 = vpop.f32.mrb[0].mxu0
        %v3718 = vadd.f32 %v3412, %v3717
        %v3719 = vpop.f32.mrb[0].mxu0
        %v3720 = vadd.f32 %v3416, %v3719
        %3721 = vmatprep.mubr.bf16.mxu0 %v3399
        %3722 = vmatmul.mubr.bf16.gmra.mrb[0].mxu0 %v3398
        %v3723 = vpop.f32.mrb[0].mxu0
        %v3724 = vadd.f32 %v3412, %v3723
        %v3725 = vpop.f32.mrb[0].mxu0
        %v3726 = vadd.f32 %v3416, %v3725
        %v3727 = vpop.f32.mrb[0].mxu0
        %v3728 = vadd.f32 %v3412, %v3727
        %v3729 = vpop.f32.mrb[0].mxu0
        %v3730 = vadd.f32 %v3416, %v3729
        %3731 = vmatprep.mubr.bf16.mxu0 %v3401
        %3732 = vmatmul.mubr.bf16.gmra.mrb[0].mxu0 %v3400
        %v3733 = vpop.f32.mrb[0].mxu0
        %v3734 = vadd.f32 %v3412, %v3733
        %v3735 = vpop.f32.mrb[0].mxu0
        %v3736 = vadd.f32 %v3416, %v3735
        %v3737 = vpop.f32.mrb[0].mxu0
        %v3738 = vadd.f32 %v3412, %v3737
        %v3739 = vpop.f32.mrb[0].mxu0
        %v3740 = vadd.f32 %v3416, %v3739
        %3741 = vmatprep.mubr.bf16.mxu0 %v3403
        %3742 = vmatmul.mubr.bf16.gmra.mrb[0].mxu0 %v3402
        %v3743 = vpop.f32.mrb[0].mxu0
        %v3744 = vadd.f32 %v3412, %v3743
        %v3745 = vpop.f32.mrb[0].mxu0
        %v3746 = vadd.f32 %v3416, %v3745
        %v3747 = vpop.f32.mrb[0].mxu0
        %v3748 = vadd.f32 %v3412, %v3747
        %v3749 = vpop.f32.mrb[0].mxu0
        %v3750 = vadd.f32 %v3416, %v3749
        %3751 = vmatprep.mubr.bf16.mxu0 %v3405
        %3752 = vmatmul.mubr.bf16.gmra.mrb[0].mxu0 %v3404
        %v3753 = vpop.f32.mrb[0].mxu0
        %v3754 = vadd.f32 %v3412, %v3753
        %v3755 = vpop.f32.mrb[0].mxu0
        %v3756 = vadd.f32 %v3416, %v3755
        %v3757 = vpop.f32.mrb[0].mxu0
        %v3758 = vadd.f32 %v3412, %v3757
        %v3759 = vpop.f32.mrb[0].mxu0
        %v3760 = vadd.f32 %v3416, %v3759
        %3761 = vmatprep.mubr.bf16.mxu0 %v3407
        %3762 = vmatmul.mubr.bf16.gmra.mrb[0].mxu0 %v3406
        %v3763 = vpop.f32.mrb[0].mxu0
        %v3764 = vadd.f32 %v3412, %v3763
        %v3765 = vpop.f32.mrb[0].mxu0
        %v3766 = vadd.f32 %v3416, %v3765
        %v3767 = vpop.f32.mrb[0].mxu0
        %v3768 = vadd.f32 %v3412, %v3767
        %v3769 = vpop.f32.mrb[0].mxu0
        %v3770 = vadd.f32 %v3416, %v3769
        %3771 = vdwg.mxu0
        %v3772 = vmax.f32 %v3614, 0.0
        %v3773 = vmax.f32 %v3616, 0.0
        %v3774 = vmax.f32 %v3618, 0.0
        %v3775 = vmax.f32 %v3620, 0.0
        %v3776 = vmax.f32 %v3624, 0.0
        %v3777 = vmax.f32 %v3626, 0.0
        %v3778 = vmax.f32 %v3628, 0.0
        %v3779 = vmax.f32 %v3630, 0.0
        %v3780 = vmax.f32 %v3634, 0.0
        %v3781 = vmax.f32 %v3636, 0.0
        %v3782 = vmax.f32 %v3638, 0.0
        %v3783 = vmax.f32 %v3640, 0.0
        %v3784 = vmax.f32 %v3644, 0.0
        %v3785 = vmax.f32 %v3646, 0.0
        %v3786 = vmax.f32 %v3648, 0.0
        %v3787 = vmax.f32 %v3650, 0.0
        %v3788 = vmax.f32 %v3654, 0.0
        %v3789 = vmax.f32 %v3656, 0.0
        %v3790 = vmax.f32 %v3658, 0.0
        %v3791 = vmax.f32 %v3660, 0.0
        %v3792 = vmax.f32 %v3664, 0.0
        %v3793 = vmax.f32 %v3666, 0.0
        %v3794 = vmax.f32 %v3668, 0.0
        %v3795 = vmax.f32 %v3670, 0.0
        %v3796 = vmax.f32 %v3674, 0.0
        %v3797 = vmax.f32 %v3676, 0.0
        %v3798 = vmax.f32 %v3678, 0.0
        %v3799 = vmax.f32 %v3680, 0.0
        %v3800 = vmax.f32 %v3684, 0.0
        %v3801 = vmax.f32 %v3686, 0.0
        %v3802 = vmax.f32 %v3688, 0.0
        %v3803 = vmax.f32 %v3690, 0.0
        %v3804 = vmax.f32 %v3694, 0.0
        %v3805 = vmax.f32 %v3696, 0.0
        %v3806 = vmax.f32 %v3698, 0.0
        %v3807 = vmax.f32 %v3700, 0.0
        %v3808 = vmax.f32 %v3704, 0.0
        %v3809 = vmax.f32 %v3706, 0.0
        %v3810 = vmax.f32 %v3708, 0.0
        %v3811 = vmax.f32 %v3710, 0.0
        %v3812 = vmax.f32 %v3714, 0.0
        %v3813 = vmax.f32 %v3716, 0.0
        %v3814 = vmax.f32 %v3718, 0.0
        %v3815 = vmax.f32 %v3720, 0.0
        %v3816 = vmax.f32 %v3724, 0.0
        %v3817 = vmax.f32 %v3726, 0.0
        %v3818 = vmax.f32 %v3728, 0.0
        %v3819 = vmax.f32 %v3730, 0.0
        %v3820 = vmax.f32 %v3734, 0.0
        %v3821 = vmax.f32 %v3736, 0.0
        %v3822 = vmax.f32 %v3738, 0.0
        %v3823 = vmax.f32 %v3740, 0.0
        %v3824 = vmax.f32 %v3744, 0.0
        %v3825 = vmax.f32 %v3746, 0.0
        %v3826 = vmax.f32 %v3748, 0.0
        %v3827 = vmax.f32 %v3750, 0.0
        %v3828 = vmax.f32 %v3754, 0.0
        %v3829 = vmax.f32 %v3756, 0.0
        %v3830 = vmax.f32 %v3758, 0.0
        %v3831 = vmax.f32 %v3760, 0.0
        %v3832 = vmax.f32 %v3764, 0.0
        %v3833 = vmax.f32 %v3766, 0.0
        %v3834 = vmax.f32 %v3768, 0.0
        %v3835 = vmax.f32 %v3770, 0.0
        %s3836 = scalar_lea.vmem [#allocation2], 1536
        %v3837 = vld [vmem:[%s3836] sm:$0xff]
        %v3838 = vld [vmem:[%s3836 + $0x8] sm:$0xff]
        %v3839 = vld [vmem:[%s3836 + $0x10] sm:$0xff]
        %v3840 = vld [vmem:[%s3836 + $0x18] sm:$0xff]
        %v3841 = vld [vmem:[%s3836 + $0x20] sm:$0xff]
        %v3842 = vld [vmem:[%s3836 + $0x28] sm:$0xff]
        %v3843 = vld [vmem:[%s3836 + $0x30] sm:$0xff]
        %v3844 = vld [vmem:[%s3836 + $0x38] sm:$0xff]
        %v3845 = vld [vmem:[%s3836 + $0x40] sm:$0xff]
        %v3846 = vld [vmem:[%s3836 + $0x48] sm:$0xff]
        %v3847 = vld [vmem:[%s3836 + $0x50] sm:$0xff]
        %v3848 = vld [vmem:[%s3836 + $0x58] sm:$0xff]
        %v3849 = vld [vmem:[%s3836 + $0x60] sm:$0xff]
        %v3850 = vld [vmem:[%s3836 + $0x68] sm:$0xff]
        %v3851 = vld [vmem:[%s3836 + $0x70] sm:$0xff]
        %v3852 = vld [vmem:[%s3836 + $0x78] sm:$0xff]
        %v3853 = vld [vmem:[%s3836 + $0x80] sm:$0xff]
        %v3854 = vld [vmem:[%s3836 + $0x88] sm:$0xff]
        %v3855 = vld [vmem:[%s3836 + $0x90] sm:$0xff]
        %v3856 = vld [vmem:[%s3836 + $0x98] sm:$0xff]
        %v3857 = vld [vmem:[%s3836 + $0xa0] sm:$0xff]
        %v3858 = vld [vmem:[%s3836 + $0xa8] sm:$0xff]
        %v3859 = vld [vmem:[%s3836 + $0xb0] sm:$0xff]
        %v3860 = vld [vmem:[%s3836 + $0xb8] sm:$0xff]
        %v3861 = vld [vmem:[%s3836 + $0xc0] sm:$0xff]
        %v3862 = vld [vmem:[%s3836 + $0xc8] sm:$0xff]
        %v3863 = vld [vmem:[%s3836 + $0xd0] sm:$0xff]
        %v3864 = vld [vmem:[%s3836 + $0xd8] sm:$0xff]
        %v3865 = vld [vmem:[%s3836 + $0xe0] sm:$0xff]
        %v3866 = vld [vmem:[%s3836 + $0xe8] sm:$0xff]
        %v3867 = vld [vmem:[%s3836 + $0xf0] sm:$0xff]
        %v3868 = vld [vmem:[%s3836 + $0xf8] sm:$0xff]
        %s3869 = scalar_lea.vmem %s3, 7
        %v3870 = vld [vmem:[%s3869] ss:$8 sm:$0x3]
        %v3871 = vpack.c.bf16 %v3774, %v3772
        %v3872 = vpack.c.bf16 %v3775, %v3773
        %v3873 = vpack.c.bf16 %v3778, %v3776
        %v3874 = vpack.c.bf16 %v3779, %v3777
        %v3875 = vpack.c.bf16 %v3782, %v3780
        %v3876 = vpack.c.bf16 %v3783, %v3781
        %v3877 = vpack.c.bf16 %v3786, %v3784
        %v3878 = vpack.c.bf16 %v3787, %v3785
        %v3879 = vpack.c.bf16 %v3790, %v3788
        %v3880 = vpack.c.bf16 %v3791, %v3789
        %v3881 = vpack.c.bf16 %v3794, %v3792
        %v3882 = vpack.c.bf16 %v3795, %v3793
        %v3883 = vpack.c.bf16 %v3798, %v3796
        %v3884 = vpack.c.bf16 %v3799, %v3797
        %v3885 = vpack.c.bf16 %v3802, %v3800
        %v3886 = vpack.c.bf16 %v3803, %v3801
        %v3887 = vpack.c.bf16 %v3806, %v3804
        %v3888 = vpack.c.bf16 %v3807, %v3805
        %v3889 = vpack.c.bf16 %v3810, %v3808
        %v3890 = vpack.c.bf16 %v3811, %v3809
        %v3891 = vpack.c.bf16 %v3814, %v3812
        %v3892 = vpack.c.bf16 %v3815, %v3813
        %v3893 = vpack.c.bf16 %v3818, %v3816
        %v3894 = vpack.c.bf16 %v3819, %v3817
        %v3895 = vpack.c.bf16 %v3822, %v3820
        %v3896 = vpack.c.bf16 %v3823, %v3821
        %v3897 = vpack.c.bf16 %v3826, %v3824
        %v3898 = vpack.c.bf16 %v3827, %v3825
        %v3899 = vpack.c.bf16 %v3830, %v3828
        %v3900 = vpack.c.bf16 %v3831, %v3829
        %v3901 = vpack.c.bf16 %v3834, %v3832
        %v3902 = vpack.c.bf16 %v3835, %v3833
        %v3904 = vlaneseq
        %v3905 = vshrl.u32 %v3904, 7
        %v3906 = vsub.s32 0, %v3905
        %v3907 = vrot.slane %v3870, %v3906
        %v3908 = vlaneseq
        %v3909 = vshrl.u32 %v3908, 7
        %v3910 = vsub.s32 1, %v3909
        %v3911 = vrot.slane %v3870, %v3910
        %v3946 = vunpack.c.l.b16 %v3837
        %v3947 = vunpack.c.h.b16 %v3837
        %v3948 = vunpack.c.l.b16 %v3838
        %v3949 = vunpack.c.h.b16 %v3838
        %v3950 = vunpack.c.l.b16 %v3839
        %v3951 = vunpack.c.h.b16 %v3839
        %v3952 = vunpack.c.l.b16 %v3840
        %v3953 = vunpack.c.h.b16 %v3840
        %v3954 = vunpack.c.l.b16 %v3841
        %v3955 = vunpack.c.h.b16 %v3841
        %v3956 = vunpack.c.l.b16 %v3842
        %v3957 = vunpack.c.h.b16 %v3842
        %v3958 = vunpack.c.l.b16 %v3843
        %v3959 = vunpack.c.h.b16 %v3843
        %v3960 = vunpack.c.l.b16 %v3844
        %v3961 = vunpack.c.h.b16 %v3844
        %v3962 = vunpack.c.l.b16 %v3845
        %v3963 = vunpack.c.h.b16 %v3845
        %v3964 = vunpack.c.l.b16 %v3846
        %v3965 = vunpack.c.h.b16 %v3846
        %v3966 = vunpack.c.l.b16 %v3847
        %v3967 = vunpack.c.h.b16 %v3847
        %v3968 = vunpack.c.l.b16 %v3848
        %v3969 = vunpack.c.h.b16 %v3848
        %v3970 = vunpack.c.l.b16 %v3849
        %v3971 = vunpack.c.h.b16 %v3849
        %v3972 = vunpack.c.l.b16 %v3850
        %v3973 = vunpack.c.h.b16 %v3850
        %v3974 = vunpack.c.l.b16 %v3851
        %v3975 = vunpack.c.h.b16 %v3851
        %v3976 = vunpack.c.l.b16 %v3852
        %v3977 = vunpack.c.h.b16 %v3852
        %v3978 = vunpack.c.l.b16 %v3853
        %v3979 = vunpack.c.h.b16 %v3853
        %v3980 = vunpack.c.l.b16 %v3854
        %v3981 = vunpack.c.h.b16 %v3854
        %v3982 = vunpack.c.l.b16 %v3855
        %v3983 = vunpack.c.h.b16 %v3855
        %v3984 = vunpack.c.l.b16 %v3856
        %v3985 = vunpack.c.h.b16 %v3856
        %v3986 = vunpack.c.l.b16 %v3857
        %v3987 = vunpack.c.h.b16 %v3857
        %v3988 = vunpack.c.l.b16 %v3858
        %v3989 = vunpack.c.h.b16 %v3858
        %v3990 = vunpack.c.l.b16 %v3859
        %v3991 = vunpack.c.h.b16 %v3859
        %v3992 = vunpack.c.l.b16 %v3860
        %v3993 = vunpack.c.h.b16 %v3860
        %v3994 = vunpack.c.l.b16 %v3861
        %v3995 = vunpack.c.h.b16 %v3861
        %v3996 = vunpack.c.l.b16 %v3862
        %v3997 = vunpack.c.h.b16 %v3862
        %v3998 = vunpack.c.l.b16 %v3863
        %v3999 = vunpack.c.h.b16 %v3863
        %v4000 = vunpack.c.l.b16 %v3864
        %v4001 = vunpack.c.h.b16 %v3864
        %v4002 = vunpack.c.l.b16 %v3865
        %v4003 = vunpack.c.h.b16 %v3865
        %v4004 = vunpack.c.l.b16 %v3866
        %v4005 = vunpack.c.h.b16 %v3866
        %v4006 = vunpack.c.l.b16 %v3867
        %v4007 = vunpack.c.h.b16 %v3867
        %v4008 = vunpack.c.l.b16 %v3868
        %v4009 = vunpack.c.h.b16 %v3868
        %v4010 = vpack.c.b16 %v3948, %v3946
        %v4011 = vpack.c.b16 %v3949, %v3947
        %v4012 = vpack.c.b16 %v3952, %v3950
        %v4013 = vpack.c.b16 %v3953, %v3951
        %v4014 = vpack.c.b16 %v3956, %v3954
        %v4015 = vpack.c.b16 %v3957, %v3955
        %v4016 = vpack.c.b16 %v3960, %v3958
        %v4017 = vpack.c.b16 %v3961, %v3959
        %v4018 = vpack.c.b16 %v3964, %v3962
        %v4019 = vpack.c.b16 %v3965, %v3963
        %v4020 = vpack.c.b16 %v3968, %v3966
        %v4021 = vpack.c.b16 %v3969, %v3967
        %v4022 = vpack.c.b16 %v3972, %v3970
        %v4023 = vpack.c.b16 %v3973, %v3971
        %v4024 = vpack.c.b16 %v3976, %v3974
        %v4025 = vpack.c.b16 %v3977, %v3975
        %v4026 = vpack.c.b16 %v3980, %v3978
        %v4027 = vpack.c.b16 %v3981, %v3979
        %v4028 = vpack.c.b16 %v3984, %v3982
        %v4029 = vpack.c.b16 %v3985, %v3983
        %v4030 = vpack.c.b16 %v3988, %v3986
        %v4031 = vpack.c.b16 %v3989, %v3987
        %v4032 = vpack.c.b16 %v3992, %v3990
        %v4033 = vpack.c.b16 %v3993, %v3991
        %v4034 = vpack.c.b16 %v3996, %v3994
        %v4035 = vpack.c.b16 %v3997, %v3995
        %v4036 = vpack.c.b16 %v4000, %v3998
        %v4037 = vpack.c.b16 %v4001, %v3999
        %v4038 = vpack.c.b16 %v4004, %v4002
        %v4039 = vpack.c.b16 %v4005, %v4003
        %v4040 = vpack.c.b16 %v4008, %v4006
        %v4041 = vpack.c.b16 %v4009, %v4007
        %4074 = vmatprep.subr.bf16.mxu0 %v4011
        %4075 = vmatpush1.bf16.msra.mxu0 %v4010
        %4076 = vmatprep.subr.bf16.mxu0 %v4013
        %4077 = vmatpush1.bf16.msra.mxu0 %v4012
        %4078 = vmatprep.subr.bf16.mxu0 %v4015
        %4079 = vmatpush1.bf16.msra.mxu0 %v4014
        %4080 = vmatprep.subr.bf16.mxu0 %v4017
        %4081 = vmatpush1.bf16.msra.mxu0 %v4016
        %4082 = vmatprep.subr.bf16.mxu0 %v4019
        %4083 = vmatpush1.bf16.msra.mxu0 %v4018
        %4084 = vmatprep.subr.bf16.mxu0 %v4021
        %4085 = vmatpush1.bf16.msra.mxu0 %v4020
        %4086 = vmatprep.subr.bf16.mxu0 %v4023
        %4087 = vmatpush1.bf16.msra.mxu0 %v4022
        %4088 = vmatprep.subr.bf16.mxu0 %v4025
        %4089 = vmatpush1.bf16.msra.mxu0 %v4024
        %4090 = vmatprep.subr.bf16.mxu0 %v4027
        %4091 = vmatpush1.bf16.msra.mxu0 %v4026
        %4092 = vmatprep.subr.bf16.mxu0 %v4029
        %4093 = vmatpush1.bf16.msra.mxu0 %v4028
        %4094 = vmatprep.subr.bf16.mxu0 %v4031
        %4095 = vmatpush1.bf16.msra.mxu0 %v4030
        %4096 = vmatprep.subr.bf16.mxu0 %v4033
        %4097 = vmatpush1.bf16.msra.mxu0 %v4032
        %4098 = vmatprep.subr.bf16.mxu0 %v4035
        %4099 = vmatpush1.bf16.msra.mxu0 %v4034
        %4100 = vmatprep.subr.bf16.mxu0 %v4037
        %4101 = vmatpush1.bf16.msra.mxu0 %v4036
        %4102 = vmatprep.subr.bf16.mxu0 %v4039
        %4103 = vmatpush1.bf16.msra.mxu0 %v4038
        %4104 = vmatprep.subr.bf16.mxu0 %v4041
        %4105 = vmatpush1.bf16.msra.mxu0 %v4040
        %4106 = vmatprep.mubr.bf16.mxu0 %v3872
        %4107 = vmatmul.mubr.bf16.gmra.mrb[0].mxu0 %v3871
        %v4108 = vpop.f32.mrb[0].mxu0
        %v4109 = vadd.f32 %v3907, %v4108
        %v4110 = vpop.f32.mrb[0].mxu0
        %v4111 = vadd.f32 %v3911, %v4110
        %v4112 = vpop.f32.mrb[0].mxu0
        %v4113 = vadd.f32 %v3907, %v4112
        %v4114 = vpop.f32.mrb[0].mxu0
        %v4115 = vadd.f32 %v3911, %v4114
        %4116 = vmatprep.mubr.bf16.mxu0 %v3874
        %4117 = vmatmul.mubr.bf16.gmra.mrb[0].mxu0 %v3873
        %v4118 = vpop.f32.mrb[0].mxu0
        %v4119 = vadd.f32 %v3907, %v4118
        %v4120 = vpop.f32.mrb[0].mxu0
        %v4121 = vadd.f32 %v3911, %v4120
        %v4122 = vpop.f32.mrb[0].mxu0
        %v4123 = vadd.f32 %v3907, %v4122
        %v4124 = vpop.f32.mrb[0].mxu0
        %v4125 = vadd.f32 %v3911, %v4124
        %4126 = vmatprep.mubr.bf16.mxu0 %v3876
        %4127 = vmatmul.mubr.bf16.gmra.mrb[0].mxu0 %v3875
        %v4128 = vpop.f32.mrb[0].mxu0
        %v4129 = vadd.f32 %v3907, %v4128
        %v4130 = vpop.f32.mrb[0].mxu0
        %v4131 = vadd.f32 %v3911, %v4130
        %v4132 = vpop.f32.mrb[0].mxu0
        %v4133 = vadd.f32 %v3907, %v4132
        %v4134 = vpop.f32.mrb[0].mxu0
        %v4135 = vadd.f32 %v3911, %v4134
        %4136 = vmatprep.mubr.bf16.mxu0 %v3878
        %4137 = vmatmul.mubr.bf16.gmra.mrb[0].mxu0 %v3877
        %v4138 = vpop.f32.mrb[0].mxu0
        %v4139 = vadd.f32 %v3907, %v4138
        %v4140 = vpop.f32.mrb[0].mxu0
        %v4141 = vadd.f32 %v3911, %v4140
        %v4142 = vpop.f32.mrb[0].mxu0
        %v4143 = vadd.f32 %v3907, %v4142
        %v4144 = vpop.f32.mrb[0].mxu0
        %v4145 = vadd.f32 %v3911, %v4144
        %4146 = vmatprep.mubr.bf16.mxu0 %v3880
        %4147 = vmatmul.mubr.bf16.gmra.mrb[0].mxu0 %v3879
        %v4148 = vpop.f32.mrb[0].mxu0
        %v4149 = vadd.f32 %v3907, %v4148
        %v4150 = vpop.f32.mrb[0].mxu0
        %v4151 = vadd.f32 %v3911, %v4150
        %v4152 = vpop.f32.mrb[0].mxu0
        %v4153 = vadd.f32 %v3907, %v4152
        %v4154 = vpop.f32.mrb[0].mxu0
        %v4155 = vadd.f32 %v3911, %v4154
        %4156 = vmatprep.mubr.bf16.mxu0 %v3882
        %4157 = vmatmul.mubr.bf16.gmra.mrb[0].mxu0 %v3881
        %v4158 = vpop.f32.mrb[0].mxu0
        %v4159 = vadd.f32 %v3907, %v4158
        %v4160 = vpop.f32.mrb[0].mxu0
        %v4161 = vadd.f32 %v3911, %v4160
        %v4162 = vpop.f32.mrb[0].mxu0
        %v4163 = vadd.f32 %v3907, %v4162
        %v4164 = vpop.f32.mrb[0].mxu0
        %v4165 = vadd.f32 %v3911, %v4164
        %4166 = vmatprep.mubr.bf16.mxu0 %v3884
        %4167 = vmatmul.mubr.bf16.gmra.mrb[0].mxu0 %v3883
        %v4168 = vpop.f32.mrb[0].mxu0
        %v4169 = vadd.f32 %v3907, %v4168
        %v4170 = vpop.f32.mrb[0].mxu0
        %v4171 = vadd.f32 %v3911, %v4170
        %v4172 = vpop.f32.mrb[0].mxu0
        %v4173 = vadd.f32 %v3907, %v4172
        %v4174 = vpop.f32.mrb[0].mxu0
        %v4175 = vadd.f32 %v3911, %v4174
        %4176 = vmatprep.mubr.bf16.mxu0 %v3886
        %4177 = vmatmul.mubr.bf16.gmra.mrb[0].mxu0 %v3885
        %v4178 = vpop.f32.mrb[0].mxu0
        %v4179 = vadd.f32 %v3907, %v4178
        %v4180 = vpop.f32.mrb[0].mxu0
        %v4181 = vadd.f32 %v3911, %v4180
        %v4182 = vpop.f32.mrb[0].mxu0
        %v4183 = vadd.f32 %v3907, %v4182
        %v4184 = vpop.f32.mrb[0].mxu0
        %v4185 = vadd.f32 %v3911, %v4184
        %4186 = vmatprep.mubr.bf16.mxu0 %v3888
        %4187 = vmatmul.mubr.bf16.gmra.mrb[0].mxu0 %v3887
        %v4188 = vpop.f32.mrb[0].mxu0
        %v4189 = vadd.f32 %v3907, %v4188
        %v4190 = vpop.f32.mrb[0].mxu0
        %v4191 = vadd.f32 %v3911, %v4190
        %v4192 = vpop.f32.mrb[0].mxu0
        %v4193 = vadd.f32 %v3907, %v4192
        %v4194 = vpop.f32.mrb[0].mxu0
        %v4195 = vadd.f32 %v3911, %v4194
        %4196 = vmatprep.mubr.bf16.mxu0 %v3890
        %4197 = vmatmul.mubr.bf16.gmra.mrb[0].mxu0 %v3889
        %v4198 = vpop.f32.mrb[0].mxu0
        %v4199 = vadd.f32 %v3907, %v4198
        %v4200 = vpop.f32.mrb[0].mxu0
        %v4201 = vadd.f32 %v3911, %v4200
        %v4202 = vpop.f32.mrb[0].mxu0
        %v4203 = vadd.f32 %v3907, %v4202
        %v4204 = vpop.f32.mrb[0].mxu0
        %v4205 = vadd.f32 %v3911, %v4204
        %4206 = vmatprep.mubr.bf16.mxu0 %v3892
        %4207 = vmatmul.mubr.bf16.gmra.mrb[0].mxu0 %v3891
        %v4208 = vpop.f32.mrb[0].mxu0
        %v4209 = vadd.f32 %v3907, %v4208
        %v4210 = vpop.f32.mrb[0].mxu0
        %v4211 = vadd.f32 %v3911, %v4210
        %v4212 = vpop.f32.mrb[0].mxu0
        %v4213 = vadd.f32 %v3907, %v4212
        %v4214 = vpop.f32.mrb[0].mxu0
        %v4215 = vadd.f32 %v3911, %v4214
        %4216 = vmatprep.mubr.bf16.mxu0 %v3894
        %4217 = vmatmul.mubr.bf16.gmra.mrb[0].mxu0 %v3893
        %v4218 = vpop.f32.mrb[0].mxu0
        %v4219 = vadd.f32 %v3907, %v4218
        %v4220 = vpop.f32.mrb[0].mxu0
        %v4221 = vadd.f32 %v3911, %v4220
        %v4222 = vpop.f32.mrb[0].mxu0
        %v4223 = vadd.f32 %v3907, %v4222
        %v4224 = vpop.f32.mrb[0].mxu0
        %v4225 = vadd.f32 %v3911, %v4224
        %4226 = vmatprep.mubr.bf16.mxu0 %v3896
        %4227 = vmatmul.mubr.bf16.gmra.mrb[0].mxu0 %v3895
        %v4228 = vpop.f32.mrb[0].mxu0
        %v4229 = vadd.f32 %v3907, %v4228
        %v4230 = vpop.f32.mrb[0].mxu0
        %v4231 = vadd.f32 %v3911, %v4230
        %v4232 = vpop.f32.mrb[0].mxu0
        %v4233 = vadd.f32 %v3907, %v4232
        %v4234 = vpop.f32.mrb[0].mxu0
        %v4235 = vadd.f32 %v3911, %v4234
        %4236 = vmatprep.mubr.bf16.mxu0 %v3898
        %4237 = vmatmul.mubr.bf16.gmra.mrb[0].mxu0 %v3897
        %v4238 = vpop.f32.mrb[0].mxu0
        %v4239 = vadd.f32 %v3907, %v4238
        %v4240 = vpop.f32.mrb[0].mxu0
        %v4241 = vadd.f32 %v3911, %v4240
        %v4242 = vpop.f32.mrb[0].mxu0
        %v4243 = vadd.f32 %v3907, %v4242
        %v4244 = vpop.f32.mrb[0].mxu0
        %v4245 = vadd.f32 %v3911, %v4244
        %4246 = vmatprep.mubr.bf16.mxu0 %v3900
        %4247 = vmatmul.mubr.bf16.gmra.mrb[0].mxu0 %v3899
        %v4248 = vpop.f32.mrb[0].mxu0
        %v4249 = vadd.f32 %v3907, %v4248
        %v4250 = vpop.f32.mrb[0].mxu0
        %v4251 = vadd.f32 %v3911, %v4250
        %v4252 = vpop.f32.mrb[0].mxu0
        %v4253 = vadd.f32 %v3907, %v4252
        %v4254 = vpop.f32.mrb[0].mxu0
        %v4255 = vadd.f32 %v3911, %v4254
        %4256 = vmatprep.mubr.bf16.mxu0 %v3902
        %4257 = vmatmul.mubr.bf16.gmra.mrb[0].mxu0 %v3901
        %v4258 = vpop.f32.mrb[0].mxu0
        %v4259 = vadd.f32 %v3907, %v4258
        %v4260 = vpop.f32.mrb[0].mxu0
        %v4261 = vadd.f32 %v3911, %v4260
        %v4262 = vpop.f32.mrb[0].mxu0
        %v4263 = vadd.f32 %v3907, %v4262
        %v4264 = vpop.f32.mrb[0].mxu0
        %v4265 = vadd.f32 %v3911, %v4264
        %4266 = vdwg.mxu0
        %v4267 = vmax.f32 %v4109, 0.0
        %v4268 = vmax.f32 %v4111, 0.0
        %v4269 = vmax.f32 %v4113, 0.0
        %v4270 = vmax.f32 %v4115, 0.0
        %v4271 = vmax.f32 %v4119, 0.0
        %v4272 = vmax.f32 %v4121, 0.0
        %v4273 = vmax.f32 %v4123, 0.0
        %v4274 = vmax.f32 %v4125, 0.0
        %v4275 = vmax.f32 %v4129, 0.0
        %v4276 = vmax.f32 %v4131, 0.0
        %v4277 = vmax.f32 %v4133, 0.0
        %v4278 = vmax.f32 %v4135, 0.0
        %v4279 = vmax.f32 %v4139, 0.0
        %v4280 = vmax.f32 %v4141, 0.0
        %v4281 = vmax.f32 %v4143, 0.0
        %v4282 = vmax.f32 %v4145, 0.0
        %v4283 = vmax.f32 %v4149, 0.0
        %v4284 = vmax.f32 %v4151, 0.0
        %v4285 = vmax.f32 %v4153, 0.0
        %v4286 = vmax.f32 %v4155, 0.0
        %v4287 = vmax.f32 %v4159, 0.0
        %v4288 = vmax.f32 %v4161, 0.0
        %v4289 = vmax.f32 %v4163, 0.0
        %v4290 = vmax.f32 %v4165, 0.0
        %v4291 = vmax.f32 %v4169, 0.0
        %v4292 = vmax.f32 %v4171, 0.0
        %v4293 = vmax.f32 %v4173, 0.0
        %v4294 = vmax.f32 %v4175, 0.0
        %v4295 = vmax.f32 %v4179, 0.0
        %v4296 = vmax.f32 %v4181, 0.0
        %v4297 = vmax.f32 %v4183, 0.0
        %v4298 = vmax.f32 %v4185, 0.0
        %v4299 = vmax.f32 %v4189, 0.0
        %v4300 = vmax.f32 %v4191, 0.0
        %v4301 = vmax.f32 %v4193, 0.0
        %v4302 = vmax.f32 %v4195, 0.0
        %v4303 = vmax.f32 %v4199, 0.0
        %v4304 = vmax.f32 %v4201, 0.0
        %v4305 = vmax.f32 %v4203, 0.0
        %v4306 = vmax.f32 %v4205, 0.0
        %v4307 = vmax.f32 %v4209, 0.0
        %v4308 = vmax.f32 %v4211, 0.0
        %v4309 = vmax.f32 %v4213, 0.0
        %v4310 = vmax.f32 %v4215, 0.0
        %v4311 = vmax.f32 %v4219, 0.0
        %v4312 = vmax.f32 %v4221, 0.0
        %v4313 = vmax.f32 %v4223, 0.0
        %v4314 = vmax.f32 %v4225, 0.0
        %v4315 = vmax.f32 %v4229, 0.0
        %v4316 = vmax.f32 %v4231, 0.0
        %v4317 = vmax.f32 %v4233, 0.0
        %v4318 = vmax.f32 %v4235, 0.0
        %v4319 = vmax.f32 %v4239, 0.0
        %v4320 = vmax.f32 %v4241, 0.0
        %v4321 = vmax.f32 %v4243, 0.0
        %v4322 = vmax.f32 %v4245, 0.0
        %v4323 = vmax.f32 %v4249, 0.0
        %v4324 = vmax.f32 %v4251, 0.0
        %v4325 = vmax.f32 %v4253, 0.0
        %v4326 = vmax.f32 %v4255, 0.0
        %v4327 = vmax.f32 %v4259, 0.0
        %v4328 = vmax.f32 %v4261, 0.0
        %v4329 = vmax.f32 %v4263, 0.0
        %v4330 = vmax.f32 %v4265, 0.0
        %v4331 = vld [vmem:[%s4] sm:$0xf]
        %v4332 = vld [vmem:[%s4 + $0x4] sm:$0xf]
        %v4333 = vld [vmem:[%s4 + $0x8] sm:$0xf]
        %v4334 = vld [vmem:[%s4 + $0xc] sm:$0xf]
        %v4335 = vld [vmem:[%s4 + $0x10] sm:$0xf]
        %v4336 = vld [vmem:[%s4 + $0x14] sm:$0xf]
        %v4337 = vld [vmem:[%s4 + $0x18] sm:$0xf]
        %v4338 = vld [vmem:[%s4 + $0x1c] sm:$0xf]
        %v4339 = vld [vmem:[%s4 + $0x20] sm:$0xf]
        %v4340 = vld [vmem:[%s4 + $0x24] sm:$0xf]
        %v4341 = vld [vmem:[%s4 + $0x28] sm:$0xf]
        %v4342 = vld [vmem:[%s4 + $0x2c] sm:$0xf]
        %v4343 = vld [vmem:[%s4 + $0x30] sm:$0xf]
        %v4344 = vld [vmem:[%s4 + $0x34] sm:$0xf]
        %v4345 = vld [vmem:[%s4 + $0x38] sm:$0xf]
        %v4346 = vld [vmem:[%s4 + $0x3c] sm:$0xf]
        %v4347 = vld [vmem:[%s4 + $0x40] sm:$0xf]
        %v4348 = vld [vmem:[%s4 + $0x44] sm:$0xf]
        %v4349 = vld [vmem:[%s4 + $0x48] sm:$0xf]
        %v4350 = vld [vmem:[%s4 + $0x4c] sm:$0xf]
        %v4351 = vld [vmem:[%s4 + $0x50] sm:$0xf]
        %v4352 = vld [vmem:[%s4 + $0x54] sm:$0xf]
        %v4353 = vld [vmem:[%s4 + $0x58] sm:$0xf]
        %v4354 = vld [vmem:[%s4 + $0x5c] sm:$0xf]
        %v4355 = vld [vmem:[%s4 + $0x60] sm:$0xf]
        %v4356 = vld [vmem:[%s4 + $0x64] sm:$0xf]
        %v4357 = vld [vmem:[%s4 + $0x68] sm:$0xf]
        %v4358 = vld [vmem:[%s4 + $0x6c] sm:$0xf]
        %v4359 = vld [vmem:[%s4 + $0x70] sm:$0xf]
        %v4360 = vld [vmem:[%s4 + $0x74] sm:$0xf]
        %v4361 = vld [vmem:[%s4 + $0x78] sm:$0xf]
        %v4362 = vld [vmem:[%s4 + $0x7c] sm:$0xf]
        %v4363 = vld [vmem:[%s5] sm:$0x1]
        %v4364 = vpack.c.bf16 %v4269, %v4267
        %v4365 = vpack.c.bf16 %v4270, %v4268
        %v4366 = vpack.c.bf16 %v4273, %v4271
        %v4367 = vpack.c.bf16 %v4274, %v4272
        %v4368 = vpack.c.bf16 %v4277, %v4275
        %v4369 = vpack.c.bf16 %v4278, %v4276
        %v4370 = vpack.c.bf16 %v4281, %v4279
        %v4371 = vpack.c.bf16 %v4282, %v4280
        %v4372 = vpack.c.bf16 %v4285, %v4283
        %v4373 = vpack.c.bf16 %v4286, %v4284
        %v4374 = vpack.c.bf16 %v4289, %v4287
        %v4375 = vpack.c.bf16 %v4290, %v4288
        %v4376 = vpack.c.bf16 %v4293, %v4291
        %v4377 = vpack.c.bf16 %v4294, %v4292
        %v4378 = vpack.c.bf16 %v4297, %v4295
        %v4379 = vpack.c.bf16 %v4298, %v4296
        %v4380 = vpack.c.bf16 %v4301, %v4299
        %v4381 = vpack.c.bf16 %v4302, %v4300
        %v4382 = vpack.c.bf16 %v4305, %v4303
        %v4383 = vpack.c.bf16 %v4306, %v4304
        %v4384 = vpack.c.bf16 %v4309, %v4307
        %v4385 = vpack.c.bf16 %v4310, %v4308
        %v4386 = vpack.c.bf16 %v4313, %v4311
        %v4387 = vpack.c.bf16 %v4314, %v4312
        %v4388 = vpack.c.bf16 %v4317, %v4315
        %v4389 = vpack.c.bf16 %v4318, %v4316
        %v4390 = vpack.c.bf16 %v4321, %v4319
        %v4391 = vpack.c.bf16 %v4322, %v4320
        %v4392 = vpack.c.bf16 %v4325, %v4323
        %v4393 = vpack.c.bf16 %v4326, %v4324
        %v4394 = vpack.c.bf16 %v4329, %v4327
        %v4395 = vpack.c.bf16 %v4330, %v4328
        %v4397 = vlaneseq
        %v4398 = vshrl.u32 %v4397, 7
        %v4399 = vsub.s32 0, %v4398
        %v4400 = vrot.slane %v4363, %v4399
        %v4434 = vunpack.c.l.b16 %v4331
        %v4435 = vunpack.c.l.b16 %v4332
        %v4436 = vunpack.c.l.b16 %v4333
        %v4437 = vunpack.c.l.b16 %v4334
        %v4438 = vunpack.c.l.b16 %v4335
        %v4439 = vunpack.c.l.b16 %v4336
        %v4440 = vunpack.c.l.b16 %v4337
        %v4441 = vunpack.c.l.b16 %v4338
        %v4442 = vunpack.c.l.b16 %v4339
        %v4443 = vunpack.c.l.b16 %v4340
        %v4444 = vunpack.c.l.b16 %v4341
        %v4445 = vunpack.c.l.b16 %v4342
        %v4446 = vunpack.c.l.b16 %v4343
        %v4447 = vunpack.c.l.b16 %v4344
        %v4448 = vunpack.c.l.b16 %v4345
        %v4449 = vunpack.c.l.b16 %v4346
        %v4450 = vunpack.c.l.b16 %v4347
        %v4451 = vunpack.c.l.b16 %v4348
        %v4452 = vunpack.c.l.b16 %v4349
        %v4453 = vunpack.c.l.b16 %v4350
        %v4454 = vunpack.c.l.b16 %v4351
        %v4455 = vunpack.c.l.b16 %v4352
        %v4456 = vunpack.c.l.b16 %v4353
        %v4457 = vunpack.c.l.b16 %v4354
        %v4458 = vunpack.c.l.b16 %v4355
        %v4459 = vunpack.c.l.b16 %v4356
        %v4460 = vunpack.c.l.b16 %v4357
        %v4461 = vunpack.c.l.b16 %v4358
        %v4462 = vunpack.c.l.b16 %v4359
        %v4463 = vunpack.c.l.b16 %v4360
        %v4464 = vunpack.c.l.b16 %v4361
        %v4465 = vunpack.c.l.b16 %v4362
        %v4466 = vpack.c.b16 %v4435, %v4434
        %v4467 = vpack.c.b16 %v4437, %v4436
        %v4468 = vpack.c.b16 %v4439, %v4438
        %v4469 = vpack.c.b16 %v4441, %v4440
        %v4470 = vpack.c.b16 %v4443, %v4442
        %v4471 = vpack.c.b16 %v4445, %v4444
        %v4472 = vpack.c.b16 %v4447, %v4446
        %v4473 = vpack.c.b16 %v4449, %v4448
        %v4474 = vpack.c.b16 %v4451, %v4450
        %v4475 = vpack.c.b16 %v4453, %v4452
        %v4476 = vpack.c.b16 %v4455, %v4454
        %v4477 = vpack.c.b16 %v4457, %v4456
        %v4478 = vpack.c.b16 %v4459, %v4458
        %v4479 = vpack.c.b16 %v4461, %v4460
        %v4480 = vpack.c.b16 %v4463, %v4462
        %v4481 = vpack.c.b16 %v4465, %v4464
        %4498 = vmatprep.subr.bf16.mxu0 0
        %4499 = vmatpush1.bf16.msra.mxu0 %v4466
        %4500 = vmatprep.subr.bf16.mxu0 0
        %4501 = vmatpush1.bf16.msra.mxu0 %v4467
        %4502 = vmatprep.subr.bf16.mxu0 0
        %4503 = vmatpush1.bf16.msra.mxu0 %v4468
        %4504 = vmatprep.subr.bf16.mxu0 0
        %4505 = vmatpush1.bf16.msra.mxu0 %v4469
        %4506 = vmatprep.subr.bf16.mxu0 0
        %4507 = vmatpush1.bf16.msra.mxu0 %v4470
        %4508 = vmatprep.subr.bf16.mxu0 0
        %4509 = vmatpush1.bf16.msra.mxu0 %v4471
        %4510 = vmatprep.subr.bf16.mxu0 0
        %4511 = vmatpush1.bf16.msra.mxu0 %v4472
        %4512 = vmatprep.subr.bf16.mxu0 0
        %4513 = vmatpush1.bf16.msra.mxu0 %v4473
        %4514 = vmatprep.subr.bf16.mxu0 0
        %4515 = vmatpush1.bf16.msra.mxu0 %v4474
        %4516 = vmatprep.subr.bf16.mxu0 0
        %4517 = vmatpush1.bf16.msra.mxu0 %v4475
        %4518 = vmatprep.subr.bf16.mxu0 0
        %4519 = vmatpush1.bf16.msra.mxu0 %v4476
        %4520 = vmatprep.subr.bf16.mxu0 0
        %4521 = vmatpush1.bf16.msra.mxu0 %v4477
        %4522 = vmatprep.subr.bf16.mxu0 0
        %4523 = vmatpush1.bf16.msra.mxu0 %v4478
        %4524 = vmatprep.subr.bf16.mxu0 0
        %4525 = vmatpush1.bf16.msra.mxu0 %v4479
        %4526 = vmatprep.subr.bf16.mxu0 0
        %4527 = vmatpush1.bf16.msra.mxu0 %v4480
        %4528 = vmatprep.subr.bf16.mxu0 0
        %4529 = vmatpush1.bf16.msra.mxu0 %v4481
        %4530 = vmatprep.mubr.bf16.mxu0 %v4365
        %4531 = vmatmul.mubr.bf16.gmra.mrb[0].mxu0 %v4364
        %v4532 = vpop.f32.mrb[0].mxu0
        %v4533 = vadd.f32 %v4400, %v4532
        %v4534 = vpop.f32.mrb[0].mxu0
        %v4535 = vpop.f32.mrb[0].mxu0
        %v4536 = vadd.f32 %v4400, %v4535
        %v4537 = vpop.f32.mrb[0].mxu0
        %4538 = vmatprep.mubr.bf16.mxu0 %v4367
        %4539 = vmatmul.mubr.bf16.gmra.mrb[0].mxu0 %v4366
        %v4540 = vpop.f32.mrb[0].mxu0
        %v4541 = vadd.f32 %v4400, %v4540
        %v4542 = vpop.f32.mrb[0].mxu0
        %v4543 = vpop.f32.mrb[0].mxu0
        %v4544 = vadd.f32 %v4400, %v4543
        %v4545 = vpop.f32.mrb[0].mxu0
        %4546 = vmatprep.mubr.bf16.mxu0 %v4369
        %4547 = vmatmul.mubr.bf16.gmra.mrb[0].mxu0 %v4368
        %v4548 = vpop.f32.mrb[0].mxu0
        %v4549 = vadd.f32 %v4400, %v4548
        %v4550 = vpop.f32.mrb[0].mxu0
        %v4551 = vpop.f32.mrb[0].mxu0
        %v4552 = vadd.f32 %v4400, %v4551
        %v4553 = vpop.f32.mrb[0].mxu0
        %4554 = vmatprep.mubr.bf16.mxu0 %v4371
        %4555 = vmatmul.mubr.bf16.gmra.mrb[0].mxu0 %v4370
        %v4556 = vpop.f32.mrb[0].mxu0
        %v4557 = vadd.f32 %v4400, %v4556
        %v4558 = vpop.f32.mrb[0].mxu0
        %v4559 = vpop.f32.mrb[0].mxu0
        %v4560 = vadd.f32 %v4400, %v4559
        %v4561 = vpop.f32.mrb[0].mxu0
        %4562 = vmatprep.mubr.bf16.mxu0 %v4373
        %4563 = vmatmul.mubr.bf16.gmra.mrb[0].mxu0 %v4372
        %v4564 = vpop.f32.mrb[0].mxu0
        %v4565 = vadd.f32 %v4400, %v4564
        %v4566 = vpop.f32.mrb[0].mxu0
        %v4567 = vpop.f32.mrb[0].mxu0
        %v4568 = vadd.f32 %v4400, %v4567
        %v4569 = vpop.f32.mrb[0].mxu0
        %4570 = vmatprep.mubr.bf16.mxu0 %v4375
        %4571 = vmatmul.mubr.bf16.gmra.mrb[0].mxu0 %v4374
        %v4572 = vpop.f32.mrb[0].mxu0
        %v4573 = vadd.f32 %v4400, %v4572
        %v4574 = vpop.f32.mrb[0].mxu0
        %v4575 = vpop.f32.mrb[0].mxu0
        %v4576 = vadd.f32 %v4400, %v4575
        %v4577 = vpop.f32.mrb[0].mxu0
        %4578 = vmatprep.mubr.bf16.mxu0 %v4377
        %4579 = vmatmul.mubr.bf16.gmra.mrb[0].mxu0 %v4376
        %v4580 = vpop.f32.mrb[0].mxu0
        %v4581 = vadd.f32 %v4400, %v4580
        %v4582 = vpop.f32.mrb[0].mxu0
        %v4583 = vpop.f32.mrb[0].mxu0
        %v4584 = vadd.f32 %v4400, %v4583
        %v4585 = vpop.f32.mrb[0].mxu0
        %4586 = vmatprep.mubr.bf16.mxu0 %v4379
        %4587 = vmatmul.mubr.bf16.gmra.mrb[0].mxu0 %v4378
        %v4588 = vpop.f32.mrb[0].mxu0
        %v4589 = vadd.f32 %v4400, %v4588
        %v4590 = vpop.f32.mrb[0].mxu0
        %v4591 = vpop.f32.mrb[0].mxu0
        %v4592 = vadd.f32 %v4400, %v4591
        %v4593 = vpop.f32.mrb[0].mxu0
        %4594 = vmatprep.mubr.bf16.mxu0 %v4381
        %4595 = vmatmul.mubr.bf16.gmra.mrb[0].mxu0 %v4380
        %v4596 = vpop.f32.mrb[0].mxu0
        %v4597 = vadd.f32 %v4400, %v4596
        %v4598 = vpop.f32.mrb[0].mxu0
        %v4599 = vpop.f32.mrb[0].mxu0
        %v4600 = vadd.f32 %v4400, %v4599
        %v4601 = vpop.f32.mrb[0].mxu0
        %4602 = vmatprep.mubr.bf16.mxu0 %v4383
        %4603 = vmatmul.mubr.bf16.gmra.mrb[0].mxu0 %v4382
        %v4604 = vpop.f32.mrb[0].mxu0
        %v4605 = vadd.f32 %v4400, %v4604
        %v4606 = vpop.f32.mrb[0].mxu0
        %v4607 = vpop.f32.mrb[0].mxu0
        %v4608 = vadd.f32 %v4400, %v4607
        %v4609 = vpop.f32.mrb[0].mxu0
        %4610 = vmatprep.mubr.bf16.mxu0 %v4385
        %4611 = vmatmul.mubr.bf16.gmra.mrb[0].mxu0 %v4384
        %v4612 = vpop.f32.mrb[0].mxu0
        %v4613 = vadd.f32 %v4400, %v4612
        %v4614 = vpop.f32.mrb[0].mxu0
        %v4615 = vpop.f32.mrb[0].mxu0
        %v4616 = vadd.f32 %v4400, %v4615
        %v4617 = vpop.f32.mrb[0].mxu0
        %4618 = vmatprep.mubr.bf16.mxu0 %v4387
        %4619 = vmatmul.mubr.bf16.gmra.mrb[0].mxu0 %v4386
        %v4620 = vpop.f32.mrb[0].mxu0
        %v4621 = vadd.f32 %v4400, %v4620
        %v4622 = vpop.f32.mrb[0].mxu0
        %v4623 = vpop.f32.mrb[0].mxu0
        %v4624 = vadd.f32 %v4400, %v4623
        %v4625 = vpop.f32.mrb[0].mxu0
        %4626 = vmatprep.mubr.bf16.mxu0 %v4389
        %4627 = vmatmul.mubr.bf16.gmra.mrb[0].mxu0 %v4388
        %v4628 = vpop.f32.mrb[0].mxu0
        %v4629 = vadd.f32 %v4400, %v4628
        %v4630 = vpop.f32.mrb[0].mxu0
        %v4631 = vpop.f32.mrb[0].mxu0
        %v4632 = vadd.f32 %v4400, %v4631
        %v4633 = vpop.f32.mrb[0].mxu0
        %4634 = vmatprep.mubr.bf16.mxu0 %v4391
        %4635 = vmatmul.mubr.bf16.gmra.mrb[0].mxu0 %v4390
        %v4636 = vpop.f32.mrb[0].mxu0
        %v4637 = vadd.f32 %v4400, %v4636
        %v4638 = vpop.f32.mrb[0].mxu0
        %v4639 = vpop.f32.mrb[0].mxu0
        %v4640 = vadd.f32 %v4400, %v4639
        %v4641 = vpop.f32.mrb[0].mxu0
        %4642 = vmatprep.mubr.bf16.mxu0 %v4393
        %4643 = vmatmul.mubr.bf16.gmra.mrb[0].mxu0 %v4392
        %v4644 = vpop.f32.mrb[0].mxu0
        %v4645 = vadd.f32 %v4400, %v4644
        %v4646 = vpop.f32.mrb[0].mxu0
        %v4647 = vpop.f32.mrb[0].mxu0
        %v4648 = vadd.f32 %v4400, %v4647
        %v4649 = vpop.f32.mrb[0].mxu0
        %4650 = vmatprep.mubr.bf16.mxu0 %v4395
        %4651 = vmatmul.mubr.bf16.gmra.mrb[0].mxu0 %v4394
        %v4652 = vpop.f32.mrb[0].mxu0
        %v4653 = vadd.f32 %v4400, %v4652
        %v4654 = vpop.f32.mrb[0].mxu0
        %v4655 = vpop.f32.mrb[0].mxu0
        %v4656 = vadd.f32 %v4400, %v4655
        %v4657 = vpop.f32.mrb[0].mxu0
        %4658 = vdwg.mxu0
        %vm4659 = vcmask 31744
        %4660 = vst.msk [vmem:[%s268] sm:$0xff] %vm4659, %v4533
        %4661 = vst.msk [vmem:[%s268 + $0x8] sm:$0xff] %vm4659, %v4536
        %4662 = vst.msk [vmem:[%s268 + $0x10] sm:$0xff] %vm4659, %v4541
        %4663 = vst.msk [vmem:[%s268 + $0x18] sm:$0xff] %vm4659, %v4544
        %4664 = vst.msk [vmem:[%s268 + $0x20] sm:$0xff] %vm4659, %v4549
        %4665 = vst.msk [vmem:[%s268 + $0x28] sm:$0xff] %vm4659, %v4552
        %4666 = vst.msk [vmem:[%s268 + $0x30] sm:$0xff] %vm4659, %v4557
        %4667 = vst.msk [vmem:[%s268 + $0x38] sm:$0xff] %vm4659, %v4560
        %4668 = vst.msk [vmem:[%s268 + $0x40] sm:$0xff] %vm4659, %v4565
        %4669 = vst.msk [vmem:[%s268 + $0x48] sm:$0xff] %vm4659, %v4568
        %4670 = vst.msk [vmem:[%s268 + $0x50] sm:$0xff] %vm4659, %v4573
        %4671 = vst.msk [vmem:[%s268 + $0x58] sm:$0xff] %vm4659, %v4576
        %4672 = vst.msk [vmem:[%s268 + $0x60] sm:$0xff] %vm4659, %v4581
        %4673 = vst.msk [vmem:[%s268 + $0x68] sm:$0xff] %vm4659, %v4584
        %4674 = vst.msk [vmem:[%s268 + $0x70] sm:$0xff] %vm4659, %v4589
        %4675 = vst.msk [vmem:[%s268 + $0x78] sm:$0xff] %vm4659, %v4592
        %4676 = vst.msk [vmem:[%s268 + $0x80] sm:$0xff] %vm4659, %v4597
        %4677 = vst.msk [vmem:[%s268 + $0x88] sm:$0xff] %vm4659, %v4600
        %4678 = vst.msk [vmem:[%s268 + $0x90] sm:$0xff] %vm4659, %v4605
        %4679 = vst.msk [vmem:[%s268 + $0x98] sm:$0xff] %vm4659, %v4608
        %4680 = vst.msk [vmem:[%s268 + $0xa0] sm:$0xff] %vm4659, %v4613
        %4681 = vst.msk [vmem:[%s268 + $0xa8] sm:$0xff] %vm4659, %v4616
        %4682 = vst.msk [vmem:[%s268 + $0xb0] sm:$0xff] %vm4659, %v4621
        %4683 = vst.msk [vmem:[%s268 + $0xb8] sm:$0xff] %vm4659, %v4624
        %4684 = vst.msk [vmem:[%s268 + $0xc0] sm:$0xff] %vm4659, %v4629
        %4685 = vst.msk [vmem:[%s268 + $0xc8] sm:$0xff] %vm4659, %v4632
        %4686 = vst.msk [vmem:[%s268 + $0xd0] sm:$0xff] %vm4659, %v4637
        %4687 = vst.msk [vmem:[%s268 + $0xd8] sm:$0xff] %vm4659, %v4640
        %4688 = vst.msk [vmem:[%s268 + $0xe0] sm:$0xff] %vm4659, %v4645
        %4689 = vst.msk [vmem:[%s268 + $0xe8] sm:$0xff] %vm4659, %v4648
        %4690 = vst.msk [vmem:[%s268 + $0xf0] sm:$0xff] %vm4659, %v4653
        %4691 = vst.msk [vmem:[%s268 + $0xf8] sm:$0xff] %vm4659, %v4656
        %s4692 = smul.u32 32, %s18
        %p4693 = scmp.lt.s32.totalorder %s4692, 127
        %s4694 = scalar_select %p4693, %s4692, 127
        %s4695 = smul.addr %s4694, 8
        %s4696 = scalar_lea.vmem %s6, %s4695
        // Predicated region
        $region49: #{tpu_custom_call.1} parent=43 // pred_check
          %p4697 = pneg %p167
        $region50: #{tpu_custom_call.1} parent=43 // pred_check_branch
          %4699 = sbr.rel (%p4697) target = $region52
        $region51: #{tpu_custom_call.1} parent=43 // pred_region
          %s4700 = smul.u32 32, %s18
        $region52: #{tpu_custom_call.1} parent=43 // pred_fallthru
          _
      $region44: #{tpu_custom_call.1} parent=5 // pred_fallthru
        _
      %p4701 = scmp.le.s32.totalorder 2, %s13
      // Predicated region
      $region53: #{tpu_custom_call.1} parent=5 // pred_check
        %p4702 = pneg %p4701
      $region54: #{tpu_custom_call.1} parent=5 // pred_check_branch
        %4704 = sbr.rel (%p4702) target = $region56
      $region55: #{tpu_custom_call.1} parent=5 // pred_region
        %s4705 = ssub.s32 %s13, 2
        // Predicated region
        $region57: #{tpu_custom_call.1} parent=55 // pred_check
          %p4706 = pneg %p173
        $region58: #{tpu_custom_call.1} parent=55 // pred_check_branch
          %4708 = sbr.rel (%p4706) target = $region60
        $region59: #{tpu_custom_call.1} parent=55 // pred_region
          %s4709 = smul.u32 32, %s19
          %p4710 = scmp.lt.s32.totalorder %s4709, 127
          %s4711 = scalar_select %p4710, %s4709, 127
          %s4712 = smul.addr %s4711, 8
          %s4713 = scalar_lea.vmem %s6, %s4712
        $region60: #{tpu_custom_call.1} parent=55 // pred_fallthru
          _
      $region56: #{tpu_custom_call.1} parent=5 // pred_fallthru
        _
    $region6: #{tpu_custom_call.1} parent=1 // loop_footer
      %s17 = sadd.s32 1, %s13
    $region7: #{tpu_custom_call.1} parent=1 // loop_footer_branch
      %12 = sbr.rel target = $region3
    $region8: #{tpu_custom_call.1} parent=1 // loop_exit
      _
    %4714 = vsyncpa [#allocation3], 1
    %s4715 = scalar_lea.sflag [#allocation3], 1
    %4716 = vsyncpa %s4715, 1

</llo_original>
